<compile_context>
chip_gen: v7x
topology: tpu7x:2x2x1
jax: 0.10.0
libtpu: 0.0.40
codegen_flags: <defaults>
</compile_context>

<pallas_src>
import functools

import jax
import jax.numpy as jnp
from jax.experimental import pallas as pl
from jax.experimental.pallas import tpu as pltpu

EPS = 1e-5  # nn.LayerNorm default


def _layernorm(x, gamma, beta):
    # One-pass statistics: var = E[x^2] - mu^2 (saves one (T, D) subtract pass
    # vs. the two-pass form; fine in f32 at these magnitudes).
    mu = jnp.mean(x, axis=-1, keepdims=True)
    ms = jnp.mean(x * x, axis=-1, keepdims=True)
    var = ms - mu * mu
    return (x - mu) * jax.lax.rsqrt(var + EPS) * gamma + beta


def block_kernel(
    x_ref,
    ln1_g_ref, ln1_b_ref,
    wqkv_ref,
    wo_ref, bo_ref,
    ln2_g_ref, ln2_b_ref,
    w1_ref, b1_ref, w2_ref, b2_ref,
    o_ref,
    qkv_scr, acc_scr,
    *, num_heads,
):
    x = x_ref[0].astype(jnp.float32)      # (T, D) residual path kept in f32
    T, D = x.shape
    hd = D // num_heads

    # ---------------- self-attention branch (pre-LN) ----------------
    h = _layernorm(x, ln1_g_ref[0], ln1_b_ref[0]).astype(jnp.bfloat16)
    # Fused lane-dense QKV projection: (T, D) @ (D, 3D) -> (T, 3D), f32 acc.
    # 1/sqrt(hd) is pre-folded into the Wq columns at prepare time.
    qkv = jnp.dot(h, wqkv_ref[...],
                  preferred_element_type=jnp.float32).astype(jnp.bfloat16)

    # Spill per-head Q/K/V slices to VMEM scratch (static lane slices here;
    # the head loop below only uses dynamic leading-axis indexing).
    for j in range(3 * num_heads):
        qkv_scr[j] = qkv[:, j * hd:(j + 1) * hd]

    # Accumulator initialized to residual + output-projection bias: kills one
    # (T, D) add and lets x die before the head loop.
    acc_scr[...] = x + bo_ref[0]

    row = jax.lax.broadcasted_iota(jnp.int32, (T, T), 0)
    col = jax.lax.broadcasted_iota(jnp.int32, (T, T), 1)
    causal = row >= col                   # hoisted out of the head loop

    def head_body(hh, carry):
        qh = qkv_scr[hh]                  # (T, hd) bf16
        kh = qkv_scr[num_heads + hh]
        vh = qkv_scr[2 * num_heads + hh]
        # q @ k^T without materializing a transpose (NT dot_general).
        s = jax.lax.dot_general(qh, kh, (((1,), (1,)), ((), ())),
                                preferred_element_type=jnp.float32)  # (T, T)
        s = jnp.where(causal, s, -1e30)
        p = jnp.exp(s - jnp.max(s, axis=-1, keepdims=True))
        denom = jnp.sum(p, axis=-1, keepdims=True)
        # Unnormalized PV matmul; defer the 1/rowsum to the (T, hd) output
        # (T/hd fewer VPU multiplies than normalizing the (T, T) probs).
        oh = jnp.dot(p.astype(jnp.bfloat16), vh,
                     preferred_element_type=jnp.float32)             # (T, hd)
        oh = oh * pl.reciprocal(denom, approx=True)
        # Fold the output projection per head: no concatenate needed.
        # NOTE: K = hd = 32 contraction under-uses the MXU depth; acceptable
        # at these toy dims (see review) - revisit before scaling D.
        acc_scr[...] += jnp.dot(oh.astype(jnp.bfloat16), wo_ref[hh],
                                preferred_element_type=jnp.float32)
        return carry

    jax.lax.fori_loop(0, num_heads, head_body, None, unroll=True)

    x = acc_scr[...]                      # (T, D) f32 = residual + attention

    # ---------------- feedforward branch (pre-LN) ----------------
    h2 = _layernorm(x, ln2_g_ref[0], ln2_b_ref[0]).astype(jnp.bfloat16)
    f = jnp.dot(h2, w1_ref[...], preferred_element_type=jnp.float32) + b1_ref[0]
    f = jnp.maximum(f, 0.0).astype(jnp.bfloat16)
    f = jnp.dot(f, w2_ref[...], preferred_element_type=jnp.float32) + b2_ref[0]

    o_ref[0] = (x + f).astype(o_ref.dtype)


def prepare_block_params(params, num_heads):
    """One-time (init-time) weight repack: fuse QKV, fold the attention scale
    into Wq, reshape Wo per head, and cast MXU operands to bf16.  LayerNorm
    params and biases stay f32 (they only enter f32 vector math)."""
    D = params["wq"].shape[0]
    hd = D // num_heads
    scale = hd ** -0.5
    wqkv = jnp.concatenate(
        [params["wq"] * scale, params["wk"], params["wv"]],
        axis=1).astype(jnp.bfloat16)                      # (D, 3D)
    wo = params["wo"].reshape(num_heads, hd, D).astype(jnp.bfloat16)
    return {
        "ln1_g": params["ln1_g"], "ln1_b": params["ln1_b"],
        "wqkv": wqkv,
        "wo": wo, "bo": params["bo"],
        "ln2_g": params["ln2_g"], "ln2_b": params["ln2_b"],
        "w1": params["w1"].astype(jnp.bfloat16), "b1": params["b1"],
        "w2": params["w2"].astype(jnp.bfloat16), "b2": params["b2"],
    }


def transformer_block(x, fused, num_heads):
    B, T, D = x.shape
    hd = D // num_heads
    F = fused["w1"].shape[1]

    def full(shape):
        # TODO(synk): for v7x at production sizes, pass
        # pipeline_mode=pl.Buffered(1) on these constant-index weight specs.
        return pl.BlockSpec(shape, lambda b: (0,) * len(shape))

    in_specs = [
        pl.BlockSpec((1, T, D), lambda b: (b, 0, 0)),   # x
        full((1, D)), full((1, D)),                     # ln1 gamma, beta (f32)
        full((D, 3 * D)),                               # fused Wqkv (bf16)
        full((num_heads, hd, D)), full((1, D)),         # Wo per head, bo
        full((1, D)), full((1, D)),                     # ln2 gamma, beta (f32)
        full((D, F)), full((1, F)),                     # W1 (bf16), b1 (f32)
        full((F, D)), full((1, D)),                     # W2 (bf16), b2 (f32)
    ]
    out_spec = pl.BlockSpec((1, T, D), lambda b: (b, 0, 0))

    kernel = functools.partial(block_kernel, num_heads=num_heads)
    return pl.pallas_call(
        kernel,
        out_shape=jax.ShapeDtypeStruct((B, T, D), x.dtype),
        grid_spec=pltpu.PrefetchScalarGridSpec(
            num_scalar_prefetch=0,
            grid=(B,),
            in_specs=in_specs,
            out_specs=out_spec,
            scratch_shapes=[
                pltpu.VMEM((3 * num_heads, T, hd), jnp.bfloat16),  # Q/K/V heads
                pltpu.VMEM((T, D), jnp.float32),                   # attn accum
            ],
        ),
        compiler_params=pltpu.CompilerParams(
            dimension_semantics=("parallel",)),
    )(
        x,
        fused["ln1_g"], fused["ln1_b"],
        fused["wqkv"],
        fused["wo"], fused["bo"],
        fused["ln2_g"], fused["ln2_b"],
        fused["w1"], fused["b1"], fused["w2"], fused["b2"],
    )


def reference_block(x, params, num_heads):
    """Pure-JAX f32 reference of the same forward pass (for validation)."""
    def ln(v, g, b):
        mu = v.mean(-1, keepdims=True)
        var = ((v - mu) ** 2).mean(-1, keepdims=True)
        return (v - mu) / jnp.sqrt(var + EPS) * g + b

    B, T, D = x.shape
    hd = D // num_heads
    h = ln(x, params["ln1_g"][0], params["ln1_b"][0])
    q = h @ params["wq"]
    k = h @ params["wk"]
    v = h @ params["wv"]
    q = q.reshape(B, T, num_heads, hd).transpose(0, 2, 1, 3)
    k = k.reshape(B, T, num_heads, hd).transpose(0, 2, 1, 3)
    v = v.reshape(B, T, num_heads, hd).transpose(0, 2, 1, 3)
    s = jnp.einsum("bhqd,bhkd->bhqk", q, k) / (hd ** 0.5)
    mask = jnp.tril(jnp.ones((T, T), dtype=bool))
    s = jnp.where(mask, s, -jnp.inf)
    p = jax.nn.softmax(s, axis=-1)
    a = jnp.einsum("bhqk,bhkd->bhqd", p, v)
    a = a.transpose(0, 2, 1, 3).reshape(B, T, D)
    a = a @ params["wo"] + params["bo"][0]
    x = x + a
    h2 = ln(x, params["ln2_g"][0], params["ln2_b"][0])
    f = jnp.maximum(h2 @ params["w1"] + params["b1"][0], 0.0)
    f = f @ params["w2"] + params["b2"][0]
    return x + f


def init_params(key, embed_dim, ff_dim):
    ks = jax.random.split(key, 8)
    std = 0.02
    return {
        "ln1_g": jnp.ones((1, embed_dim), jnp.float32),
        "ln1_b": jnp.zeros((1, embed_dim), jnp.float32),
        "wq": std * jax.random.normal(ks[0], (embed_dim, embed_dim), jnp.float32),
        "wk": std * jax.random.normal(ks[1], (embed_dim, embed_dim), jnp.float32),
        "wv": std * jax.random.normal(ks[2], (embed_dim, embed_dim), jnp.float32),
        "wo": std * jax.random.normal(ks[3], (embed_dim, embed_dim), jnp.float32),
        "bo": std * jax.random.normal(ks[4], (1, embed_dim), jnp.float32),
        "ln2_g": jnp.ones((1, embed_dim), jnp.float32),
        "ln2_b": jnp.zeros((1, embed_dim), jnp.float32),
        "w1": std * jax.random.normal(ks[5], (embed_dim, ff_dim), jnp.float32),
        "b1": std * jax.random.normal(ks[6], (1, ff_dim), jnp.float32),
        "w2": std * jax.random.normal(ks[7], (ff_dim, embed_dim), jnp.float32),
        "b2": jnp.zeros((1, embed_dim), jnp.float32),
    }


if __name__ == "__main__":
    # Small but lane-dense shapes: batch=2, seq=128, embed=128, heads=4, ff=512.
    B, T, D, H = 2, 128, 128, 4
    FF = 4 * D

    key = jax.random.PRNGKey(0)
    kx, kp = jax.random.split(key)
    x = jax.random.normal(kx, (B, T, D), jnp.float32)
    params = init_params(kp, D, FF)

    # Weight repack happens ONCE here (init time), not per forward call.
    fused = prepare_block_params(params, num_heads=H)
    fused = jax.tree_util.tree_map(jax.block_until_ready, fused)

    out = transformer_block(x, fused, num_heads=H)
    out = jax.block_until_ready(out)

    ref = reference_block(x, params, num_heads=H)
    assert out.shape == (B, T, D)
    # Kernel uses bf16 MXU operands (f32 accumulation) and an approx
    # reciprocal for the softmax denominator, so tolerances are looser than a
    # pure-f32 comparison.
    assert jnp.allclose(out, ref, atol=2e-2, rtol=2e-2), (
        f"max abs diff {jnp.max(jnp.abs(out - ref))}")

    print("KERNEL_OK")
</pallas_src>

<mosaic_0001>
module attributes {stable_mosaic.version = 11 : i64} {
  func.func @block_kernel(%arg0: i32, %arg1: memref<1x128x128xf32, #tpu.memory_space<vmem>>, %arg2: memref<1x128xf32, #tpu.memory_space<vmem>>, %arg3: memref<1x128xf32, #tpu.memory_space<vmem>>, %arg4: memref<128x384xbf16, #tpu.memory_space<vmem>>, %arg5: memref<4x32x128xbf16, #tpu.memory_space<vmem>>, %arg6: memref<1x128xf32, #tpu.memory_space<vmem>>, %arg7: memref<1x128xf32, #tpu.memory_space<vmem>>, %arg8: memref<1x128xf32, #tpu.memory_space<vmem>>, %arg9: memref<128x512xbf16, #tpu.memory_space<vmem>>, %arg10: memref<1x512xf32, #tpu.memory_space<vmem>>, %arg11: memref<512x128xbf16, #tpu.memory_space<vmem>>, %arg12: memref<1x128xf32, #tpu.memory_space<vmem>>, %arg13: memref<1x128x128xf32, #tpu.memory_space<vmem>>, %arg14: memref<12x128x32xbf16, #tpu.memory_space<vmem>>, %arg15: memref<128x128xf32, #tpu.memory_space<vmem>>) attributes {dimension_semantics = [#tpu.dimension_semantics<parallel>], iteration_bounds = array<i64: 2>, scalar_prefetch = 0 : i64, scratch_operands = 2 : i64, tpu.core_type = #tpu.core_type<tc>, window_params = [{transform_indices = @transform_0, window_bounds = array<i64: 1, 128, 128>}, {pipeline_mode = #tpu.pipeline_mode<synchronous>, transform_indices = @transform_1, window_bounds = array<i64: 1, 128>}, {pipeline_mode = #tpu.pipeline_mode<synchronous>, transform_indices = @transform_2, window_bounds = array<i64: 1, 128>}, {pipeline_mode = #tpu.pipeline_mode<synchronous>, transform_indices = @transform_3, window_bounds = array<i64: 128, 384>}, {pipeline_mode = #tpu.pipeline_mode<synchronous>, transform_indices = @transform_4, window_bounds = array<i64: 4, 32, 128>}, {pipeline_mode = #tpu.pipeline_mode<synchronous>, transform_indices = @transform_5, window_bounds = array<i64: 1, 128>}, {pipeline_mode = #tpu.pipeline_mode<synchronous>, transform_indices = @transform_6, window_bounds = array<i64: 1, 128>}, {pipeline_mode = #tpu.pipeline_mode<synchronous>, transform_indices = @transform_7, window_bounds = array<i64: 1, 128>}, {pipeline_mode = #tpu.pipeline_mode<synchronous>, transform_indices = @transform_8, window_bounds = array<i64: 128, 512>}, {pipeline_mode = #tpu.pipeline_mode<synchronous>, transform_indices = @transform_9, window_bounds = array<i64: 1, 512>}, {pipeline_mode = #tpu.pipeline_mode<synchronous>, transform_indices = @transform_10, window_bounds = array<i64: 512, 128>}, {pipeline_mode = #tpu.pipeline_mode<synchronous>, transform_indices = @transform_11, window_bounds = array<i64: 1, 128>}, {transform_indices = @transform_12, window_bounds = array<i64: 1, 128, 128>}]} {
    %c0 = arith.constant 0 : index
    %c0_0 = arith.constant 0 : index
    %c0_1 = arith.constant 0 : index
    %0 = vector.load %arg1[%c0, %c0_0, %c0_1] : memref<1x128x128xf32, #tpu.memory_space<vmem>>, vector<1x128x128xf32>
    %1 = vector.shape_cast %0 : vector<1x128x128xf32> to vector<128x128xf32>
    %c0_2 = arith.constant 0 : index
    %c0_3 = arith.constant 0 : index
    %2 = vector.load %arg2[%c0_2, %c0_3] : memref<1x128xf32, #tpu.memory_space<vmem>>, vector<1x128xf32>
    %3 = vector.shape_cast %2 : vector<1x128xf32> to vector<128xf32>
    %c0_4 = arith.constant 0 : index
    %c0_5 = arith.constant 0 : index
    %4 = vector.load %arg3[%c0_4, %c0_5] : memref<1x128xf32, #tpu.memory_space<vmem>>, vector<1x128xf32>
    %5 = vector.shape_cast %4 : vector<1x128xf32> to vector<128xf32>
    %cst = arith.constant dense<0.000000e+00> : vector<128xf32>
    %6 = vector.multi_reduction <add>, %1, %cst [1] : vector<128x128xf32> to vector<128xf32>
    %7 = vector.shape_cast %6 : vector<128xf32> to vector<128x1xf32>
    %cst_6 = arith.constant 1.280000e+02 : f32
    %8 = vector.broadcast %cst_6 : f32 to vector<128x1xf32>
    %9 = arith.divf %7, %8 : vector<128x1xf32>
    %10 = arith.mulf %1, %1 : vector<128x128xf32>
    %cst_7 = arith.constant dense<0.000000e+00> : vector<128xf32>
    %11 = vector.multi_reduction <add>, %10, %cst_7 [1] : vector<128x128xf32> to vector<128xf32>
    %12 = vector.shape_cast %11 : vector<128xf32> to vector<128x1xf32>
    %cst_8 = arith.constant 1.280000e+02 : f32
    %13 = vector.broadcast %cst_8 : f32 to vector<128x1xf32>
    %14 = arith.divf %12, %13 : vector<128x1xf32>
    %15 = arith.mulf %9, %9 : vector<128x1xf32>
    %16 = arith.subf %14, %15 : vector<128x1xf32>
    %17 = vector.broadcast %9 : vector<128x1xf32> to vector<128x128xf32>
    %18 = arith.subf %1, %17 : vector<128x128xf32>
    %cst_9 = arith.constant 9.99999974E-6 : f32
    %19 = vector.broadcast %cst_9 : f32 to vector<128x1xf32>
    %20 = arith.addf %16, %19 : vector<128x1xf32>
    %21 = math.rsqrt %20 : vector<128x1xf32>
    %22 = vector.broadcast %21 : vector<128x1xf32> to vector<128x128xf32>
    %23 = arith.mulf %18, %22 : vector<128x128xf32>
    %24 = vector.shape_cast %3 : vector<128xf32> to vector<1x128xf32>
    %25 = vector.broadcast %24 : vector<1x128xf32> to vector<128x128xf32>
    %26 = arith.mulf %23, %25 : vector<128x128xf32>
    %27 = vector.shape_cast %5 : vector<128xf32> to vector<1x128xf32>
    %28 = vector.broadcast %27 : vector<1x128xf32> to vector<128x128xf32>
    %29 = arith.addf %26, %28 : vector<128x128xf32>
    %30 = arith.truncf %29 : vector<128x128xf32> to vector<128x128xbf16>
    %c0_10 = arith.constant 0 : index
    %c0_11 = arith.constant 0 : index
    %31 = vector.load %arg4[%c0_10, %c0_11] : memref<128x384xbf16, #tpu.memory_space<vmem>>, vector<128x384xbf16>
    %cst_12 = arith.constant dense<0.000000e+00> : vector<128x384xf32>
    %32 = tpu.matmul %30, %31, %cst_12 {dimension_numbers = #tpu.dot_dimension_numbers<[1], [0], [0], [1], [0, 0, 1, 1], [], []>} : vector<128x128xbf16>, vector<128x384xbf16>, vector<128x384xf32> -> vector<128x384xf32>
    %33 = arith.truncf %32 : vector<128x384xf32> to vector<128x384xbf16>
    %34 = vector.extract_strided_slice %33 {offsets = [0, 0], sizes = [128, 32], strides = [1, 1]} : vector<128x384xbf16> to vector<128x32xbf16>
    %c0_13 = arith.constant 0 : index
    %c0_14 = arith.constant 0 : index
    %c0_15 = arith.constant 0 : index
    %35 = vector.load %arg14[%c0_13, %c0_14, %c0_15] : memref<12x128x32xbf16, #tpu.memory_space<vmem>>, vector<1x128x32xbf16>
    %36 = vector.shape_cast %35 : vector<1x128x32xbf16> to vector<128x32xbf16>
    %37 = vector.shape_cast %34 : vector<128x32xbf16> to vector<1x128x32xbf16>
    tpu.vector_store %arg14[%c0_13, %c0_14, %c0_15], %37 {strides = array<i32>} : memref<12x128x32xbf16, #tpu.memory_space<vmem>>, vector<1x128x32xbf16>,
    %38 = vector.extract_strided_slice %33 {offsets = [0, 32], sizes = [128, 32], strides = [1, 1]} : vector<128x384xbf16> to vector<128x32xbf16>
    %c1 = arith.constant 1 : index
    %c0_16 = arith.constant 0 : index
    %c0_17 = arith.constant 0 : index
    %39 = vector.load %arg14[%c1, %c0_16, %c0_17] : memref<12x128x32xbf16, #tpu.memory_space<vmem>>, vector<1x128x32xbf16>
    %40 = vector.shape_cast %39 : vector<1x128x32xbf16> to vector<128x32xbf16>
    %41 = vector.shape_cast %38 : vector<128x32xbf16> to vector<1x128x32xbf16>
    tpu.vector_store %arg14[%c1, %c0_16, %c0_17], %41 {strides = array<i32>} : memref<12x128x32xbf16, #tpu.memory_space<vmem>>, vector<1x128x32xbf16>,
    %42 = vector.extract_strided_slice %33 {offsets = [0, 64], sizes = [128, 32], strides = [1, 1]} : vector<128x384xbf16> to vector<128x32xbf16>
    %c2 = arith.constant 2 : index
    %c0_18 = arith.constant 0 : index
    %c0_19 = arith.constant 0 : index
    %43 = vector.load %arg14[%c2, %c0_18, %c0_19] : memref<12x128x32xbf16, #tpu.memory_space<vmem>>, vector<1x128x32xbf16>
    %44 = vector.shape_cast %43 : vector<1x128x32xbf16> to vector<128x32xbf16>
    %45 = vector.shape_cast %42 : vector<128x32xbf16> to vector<1x128x32xbf16>
    tpu.vector_store %arg14[%c2, %c0_18, %c0_19], %45 {strides = array<i32>} : memref<12x128x32xbf16, #tpu.memory_space<vmem>>, vector<1x128x32xbf16>,
    %46 = vector.extract_strided_slice %33 {offsets = [0, 96], sizes = [128, 32], strides = [1, 1]} : vector<128x384xbf16> to vector<128x32xbf16>
    %c3 = arith.constant 3 : index
    %c0_20 = arith.constant 0 : index
    %c0_21 = arith.constant 0 : index
    %47 = vector.load %arg14[%c3, %c0_20, %c0_21] : memref<12x128x32xbf16, #tpu.memory_space<vmem>>, vector<1x128x32xbf16>
    %48 = vector.shape_cast %47 : vector<1x128x32xbf16> to vector<128x32xbf16>
    %49 = vector.shape_cast %46 : vector<128x32xbf16> to vector<1x128x32xbf16>
    tpu.vector_store %arg14[%c3, %c0_20, %c0_21], %49 {strides = array<i32>} : memref<12x128x32xbf16, #tpu.memory_space<vmem>>, vector<1x128x32xbf16>,
    %50 = vector.extract_strided_slice %33 {offsets = [0, 128], sizes = [128, 32], strides = [1, 1]} : vector<128x384xbf16> to vector<128x32xbf16>
    %c4 = arith.constant 4 : index
    %c0_22 = arith.constant 0 : index
    %c0_23 = arith.constant 0 : index
    %51 = vector.load %arg14[%c4, %c0_22, %c0_23] : memref<12x128x32xbf16, #tpu.memory_space<vmem>>, vector<1x128x32xbf16>
    %52 = vector.shape_cast %51 : vector<1x128x32xbf16> to vector<128x32xbf16>
    %53 = vector.shape_cast %50 : vector<128x32xbf16> to vector<1x128x32xbf16>
    tpu.vector_store %arg14[%c4, %c0_22, %c0_23], %53 {strides = array<i32>} : memref<12x128x32xbf16, #tpu.memory_space<vmem>>, vector<1x128x32xbf16>,
    %54 = vector.extract_strided_slice %33 {offsets = [0, 160], sizes = [128, 32], strides = [1, 1]} : vector<128x384xbf16> to vector<128x32xbf16>
    %c5 = arith.constant 5 : index
    %c0_24 = arith.constant 0 : index
    %c0_25 = arith.constant 0 : index
    %55 = vector.load %arg14[%c5, %c0_24, %c0_25] : memref<12x128x32xbf16, #tpu.memory_space<vmem>>, vector<1x128x32xbf16>
    %56 = vector.shape_cast %55 : vector<1x128x32xbf16> to vector<128x32xbf16>
    %57 = vector.shape_cast %54 : vector<128x32xbf16> to vector<1x128x32xbf16>
    tpu.vector_store %arg14[%c5, %c0_24, %c0_25], %57 {strides = array<i32>} : memref<12x128x32xbf16, #tpu.memory_space<vmem>>, vector<1x128x32xbf16>,
    %58 = vector.extract_strided_slice %33 {offsets = [0, 192], sizes = [128, 32], strides = [1, 1]} : vector<128x384xbf16> to vector<128x32xbf16>
    %c6 = arith.constant 6 : index
    %c0_26 = arith.constant 0 : index
    %c0_27 = arith.constant 0 : index
    %59 = vector.load %arg14[%c6, %c0_26, %c0_27] : memref<12x128x32xbf16, #tpu.memory_space<vmem>>, vector<1x128x32xbf16>
    %60 = vector.shape_cast %59 : vector<1x128x32xbf16> to vector<128x32xbf16>
    %61 = vector.shape_cast %58 : vector<128x32xbf16> to vector<1x128x32xbf16>
    tpu.vector_store %arg14[%c6, %c0_26, %c0_27], %61 {strides = array<i32>} : memref<12x128x32xbf16, #tpu.memory_space<vmem>>, vector<1x128x32xbf16>,
    %62 = vector.extract_strided_slice %33 {offsets = [0, 224], sizes = [128, 32], strides = [1, 1]} : vector<128x384xbf16> to vector<128x32xbf16>
    %c7 = arith.constant 7 : index
    %c0_28 = arith.constant 0 : index
    %c0_29 = arith.constant 0 : index
    %63 = vector.load %arg14[%c7, %c0_28, %c0_29] : memref<12x128x32xbf16, #tpu.memory_space<vmem>>, vector<1x128x32xbf16>
    %64 = vector.shape_cast %63 : vector<1x128x32xbf16> to vector<128x32xbf16>
    %65 = vector.shape_cast %62 : vector<128x32xbf16> to vector<1x128x32xbf16>
    tpu.vector_store %arg14[%c7, %c0_28, %c0_29], %65 {strides = array<i32>} : memref<12x128x32xbf16, #tpu.memory_space<vmem>>, vector<1x128x32xbf16>,
    %66 = vector.extract_strided_slice %33 {offsets = [0, 256], sizes = [128, 32], strides = [1, 1]} : vector<128x384xbf16> to vector<128x32xbf16>
    %c8 = arith.constant 8 : index
    %c0_30 = arith.constant 0 : index
    %c0_31 = arith.constant 0 : index
    %67 = vector.load %arg14[%c8, %c0_30, %c0_31] : memref<12x128x32xbf16, #tpu.memory_space<vmem>>, vector<1x128x32xbf16>
    %68 = vector.shape_cast %67 : vector<1x128x32xbf16> to vector<128x32xbf16>
    %69 = vector.shape_cast %66 : vector<128x32xbf16> to vector<1x128x32xbf16>
    tpu.vector_store %arg14[%c8, %c0_30, %c0_31], %69 {strides = array<i32>} : memref<12x128x32xbf16, #tpu.memory_space<vmem>>, vector<1x128x32xbf16>,
    %70 = vector.extract_strided_slice %33 {offsets = [0, 288], sizes = [128, 32], strides = [1, 1]} : vector<128x384xbf16> to vector<128x32xbf16>
    %c9 = arith.constant 9 : index
    %c0_32 = arith.constant 0 : index
    %c0_33 = arith.constant 0 : index
    %71 = vector.load %arg14[%c9, %c0_32, %c0_33] : memref<12x128x32xbf16, #tpu.memory_space<vmem>>, vector<1x128x32xbf16>
    %72 = vector.shape_cast %71 : vector<1x128x32xbf16> to vector<128x32xbf16>
    %73 = vector.shape_cast %70 : vector<128x32xbf16> to vector<1x128x32xbf16>
    tpu.vector_store %arg14[%c9, %c0_32, %c0_33], %73 {strides = array<i32>} : memref<12x128x32xbf16, #tpu.memory_space<vmem>>, vector<1x128x32xbf16>,
    %74 = vector.extract_strided_slice %33 {offsets = [0, 320], sizes = [128, 32], strides = [1, 1]} : vector<128x384xbf16> to vector<128x32xbf16>
    %c10 = arith.constant 10 : index
    %c0_34 = arith.constant 0 : index
    %c0_35 = arith.constant 0 : index
    %75 = vector.load %arg14[%c10, %c0_34, %c0_35] : memref<12x128x32xbf16, #tpu.memory_space<vmem>>, vector<1x128x32xbf16>
    %76 = vector.shape_cast %75 : vector<1x128x32xbf16> to vector<128x32xbf16>
    %77 = vector.shape_cast %74 : vector<128x32xbf16> to vector<1x128x32xbf16>
    tpu.vector_store %arg14[%c10, %c0_34, %c0_35], %77 {strides = array<i32>} : memref<12x128x32xbf16, #tpu.memory_space<vmem>>, vector<1x128x32xbf16>,
    %78 = vector.extract_strided_slice %33 {offsets = [0, 352], sizes = [128, 32], strides = [1, 1]} : vector<128x384xbf16> to vector<128x32xbf16>
    %c11 = arith.constant 11 : index
    %c0_36 = arith.constant 0 : index
    %c0_37 = arith.constant 0 : index
    %79 = vector.load %arg14[%c11, %c0_36, %c0_37] : memref<12x128x32xbf16, #tpu.memory_space<vmem>>, vector<1x128x32xbf16>
    %80 = vector.shape_cast %79 : vector<1x128x32xbf16> to vector<128x32xbf16>
    %81 = vector.shape_cast %78 : vector<128x32xbf16> to vector<1x128x32xbf16>
    tpu.vector_store %arg14[%c11, %c0_36, %c0_37], %81 {strides = array<i32>} : memref<12x128x32xbf16, #tpu.memory_space<vmem>>, vector<1x128x32xbf16>,
    %c0_38 = arith.constant 0 : index
    %c0_39 = arith.constant 0 : index
    %82 = vector.load %arg6[%c0_38, %c0_39] : memref<1x128xf32, #tpu.memory_space<vmem>>, vector<1x128xf32>
    %83 = vector.shape_cast %82 : vector<1x128xf32> to vector<128xf32>
    %84 = vector.shape_cast %83 : vector<128xf32> to vector<1x128xf32>
    %85 = vector.broadcast %84 : vector<1x128xf32> to vector<128x128xf32>
    %86 = arith.addf %1, %85 : vector<128x128xf32>
    %c0_40 = arith.constant 0 : index
    %c0_41 = arith.constant 0 : index
    %87 = vector.load %arg15[%c0_40, %c0_41] : memref<128x128xf32, #tpu.memory_space<vmem>>, vector<128x128xf32>
    tpu.vector_store %arg15[%c0_40, %c0_41], %86 {strides = array<i32>} : memref<128x128xf32, #tpu.memory_space<vmem>>, vector<128x128xf32>,
    %88 = tpu.iota {dimensions = array<i32: 0>} : vector<128x128xi32>
    %89 = tpu.iota {dimensions = array<i32: 1>} : vector<128x128xi32>
    %90 = arith.cmpi sge, %88, %89 : vector<128x128xi32>
    %c0_i32 = arith.constant 0 : i32
    %91 = arith.index_cast %c0_i32 : i32 to index
    %c0_42 = arith.constant 0 : index
    %c0_43 = arith.constant 0 : index
    %92 = vector.load %arg14[%91, %c0_42, %c0_43] : memref<12x128x32xbf16, #tpu.memory_space<vmem>>, vector<1x128x32xbf16>
    %93 = vector.shape_cast %92 : vector<1x128x32xbf16> to vector<128x32xbf16>
    %c4_i32 = arith.constant 4 : i32
    %94 = arith.addi %c4_i32, %c0_i32 : i32
    %95 = arith.index_cast %94 : i32 to index
    %c0_44 = arith.constant 0 : index
    %c0_45 = arith.constant 0 : index
    %96 = vector.load %arg14[%95, %c0_44, %c0_45] : memref<12x128x32xbf16, #tpu.memory_space<vmem>>, vector<1x128x32xbf16>
    %97 = vector.shape_cast %96 : vector<1x128x32xbf16> to vector<128x32xbf16>
    %c8_i32 = arith.constant 8 : i32
    %98 = arith.addi %c8_i32, %c0_i32 : i32
    %99 = arith.index_cast %98 : i32 to index
    %c0_46 = arith.constant 0 : index
    %c0_47 = arith.constant 0 : index
    %100 = vector.load %arg14[%99, %c0_46, %c0_47] : memref<12x128x32xbf16, #tpu.memory_space<vmem>>, vector<1x128x32xbf16>
    %101 = vector.shape_cast %100 : vector<1x128x32xbf16> to vector<128x32xbf16>
    %cst_48 = arith.constant dense<0.000000e+00> : vector<128x128xf32>
    %102 = tpu.matmul %93, %97, %cst_48 {dimension_numbers = #tpu.dot_dimension_numbers<[1], [1], [0], [0], [0, 0, 1, 0], [], []>} : vector<128x32xbf16>, vector<128x32xbf16>, vector<128x128xf32> -> vector<128x128xf32>
    %cst_49 = arith.constant -1.000000e+30 : f32
    %103 = vector.broadcast %cst_49 : f32 to vector<128x128xf32>
    %104 = arith.select %90, %102, %103 : vector<128x128xi1>, vector<128x128xf32>
    %cst_50 = arith.constant dense<0xFF800000> : vector<128xf32>
    %105 = vector.multi_reduction <maximumf>, %104, %cst_50 [1] : vector<128x128xf32> to vector<128xf32>
    %106 = vector.shape_cast %105 : vector<128xf32> to vector<128x1xf32>
    %107 = vector.broadcast %106 : vector<128x1xf32> to vector<128x128xf32>
    %108 = arith.subf %104, %107 : vector<128x128xf32>
    %109 = math.exp %108 : vector<128x128xf32>
    %cst_51 = arith.constant dense<0.000000e+00> : vector<128xf32>
    %110 = vector.multi_reduction <add>, %109, %cst_51 [1] : vector<128x128xf32> to vector<128xf32>
    %111 = vector.shape_cast %110 : vector<128xf32> to vector<128x1xf32>
    %112 = arith.truncf %109 : vector<128x128xf32> to vector<128x128xbf16>
    %cst_52 = arith.constant dense<0.000000e+00> : vector<128x32xf32>
    %113 = tpu.matmul %112, %101, %cst_52 {dimension_numbers = #tpu.dot_dimension_numbers<[1], [0], [0], [1], [0, 0, 1, 1], [], []>} : vector<128x128xbf16>, vector<128x32xbf16>, vector<128x32xf32> -> vector<128x32xf32>
    %114 = tpu.reciprocal %111 {approx = true} : vector<128x1xf32> -> vector<128x1xf32>
    %115 = vector.broadcast %114 : vector<128x1xf32> to vector<128x32xf32>
    %116 = arith.mulf %113, %115 : vector<128x32xf32>
    %c0_53 = arith.constant 0 : index
    %c0_54 = arith.constant 0 : index
    %117 = vector.load %arg15[%c0_53, %c0_54] : memref<128x128xf32, #tpu.memory_space<vmem>>, vector<128x128xf32>
    %118 = arith.truncf %116 : vector<128x32xf32> to vector<128x32xbf16>
    %119 = arith.index_cast %c0_i32 : i32 to index
    %c0_55 = arith.constant 0 : index
    %c0_56 = arith.constant 0 : index
    %120 = vector.load %arg5[%119, %c0_55, %c0_56] : memref<4x32x128xbf16, #tpu.memory_space<vmem>>, vector<1x32x128xbf16>
    %121 = vector.shape_cast %120 : vector<1x32x128xbf16> to vector<32x128xbf16>
    %cst_57 = arith.constant dense<0.000000e+00> : vector<128x128xf32>
    %122 = tpu.matmul %118, %121, %cst_57 {dimension_numbers = #tpu.dot_dimension_numbers<[1], [0], [0], [1], [0, 0, 1, 1], [], []>} : vector<128x32xbf16>, vector<32x128xbf16>, vector<128x128xf32> -> vector<128x128xf32>
    %123 = arith.addf %117, %122 : vector<128x128xf32>
    %c0_58 = arith.constant 0 : index
    %c0_59 = arith.constant 0 : index
    %124 = vector.load %arg15[%c0_58, %c0_59] : memref<128x128xf32, #tpu.memory_space<vmem>>, vector<128x128xf32>
    tpu.vector_store %arg15[%c0_58, %c0_59], %123 {strides = array<i32>} : memref<128x128xf32, #tpu.memory_space<vmem>>, vector<128x128xf32>,
    %c1_i32 = arith.constant 1 : i32
    %125 = arith.index_cast %c1_i32 : i32 to index
    %c0_60 = arith.constant 0 : index
    %c0_61 = arith.constant 0 : index
    %126 = vector.load %arg14[%125, %c0_60, %c0_61] : memref<12x128x32xbf16, #tpu.memory_space<vmem>>, vector<1x128x32xbf16>
    %127 = vector.shape_cast %126 : vector<1x128x32xbf16> to vector<128x32xbf16>
    %c4_i32_62 = arith.constant 4 : i32
    %128 = arith.addi %c4_i32_62, %c1_i32 : i32
    %129 = arith.index_cast %128 : i32 to index
    %c0_63 = arith.constant 0 : index
    %c0_64 = arith.constant 0 : index
    %130 = vector.load %arg14[%129, %c0_63, %c0_64] : memref<12x128x32xbf16, #tpu.memory_space<vmem>>, vector<1x128x32xbf16>
    %131 = vector.shape_cast %130 : vector<1x128x32xbf16> to vector<128x32xbf16>
    %c8_i32_65 = arith.constant 8 : i32
    %132 = arith.addi %c8_i32_65, %c1_i32 : i32
    %133 = arith.index_cast %132 : i32 to index
    %c0_66 = arith.constant 0 : index
    %c0_67 = arith.constant 0 : index
    %134 = vector.load %arg14[%133, %c0_66, %c0_67] : memref<12x128x32xbf16, #tpu.memory_space<vmem>>, vector<1x128x32xbf16>
    %135 = vector.shape_cast %134 : vector<1x128x32xbf16> to vector<128x32xbf16>
    %cst_68 = arith.constant dense<0.000000e+00> : vector<128x128xf32>
    %136 = tpu.matmul %127, %131, %cst_68 {dimension_numbers = #tpu.dot_dimension_numbers<[1], [1], [0], [0], [0, 0, 1, 0], [], []>} : vector<128x32xbf16>, vector<128x32xbf16>, vector<128x128xf32> -> vector<128x128xf32>
    %cst_69 = arith.constant -1.000000e+30 : f32
    %137 = vector.broadcast %cst_69 : f32 to vector<128x128xf32>
    %138 = arith.select %90, %136, %137 : vector<128x128xi1>, vector<128x128xf32>
    %cst_70 = arith.constant dense<0xFF800000> : vector<128xf32>
    %139 = vector.multi_reduction <maximumf>, %138, %cst_70 [1] : vector<128x128xf32> to vector<128xf32>
    %140 = vector.shape_cast %139 : vector<128xf32> to vector<128x1xf32>
    %141 = vector.broadcast %140 : vector<128x1xf32> to vector<128x128xf32>
    %142 = arith.subf %138, %141 : vector<128x128xf32>
    %143 = math.exp %142 : vector<128x128xf32>
    %cst_71 = arith.constant dense<0.000000e+00> : vector<128xf32>
    %144 = vector.multi_reduction <add>, %143, %cst_71 [1] : vector<128x128xf32> to vector<128xf32>
    %145 = vector.shape_cast %144 : vector<128xf32> to vector<128x1xf32>
    %146 = arith.truncf %143 : vector<128x128xf32> to vector<128x128xbf16>
    %cst_72 = arith.constant dense<0.000000e+00> : vector<128x32xf32>
    %147 = tpu.matmul %146, %135, %cst_72 {dimension_numbers = #tpu.dot_dimension_numbers<[1], [0], [0], [1], [0, 0, 1, 1], [], []>} : vector<128x128xbf16>, vector<128x32xbf16>, vector<128x32xf32> -> vector<128x32xf32>
    %148 = tpu.reciprocal %145 {approx = true} : vector<128x1xf32> -> vector<128x1xf32>
    %149 = vector.broadcast %148 : vector<128x1xf32> to vector<128x32xf32>
    %150 = arith.mulf %147, %149 : vector<128x32xf32>
    %c0_73 = arith.constant 0 : index
    %c0_74 = arith.constant 0 : index
    %151 = vector.load %arg15[%c0_73, %c0_74] : memref<128x128xf32, #tpu.memory_space<vmem>>, vector<128x128xf32>
    %152 = arith.truncf %150 : vector<128x32xf32> to vector<128x32xbf16>
    %153 = arith.index_cast %c1_i32 : i32 to index
    %c0_75 = arith.constant 0 : index
    %c0_76 = arith.constant 0 : index
    %154 = vector.load %arg5[%153, %c0_75, %c0_76] : memref<4x32x128xbf16, #tpu.memory_space<vmem>>, vector<1x32x128xbf16>
    %155 = vector.shape_cast %154 : vector<1x32x128xbf16> to vector<32x128xbf16>
    %cst_77 = arith.constant dense<0.000000e+00> : vector<128x128xf32>
    %156 = tpu.matmul %152, %155, %cst_77 {dimension_numbers = #tpu.dot_dimension_numbers<[1], [0], [0], [1], [0, 0, 1, 1], [], []>} : vector<128x32xbf16>, vector<32x128xbf16>, vector<128x128xf32> -> vector<128x128xf32>
    %157 = arith.addf %151, %156 : vector<128x128xf32>
    %c0_78 = arith.constant 0 : index
    %c0_79 = arith.constant 0 : index
    %158 = vector.load %arg15[%c0_78, %c0_79] : memref<128x128xf32, #tpu.memory_space<vmem>>, vector<128x128xf32>
    tpu.vector_store %arg15[%c0_78, %c0_79], %157 {strides = array<i32>} : memref<128x128xf32, #tpu.memory_space<vmem>>, vector<128x128xf32>,
    %c2_i32 = arith.constant 2 : i32
    %159 = arith.index_cast %c2_i32 : i32 to index
    %c0_80 = arith.constant 0 : index
    %c0_81 = arith.constant 0 : index
    %160 = vector.load %arg14[%159, %c0_80, %c0_81] : memref<12x128x32xbf16, #tpu.memory_space<vmem>>, vector<1x128x32xbf16>
    %161 = vector.shape_cast %160 : vector<1x128x32xbf16> to vector<128x32xbf16>
    %c4_i32_82 = arith.constant 4 : i32
    %162 = arith.addi %c4_i32_82, %c2_i32 : i32
    %163 = arith.index_cast %162 : i32 to index
    %c0_83 = arith.constant 0 : index
    %c0_84 = arith.constant 0 : index
    %164 = vector.load %arg14[%163, %c0_83, %c0_84] : memref<12x128x32xbf16, #tpu.memory_space<vmem>>, vector<1x128x32xbf16>
    %165 = vector.shape_cast %164 : vector<1x128x32xbf16> to vector<128x32xbf16>
    %c8_i32_85 = arith.constant 8 : i32
    %166 = arith.addi %c8_i32_85, %c2_i32 : i32
    %167 = arith.index_cast %166 : i32 to index
    %c0_86 = arith.constant 0 : index
    %c0_87 = arith.constant 0 : index
    %168 = vector.load %arg14[%167, %c0_86, %c0_87] : memref<12x128x32xbf16, #tpu.memory_space<vmem>>, vector<1x128x32xbf16>
    %169 = vector.shape_cast %168 : vector<1x128x32xbf16> to vector<128x32xbf16>
    %cst_88 = arith.constant dense<0.000000e+00> : vector<128x128xf32>
    %170 = tpu.matmul %161, %165, %cst_88 {dimension_numbers = #tpu.dot_dimension_numbers<[1], [1], [0], [0], [0, 0, 1, 0], [], []>} : vector<128x32xbf16>, vector<128x32xbf16>, vector<128x128xf32> -> vector<128x128xf32>
    %cst_89 = arith.constant -1.000000e+30 : f32
    %171 = vector.broadcast %cst_89 : f32 to vector<128x128xf32>
    %172 = arith.select %90, %170, %171 : vector<128x128xi1>, vector<128x128xf32>
    %cst_90 = arith.constant dense<0xFF800000> : vector<128xf32>
    %173 = vector.multi_reduction <maximumf>, %172, %cst_90 [1] : vector<128x128xf32> to vector<128xf32>
    %174 = vector.shape_cast %173 : vector<128xf32> to vector<128x1xf32>
    %175 = vector.broadcast %174 : vector<128x1xf32> to vector<128x128xf32>
    %176 = arith.subf %172, %175 : vector<128x128xf32>
    %177 = math.exp %176 : vector<128x128xf32>
    %cst_91 = arith.constant dense<0.000000e+00> : vector<128xf32>
    %178 = vector.multi_reduction <add>, %177, %cst_91 [1] : vector<128x128xf32> to vector<128xf32>
    %179 = vector.shape_cast %178 : vector<128xf32> to vector<128x1xf32>
    %180 = arith.truncf %177 : vector<128x128xf32> to vector<128x128xbf16>
    %cst_92 = arith.constant dense<0.000000e+00> : vector<128x32xf32>
    %181 = tpu.matmul %180, %169, %cst_92 {dimension_numbers = #tpu.dot_dimension_numbers<[1], [0], [0], [1], [0, 0, 1, 1], [], []>} : vector<128x128xbf16>, vector<128x32xbf16>, vector<128x32xf32> -> vector<128x32xf32>
    %182 = tpu.reciprocal %179 {approx = true} : vector<128x1xf32> -> vector<128x1xf32>
    %183 = vector.broadcast %182 : vector<128x1xf32> to vector<128x32xf32>
    %184 = arith.mulf %181, %183 : vector<128x32xf32>
    %c0_93 = arith.constant 0 : index
    %c0_94 = arith.constant 0 : index
    %185 = vector.load %arg15[%c0_93, %c0_94] : memref<128x128xf32, #tpu.memory_space<vmem>>, vector<128x128xf32>
    %186 = arith.truncf %184 : vector<128x32xf32> to vector<128x32xbf16>
    %187 = arith.index_cast %c2_i32 : i32 to index
    %c0_95 = arith.constant 0 : index
    %c0_96 = arith.constant 0 : index
    %188 = vector.load %arg5[%187, %c0_95, %c0_96] : memref<4x32x128xbf16, #tpu.memory_space<vmem>>, vector<1x32x128xbf16>
    %189 = vector.shape_cast %188 : vector<1x32x128xbf16> to vector<32x128xbf16>
    %cst_97 = arith.constant dense<0.000000e+00> : vector<128x128xf32>
    %190 = tpu.matmul %186, %189, %cst_97 {dimension_numbers = #tpu.dot_dimension_numbers<[1], [0], [0], [1], [0, 0, 1, 1], [], []>} : vector<128x32xbf16>, vector<32x128xbf16>, vector<128x128xf32> -> vector<128x128xf32>
    %191 = arith.addf %185, %190 : vector<128x128xf32>
    %c0_98 = arith.constant 0 : index
    %c0_99 = arith.constant 0 : index
    %192 = vector.load %arg15[%c0_98, %c0_99] : memref<128x128xf32, #tpu.memory_space<vmem>>, vector<128x128xf32>
    tpu.vector_store %arg15[%c0_98, %c0_99], %191 {strides = array<i32>} : memref<128x128xf32, #tpu.memory_space<vmem>>, vector<128x128xf32>,
    %c3_i32 = arith.constant 3 : i32
    %193 = arith.index_cast %c3_i32 : i32 to index
    %c0_100 = arith.constant 0 : index
    %c0_101 = arith.constant 0 : index
    %194 = vector.load %arg14[%193, %c0_100, %c0_101] : memref<12x128x32xbf16, #tpu.memory_space<vmem>>, vector<1x128x32xbf16>
    %195 = vector.shape_cast %194 : vector<1x128x32xbf16> to vector<128x32xbf16>
    %c4_i32_102 = arith.constant 4 : i32
    %196 = arith.addi %c4_i32_102, %c3_i32 : i32
    %197 = arith.index_cast %196 : i32 to index
    %c0_103 = arith.constant 0 : index
    %c0_104 = arith.constant 0 : index
    %198 = vector.load %arg14[%197, %c0_103, %c0_104] : memref<12x128x32xbf16, #tpu.memory_space<vmem>>, vector<1x128x32xbf16>
    %199 = vector.shape_cast %198 : vector<1x128x32xbf16> to vector<128x32xbf16>
    %c8_i32_105 = arith.constant 8 : i32
    %200 = arith.addi %c8_i32_105, %c3_i32 : i32
    %201 = arith.index_cast %200 : i32 to index
    %c0_106 = arith.constant 0 : index
    %c0_107 = arith.constant 0 : index
    %202 = vector.load %arg14[%201, %c0_106, %c0_107] : memref<12x128x32xbf16, #tpu.memory_space<vmem>>, vector<1x128x32xbf16>
    %203 = vector.shape_cast %202 : vector<1x128x32xbf16> to vector<128x32xbf16>
    %cst_108 = arith.constant dense<0.000000e+00> : vector<128x128xf32>
    %204 = tpu.matmul %195, %199, %cst_108 {dimension_numbers = #tpu.dot_dimension_numbers<[1], [1], [0], [0], [0, 0, 1, 0], [], []>} : vector<128x32xbf16>, vector<128x32xbf16>, vector<128x128xf32> -> vector<128x128xf32>
    %cst_109 = arith.constant -1.000000e+30 : f32
    %205 = vector.broadcast %cst_109 : f32 to vector<128x128xf32>
    %206 = arith.select %90, %204, %205 : vector<128x128xi1>, vector<128x128xf32>
    %cst_110 = arith.constant dense<0xFF800000> : vector<128xf32>
    %207 = vector.multi_reduction <maximumf>, %206, %cst_110 [1] : vector<128x128xf32> to vector<128xf32>
    %208 = vector.shape_cast %207 : vector<128xf32> to vector<128x1xf32>
    %209 = vector.broadcast %208 : vector<128x1xf32> to vector<128x128xf32>
    %210 = arith.subf %206, %209 : vector<128x128xf32>
    %211 = math.exp %210 : vector<128x128xf32>
    %cst_111 = arith.constant dense<0.000000e+00> : vector<128xf32>
    %212 = vector.multi_reduction <add>, %211, %cst_111 [1] : vector<128x128xf32> to vector<128xf32>
    %213 = vector.shape_cast %212 : vector<128xf32> to vector<128x1xf32>
    %214 = arith.truncf %211 : vector<128x128xf32> to vector<128x128xbf16>
    %cst_112 = arith.constant dense<0.000000e+00> : vector<128x32xf32>
    %215 = tpu.matmul %214, %203, %cst_112 {dimension_numbers = #tpu.dot_dimension_numbers<[1], [0], [0], [1], [0, 0, 1, 1], [], []>} : vector<128x128xbf16>, vector<128x32xbf16>, vector<128x32xf32> -> vector<128x32xf32>
    %216 = tpu.reciprocal %213 {approx = true} : vector<128x1xf32> -> vector<128x1xf32>
    %217 = vector.broadcast %216 : vector<128x1xf32> to vector<128x32xf32>
    %218 = arith.mulf %215, %217 : vector<128x32xf32>
    %c0_113 = arith.constant 0 : index
    %c0_114 = arith.constant 0 : index
    %219 = vector.load %arg15[%c0_113, %c0_114] : memref<128x128xf32, #tpu.memory_space<vmem>>, vector<128x128xf32>
    %220 = arith.truncf %218 : vector<128x32xf32> to vector<128x32xbf16>
    %221 = arith.index_cast %c3_i32 : i32 to index
    %c0_115 = arith.constant 0 : index
    %c0_116 = arith.constant 0 : index
    %222 = vector.load %arg5[%221, %c0_115, %c0_116] : memref<4x32x128xbf16, #tpu.memory_space<vmem>>, vector<1x32x128xbf16>
    %223 = vector.shape_cast %222 : vector<1x32x128xbf16> to vector<32x128xbf16>
    %cst_117 = arith.constant dense<0.000000e+00> : vector<128x128xf32>
    %224 = tpu.matmul %220, %223, %cst_117 {dimension_numbers = #tpu.dot_dimension_numbers<[1], [0], [0], [1], [0, 0, 1, 1], [], []>} : vector<128x32xbf16>, vector<32x128xbf16>, vector<128x128xf32> -> vector<128x128xf32>
    %225 = arith.addf %219, %224 : vector<128x128xf32>
    %c0_118 = arith.constant 0 : index
    %c0_119 = arith.constant 0 : index
    %226 = vector.load %arg15[%c0_118, %c0_119] : memref<128x128xf32, #tpu.memory_space<vmem>>, vector<128x128xf32>
    tpu.vector_store %arg15[%c0_118, %c0_119], %225 {strides = array<i32>} : memref<128x128xf32, #tpu.memory_space<vmem>>, vector<128x128xf32>,
    %c4_i32_120 = arith.constant 4 : i32
    %c0_121 = arith.constant 0 : index
    %c0_122 = arith.constant 0 : index
    %227 = vector.load %arg15[%c0_121, %c0_122] : memref<128x128xf32, #tpu.memory_space<vmem>>, vector<128x128xf32>
    %c0_123 = arith.constant 0 : index
    %c0_124 = arith.constant 0 : index
    %228 = vector.load %arg7[%c0_123, %c0_124] : memref<1x128xf32, #tpu.memory_space<vmem>>, vector<1x128xf32>
    %229 = vector.shape_cast %228 : vector<1x128xf32> to vector<128xf32>
    %c0_125 = arith.constant 0 : index
    %c0_126 = arith.constant 0 : index
    %230 = vector.load %arg8[%c0_125, %c0_126] : memref<1x128xf32, #tpu.memory_space<vmem>>, vector<1x128xf32>
    %231 = vector.shape_cast %230 : vector<1x128xf32> to vector<128xf32>
    %cst_127 = arith.constant dense<0.000000e+00> : vector<128xf32>
    %232 = vector.multi_reduction <add>, %227, %cst_127 [1] : vector<128x128xf32> to vector<128xf32>
    %233 = vector.shape_cast %232 : vector<128xf32> to vector<128x1xf32>
    %cst_128 = arith.constant 1.280000e+02 : f32
    %234 = vector.broadcast %cst_128 : f32 to vector<128x1xf32>
    %235 = arith.divf %233, %234 : vector<128x1xf32>
    %236 = arith.mulf %227, %227 : vector<128x128xf32>
    %cst_129 = arith.constant dense<0.000000e+00> : vector<128xf32>
    %237 = vector.multi_reduction <add>, %236, %cst_129 [1] : vector<128x128xf32> to vector<128xf32>
    %238 = vector.shape_cast %237 : vector<128xf32> to vector<128x1xf32>
    %cst_130 = arith.constant 1.280000e+02 : f32
    %239 = vector.broadcast %cst_130 : f32 to vector<128x1xf32>
    %240 = arith.divf %238, %239 : vector<128x1xf32>
    %241 = arith.mulf %235, %235 : vector<128x1xf32>
    %242 = arith.subf %240, %241 : vector<128x1xf32>
    %243 = vector.broadcast %235 : vector<128x1xf32> to vector<128x128xf32>
    %244 = arith.subf %227, %243 : vector<128x128xf32>
    %cst_131 = arith.constant 9.99999974E-6 : f32
    %245 = vector.broadcast %cst_131 : f32 to vector<128x1xf32>
    %246 = arith.addf %242, %245 : vector<128x1xf32>
    %247 = math.rsqrt %246 : vector<128x1xf32>
    %248 = vector.broadcast %247 : vector<128x1xf32> to vector<128x128xf32>
    %249 = arith.mulf %244, %248 : vector<128x128xf32>
    %250 = vector.shape_cast %229 : vector<128xf32> to vector<1x128xf32>
    %251 = vector.broadcast %250 : vector<1x128xf32> to vector<128x128xf32>
    %252 = arith.mulf %249, %251 : vector<128x128xf32>
    %253 = vector.shape_cast %231 : vector<128xf32> to vector<1x128xf32>
    %254 = vector.broadcast %253 : vector<1x128xf32> to vector<128x128xf32>
    %255 = arith.addf %252, %254 : vector<128x128xf32>
    %256 = arith.truncf %255 : vector<128x128xf32> to vector<128x128xbf16>
    %c0_132 = arith.constant 0 : index
    %c0_133 = arith.constant 0 : index
    %257 = vector.load %arg9[%c0_132, %c0_133] : memref<128x512xbf16, #tpu.memory_space<vmem>>, vector<128x512xbf16>
    %cst_134 = arith.constant dense<0.000000e+00> : vector<128x512xf32>
    %258 = tpu.matmul %256, %257, %cst_134 {dimension_numbers = #tpu.dot_dimension_numbers<[1], [0], [0], [1], [0, 0, 1, 1], [], []>} : vector<128x128xbf16>, vector<128x512xbf16>, vector<128x512xf32> -> vector<128x512xf32>
    %c0_135 = arith.constant 0 : index
    %c0_136 = arith.constant 0 : index
    %259 = vector.load %arg10[%c0_135, %c0_136] : memref<1x512xf32, #tpu.memory_space<vmem>>, vector<1x512xf32>
    %260 = vector.shape_cast %259 : vector<1x512xf32> to vector<512xf32>
    %261 = vector.shape_cast %260 : vector<512xf32> to vector<1x512xf32>
    %262 = vector.broadcast %261 : vector<1x512xf32> to vector<128x512xf32>
    %263 = arith.addf %258, %262 : vector<128x512xf32>
    %cst_137 = arith.constant 0.000000e+00 : f32
    %264 = vector.broadcast %cst_137 : f32 to vector<128x512xf32>
    %265 = arith.maximumf %263, %264 : vector<128x512xf32>
    %266 = arith.truncf %265 : vector<128x512xf32> to vector<128x512xbf16>
    %c0_138 = arith.constant 0 : index
    %c0_139 = arith.constant 0 : index
    %267 = vector.load %arg11[%c0_138, %c0_139] : memref<512x128xbf16, #tpu.memory_space<vmem>>, vector<512x128xbf16>
    %cst_140 = arith.constant dense<0.000000e+00> : vector<128x128xf32>
    %268 = tpu.matmul %266, %267, %cst_140 {dimension_numbers = #tpu.dot_dimension_numbers<[1], [0], [0], [1], [0, 0, 1, 1], [], []>} : vector<128x512xbf16>, vector<512x128xbf16>, vector<128x128xf32> -> vector<128x128xf32>
    %c0_141 = arith.constant 0 : index
    %c0_142 = arith.constant 0 : index
    %269 = vector.load %arg12[%c0_141, %c0_142] : memref<1x128xf32, #tpu.memory_space<vmem>>, vector<1x128xf32>
    %270 = vector.shape_cast %269 : vector<1x128xf32> to vector<128xf32>
    %271 = vector.shape_cast %270 : vector<128xf32> to vector<1x128xf32>
    %272 = vector.broadcast %271 : vector<1x128xf32> to vector<128x128xf32>
    %273 = arith.addf %268, %272 : vector<128x128xf32>
    %274 = arith.addf %227, %273 : vector<128x128xf32>
    %c0_143 = arith.constant 0 : index
    %c0_144 = arith.constant 0 : index
    %c0_145 = arith.constant 0 : index
    %275 = vector.load %arg13[%c0_143, %c0_144, %c0_145] : memref<1x128x128xf32, #tpu.memory_space<vmem>>, vector<1x128x128xf32>
    %276 = vector.shape_cast %275 : vector<1x128x128xf32> to vector<128x128xf32>
    %277 = vector.shape_cast %274 : vector<128x128xf32> to vector<1x128x128xf32>
    tpu.vector_store %arg13[%c0_143, %c0_144, %c0_145], %277 {strides = array<i32>} : memref<1x128x128xf32, #tpu.memory_space<vmem>>, vector<1x128x128xf32>,
    return
  }
  func.func @transform_0(%arg0: i32) -> (i32, i32, i32) {
    %c0_i32 = arith.constant 0 : i32
    %c0_i32_0 = arith.constant 0 : i32
    %c0_i32_1 = arith.constant 0 : i32
    return %arg0, %c0_i32, %c0_i32_0 : i32, i32, i32
  }
  func.func @transform_1(%arg0: i32) -> (i32, i32) {
    %c0_i32 = arith.constant 0 : i32
    %c0_i32_0 = arith.constant 0 : i32
    %c0_i32_1 = arith.constant 0 : i32
    return %c0_i32, %c0_i32_0 : i32, i32
  }
  func.func @transform_2(%arg0: i32) -> (i32, i32) {
    %c0_i32 = arith.constant 0 : i32
    %c0_i32_0 = arith.constant 0 : i32
    %c0_i32_1 = arith.constant 0 : i32
    return %c0_i32, %c0_i32_0 : i32, i32
  }
  func.func @transform_3(%arg0: i32) -> (i32, i32) {
    %c0_i32 = arith.constant 0 : i32
    %c0_i32_0 = arith.constant 0 : i32
    %c0_i32_1 = arith.constant 0 : i32
    return %c0_i32, %c0_i32_0 : i32, i32
  }
  func.func @transform_4(%arg0: i32) -> (i32, i32, i32) {
    %c0_i32 = arith.constant 0 : i32
    %c0_i32_0 = arith.constant 0 : i32
    %c0_i32_1 = arith.constant 0 : i32
    %c0_i32_2 = arith.constant 0 : i32
    return %c0_i32, %c0_i32_0, %c0_i32_1 : i32, i32, i32
  }
  func.func @transform_5(%arg0: i32) -> (i32, i32) {
    %c0_i32 = arith.constant 0 : i32
    %c0_i32_0 = arith.constant 0 : i32
    %c0_i32_1 = arith.constant 0 : i32
    return %c0_i32, %c0_i32_0 : i32, i32
  }
  func.func @transform_6(%arg0: i32) -> (i32, i32) {
    %c0_i32 = arith.constant 0 : i32
    %c0_i32_0 = arith.constant 0 : i32
    %c0_i32_1 = arith.constant 0 : i32
    return %c0_i32, %c0_i32_0 : i32, i32
  }
  func.func @transform_7(%arg0: i32) -> (i32, i32) {
    %c0_i32 = arith.constant 0 : i32
    %c0_i32_0 = arith.constant 0 : i32
    %c0_i32_1 = arith.constant 0 : i32
    return %c0_i32, %c0_i32_0 : i32, i32
  }
  func.func @transform_8(%arg0: i32) -> (i32, i32) {
    %c0_i32 = arith.constant 0 : i32
    %c0_i32_0 = arith.constant 0 : i32
    %c0_i32_1 = arith.constant 0 : i32
    return %c0_i32, %c0_i32_0 : i32, i32
  }
  func.func @transform_9(%arg0: i32) -> (i32, i32) {
    %c0_i32 = arith.constant 0 : i32
    %c0_i32_0 = arith.constant 0 : i32
    %c0_i32_1 = arith.constant 0 : i32
    return %c0_i32, %c0_i32_0 : i32, i32
  }
  func.func @transform_10(%arg0: i32) -> (i32, i32) {
    %c0_i32 = arith.constant 0 : i32
    %c0_i32_0 = arith.constant 0 : i32
    %c0_i32_1 = arith.constant 0 : i32
    return %c0_i32, %c0_i32_0 : i32, i32
  }
  func.func @transform_11(%arg0: i32) -> (i32, i32) {
    %c0_i32 = arith.constant 0 : i32
    %c0_i32_0 = arith.constant 0 : i32
    %c0_i32_1 = arith.constant 0 : i32
    return %c0_i32, %c0_i32_0 : i32, i32
  }
  func.func @transform_12(%arg0: i32) -> (i32, i32, i32) {
    %c0_i32 = arith.constant 0 : i32
    %c0_i32_0 = arith.constant 0 : i32
    %c0_i32_1 = arith.constant 0 : i32
    return %arg0, %c0_i32, %c0_i32_0 : i32, i32, i32
  }
}

</mosaic_0001>

<llo_original>
// kernel: tpu_custom_call.1
$region0: #{tpu_custom_call.1}
  #allocation0 [shape = 'u32[]', space=smem, size = 0x4, offset = 0x4, fixed_abs, tag = 'smem constant byte address 0x4 - core index']
  #allocation1 [shape = 'u32[144,128]{1,0:T(1,128)}', space=vmem, size = 0x12000, scoped, tag = 'internal scratch']
  #allocation2 [shape = 'bf16[12,128,32]{2,1,0:T(16,128)(2,1)}', space=vmem, size = 0x60000, scoped, tag = 'scratch operand']
  #allocation3 [shape = 'f32[128,128]{1,0:T(8,128)}', space=vmem, size = 0x10000, scoped, tag = 'scratch operand']
  %s0 = inlined_call_operand.hbm [shape: f32[2,128,128], index: 0, kind: input, shape index: {}]
  %s1 = inlined_call_operand.vmem [shape: f32[1,128], index: 1, kind: input, shape index: {}]
  %s2 = inlined_call_operand.vmem [shape: f32[1,128], index: 2, kind: input, shape index: {}]
  %s3 = inlined_call_operand.hbm [shape: bf16[128,384], index: 3, kind: input, shape index: {}]
  %s4 = inlined_call_operand.hbm [shape: bf16[4,32,128], index: 4, kind: input, shape index: {}]
  %s5 = inlined_call_operand.vmem [shape: f32[1,128], index: 5, kind: input, shape index: {}]
  %s6 = inlined_call_operand.vmem [shape: f32[1,128], index: 6, kind: input, shape index: {}]
  %s7 = inlined_call_operand.vmem [shape: f32[1,128], index: 7, kind: input, shape index: {}]
  %s8 = inlined_call_operand.hbm [shape: bf16[128,512], index: 8, kind: input, shape index: {}]
  %s9 = inlined_call_operand.vmem [shape: f32[1,512], index: 9, kind: input, shape index: {}]
  %s10 = inlined_call_operand.hbm [shape: bf16[512,128], index: 10, kind: input, shape index: {}]
  %s11 = inlined_call_operand.vmem [shape: f32[1,128], index: 11, kind: input, shape index: {}]
  %s12 = inlined_call_operand.hbm [shape: f32[2,128,128], index: 12, kind: output, shape index: {}]
  %s13 = sld [smem:[#allocation0]]
  $region101: #{tpu_custom_call.1} parent=0
    _
  %s15 = ssub.s32 1, %s13
  %s16 = scalar_select 0, %s15, %s13
  $region1: #{tpu_custom_call.1} parent=0
    #allocation4 [shape = 'u8[131072]{0}', space=vmem, size = 0x20000, scoped, tag = 'input window, operand 0']
    #allocation5 [shape = 's32[2]{0}', space=sflag, size = 0x8, scoped, tag = 'scoped memory for tpu_custom_call.1']
    #allocation6 [shape = 's32[2]{0}', space=sflag, size = 0x8, scoped, tag = 'scoped memory for tpu_custom_call.1']
    #allocation7 [shape = 'u8[98304]{0}', space=vmem, size = 0x18000, scoped, tag = 'input window, operand 3, single buffered']
    #allocation8 [shape = 's32[1]{0}', space=sflag, size = 0x4, scoped, tag = 'scoped memory for tpu_custom_call.1']
    #allocation9 [shape = 'u8[32768]{0}', space=vmem, size = 0x8000, scoped, tag = 'input window, operand 4, single buffered']
    #allocation10 [shape = 'u8[131072]{0}', space=vmem, size = 0x20000, scoped, tag = 'input window, operand 8, single buffered']
    #allocation11 [shape = 's32[1]{0}', space=sflag, size = 0x4, scoped, tag = 'scoped memory for tpu_custom_call.1']
    #allocation12 [shape = 'u8[131072]{0}', space=vmem, size = 0x20000, scoped, tag = 'input window, operand 10, single buffered']
    #allocation13 [shape = 'u8[131072]{0}', space=vmem, size = 0x20000, scoped, tag = 'output window, operand 0']
    %17 = vsyncpa [#allocation5], 0
    %s18 = scalar_lea.sflag [#allocation5], 1
    %19 = vsyncpa %s18, 0
    %20 = vsyncpa [#allocation8], 0
    %21 = vsyncpa [#allocation11], 0
    %22 = vsyncpa [#allocation6], 0
    %s23 = scalar_lea.sflag [#allocation6], 1
    %24 = vsyncpa %s23, 0
    loop: start=0, step=1, limit=4
    $region2: #{tpu_custom_call.1} parent=1 // loop_pre_header
      _
    $region3: #{tpu_custom_call.1} parent=1 // loop_header
      %s26 = sphi 0, %s30
      %p27 = scmp.ge.s32.totalorder %s26, 4
      %s36 = sphi 0, %s38
      %s39 = sphi 0, %s36
      %s40 = sphi 0, %s39
      %s56 = sphi 0, %s40
      %s60 = sphi 0, %s60
      %s62 = sphi 0, %s60
      %s63 = sphi 0, %s62
      %s77 = sphi 0, %s63
      %s81 = sphi 0, %s81
      %s83 = sphi 0, %s81
      %s84 = sphi 0, %s83
      %s98 = sphi 0, %s84
      %s102 = sphi 0, %s102
      %s104 = sphi 0, %s102
      %s105 = sphi 0, %s104
      %s119 = sphi 0, %s105
      %s123 = sphi 0, %s123
      %s125 = sphi 0, %s123
      %s126 = sphi 0, %s125
      %s140 = sphi 0, %s126
      %s144 = sphi 0, %s144
      %s146 = sphi 0, %s144
      %s147 = sphi 0, %s146
      %s161 = sphi 0, %s147
      %s165 = sphi 0, %s165
      %s167 = sphi 0, %s165
      %s168 = sphi 0, %s167
      %s182 = sphi 0, %s168
      %s186 = sphi 0, %s186
      %s188 = sphi 0, %s186
      %s189 = sphi 0, %s188
      %s203 = sphi 0, %s189
      %s207 = sphi 0, %s207
      %s209 = sphi 0, %s207
      %s210 = sphi 0, %s209
      %s224 = sphi 0, %s210
      %s228 = sphi 0, %s228
      %s230 = sphi 0, %s228
      %s231 = sphi 0, %s230
      %s245 = sphi 0, %s231
      %s249 = sphi 0, %s249
      %s251 = sphi 0, %s249
      %s252 = sphi 0, %s251
      %s266 = sphi 0, %s252
      %s270 = sphi 0, %s270
      %s272 = sphi 0, %s270
      %s273 = sphi 0, %s272
      %s287 = sphi 0, %s273
      %s293 = sphi 0, %s295
      %s296 = sphi 0, %s293
      %s297 = sphi 0, %s296
      %s313 = sphi 0, %s297
    $region4: #{tpu_custom_call.1} parent=1 // loop_header_branch
      %29 = sbr.rel (%p27) target = $region8
    $region5: #{tpu_custom_call.1} parent=1 // loop_body
      %s31 = ssub.s32 %s26, 1
      %s32 = ssub.s32 %s26, 2
      %s33 = sadd.s32 %s26, 1
      %s34 = ssub.s32 %s26, %s33
      %p35 = scmp.eq.s32.totalorder %s34, 0
      %s37 = sadd.s32 %s36, 1
      %s38 = scalar_select %p35, %s36, %s37
      %p41 = pneg %p35
      %p42 = scmp.eq.s32.totalorder %s26, 1
      %p43 = por %p41, %p42
      %p44 = scmp.ne.s32.totalorder %s36, %s39
      %p45 = scmp.eq.s32.totalorder %s26, 0
      %p46 = por %p44, %p45
      %p47 = scmp.ne.s32.totalorder %s36, %s39
      %p48 = scmp.eq.s32.totalorder %s31, 1
      %p49 = por %p47, %p48
      %p50 = scmp.ne.s32.totalorder %s39, %s40
      %p51 = scmp.eq.s32.totalorder %s31, 0
      %p52 = por %p50, %p51
      %p53 = scmp.ne.s32.totalorder %s39, %s40
      %p54 = scmp.eq.s32.totalorder %s32, 1
      %p55 = por %p53, %p54
      %p57 = scmp.ne.s32.totalorder %s40, %s56
      %p58 = scmp.eq.s32.totalorder %s32, 0
      %p59 = por %p57, %p58
      %s61 = sadd.s32 %s60, 1
      %p64 = scmp.eq.s32.totalorder %s26, 1
      %p65 = scmp.ne.s32.totalorder %s60, %s62
      %p66 = scmp.eq.s32.totalorder %s26, 0
      %p67 = por %p65, %p66
      %p68 = scmp.ne.s32.totalorder %s60, %s62
      %p69 = scmp.eq.s32.totalorder %s31, 1
      %p70 = por %p68, %p69
      %p71 = scmp.ne.s32.totalorder %s62, %s63
      %p72 = scmp.eq.s32.totalorder %s31, 0
      %p73 = por %p71, %p72
      %p74 = scmp.ne.s32.totalorder %s62, %s63
      %p75 = scmp.eq.s32.totalorder %s32, 1
      %p76 = por %p74, %p75
      %p78 = scmp.ne.s32.totalorder %s63, %s77
      %p79 = scmp.eq.s32.totalorder %s32, 0
      %p80 = por %p78, %p79
      %s82 = sadd.s32 %s81, 1
      %p85 = scmp.eq.s32.totalorder %s26, 1
      %p86 = scmp.ne.s32.totalorder %s81, %s83
      %p87 = scmp.eq.s32.totalorder %s26, 0
      %p88 = por %p86, %p87
      %p89 = scmp.ne.s32.totalorder %s81, %s83
      %p90 = scmp.eq.s32.totalorder %s31, 1
      %p91 = por %p89, %p90
      %p92 = scmp.ne.s32.totalorder %s83, %s84
      %p93 = scmp.eq.s32.totalorder %s31, 0
      %p94 = por %p92, %p93
      %p95 = scmp.ne.s32.totalorder %s83, %s84
      %p96 = scmp.eq.s32.totalorder %s32, 1
      %p97 = por %p95, %p96
      %p99 = scmp.ne.s32.totalorder %s84, %s98
      %p100 = scmp.eq.s32.totalorder %s32, 0
      %p101 = por %p99, %p100
      %s103 = sadd.s32 %s102, 1
      %p106 = scmp.eq.s32.totalorder %s26, 1
      %p107 = scmp.ne.s32.totalorder %s102, %s104
      %p108 = scmp.eq.s32.totalorder %s26, 0
      %p109 = por %p107, %p108
      %p110 = scmp.ne.s32.totalorder %s102, %s104
      %p111 = scmp.eq.s32.totalorder %s31, 1
      %p112 = por %p110, %p111
      %p113 = scmp.ne.s32.totalorder %s104, %s105
      %p114 = scmp.eq.s32.totalorder %s31, 0
      %p115 = por %p113, %p114
      %p116 = scmp.ne.s32.totalorder %s104, %s105
      %p117 = scmp.eq.s32.totalorder %s32, 1
      %p118 = por %p116, %p117
      %p120 = scmp.ne.s32.totalorder %s105, %s119
      %p121 = scmp.eq.s32.totalorder %s32, 0
      %p122 = por %p120, %p121
      %s124 = sadd.s32 %s123, 1
      %p127 = scmp.eq.s32.totalorder %s26, 1
      %p128 = scmp.ne.s32.totalorder %s123, %s125
      %p129 = scmp.eq.s32.totalorder %s26, 0
      %p130 = por %p128, %p129
      %p131 = scmp.ne.s32.totalorder %s123, %s125
      %p132 = scmp.eq.s32.totalorder %s31, 1
      %p133 = por %p131, %p132
      %p134 = scmp.ne.s32.totalorder %s125, %s126
      %p135 = scmp.eq.s32.totalorder %s31, 0
      %p136 = por %p134, %p135
      %p137 = scmp.ne.s32.totalorder %s125, %s126
      %p138 = scmp.eq.s32.totalorder %s32, 1
      %p139 = por %p137, %p138
      %p141 = scmp.ne.s32.totalorder %s126, %s140
      %p142 = scmp.eq.s32.totalorder %s32, 0
      %p143 = por %p141, %p142
      %s145 = sadd.s32 %s144, 1
      %p148 = scmp.eq.s32.totalorder %s26, 1
      %p149 = scmp.ne.s32.totalorder %s144, %s146
      %p150 = scmp.eq.s32.totalorder %s26, 0
      %p151 = por %p149, %p150
      %p152 = scmp.ne.s32.totalorder %s144, %s146
      %p153 = scmp.eq.s32.totalorder %s31, 1
      %p154 = por %p152, %p153
      %p155 = scmp.ne.s32.totalorder %s146, %s147
      %p156 = scmp.eq.s32.totalorder %s31, 0
      %p157 = por %p155, %p156
      %p158 = scmp.ne.s32.totalorder %s146, %s147
      %p159 = scmp.eq.s32.totalorder %s32, 1
      %p160 = por %p158, %p159
      %p162 = scmp.ne.s32.totalorder %s147, %s161
      %p163 = scmp.eq.s32.totalorder %s32, 0
      %p164 = por %p162, %p163
      %s166 = sadd.s32 %s165, 1
      %p169 = scmp.eq.s32.totalorder %s26, 1
      %p170 = scmp.ne.s32.totalorder %s165, %s167
      %p171 = scmp.eq.s32.totalorder %s26, 0
      %p172 = por %p170, %p171
      %p173 = scmp.ne.s32.totalorder %s165, %s167
      %p174 = scmp.eq.s32.totalorder %s31, 1
      %p175 = por %p173, %p174
      %p176 = scmp.ne.s32.totalorder %s167, %s168
      %p177 = scmp.eq.s32.totalorder %s31, 0
      %p178 = por %p176, %p177
      %p179 = scmp.ne.s32.totalorder %s167, %s168
      %p180 = scmp.eq.s32.totalorder %s32, 1
      %p181 = por %p179, %p180
      %p183 = scmp.ne.s32.totalorder %s168, %s182
      %p184 = scmp.eq.s32.totalorder %s32, 0
      %p185 = por %p183, %p184
      %s187 = sadd.s32 %s186, 1
      %p190 = scmp.eq.s32.totalorder %s26, 1
      %p191 = scmp.ne.s32.totalorder %s186, %s188
      %p192 = scmp.eq.s32.totalorder %s26, 0
      %p193 = por %p191, %p192
      %p194 = scmp.ne.s32.totalorder %s186, %s188
      %p195 = scmp.eq.s32.totalorder %s31, 1
      %p196 = por %p194, %p195
      %p197 = scmp.ne.s32.totalorder %s188, %s189
      %p198 = scmp.eq.s32.totalorder %s31, 0
      %p199 = por %p197, %p198
      %p200 = scmp.ne.s32.totalorder %s188, %s189
      %p201 = scmp.eq.s32.totalorder %s32, 1
      %p202 = por %p200, %p201
      %p204 = scmp.ne.s32.totalorder %s189, %s203
      %p205 = scmp.eq.s32.totalorder %s32, 0
      %p206 = por %p204, %p205
      %s208 = sadd.s32 %s207, 1
      %p211 = scmp.eq.s32.totalorder %s26, 1
      %p212 = scmp.ne.s32.totalorder %s207, %s209
      %p213 = scmp.eq.s32.totalorder %s26, 0
      %p214 = por %p212, %p213
      %p215 = scmp.ne.s32.totalorder %s207, %s209
      %p216 = scmp.eq.s32.totalorder %s31, 1
      %p217 = por %p215, %p216
      %p218 = scmp.ne.s32.totalorder %s209, %s210
      %p219 = scmp.eq.s32.totalorder %s31, 0
      %p220 = por %p218, %p219
      %p221 = scmp.ne.s32.totalorder %s209, %s210
      %p222 = scmp.eq.s32.totalorder %s32, 1
      %p223 = por %p221, %p222
      %p225 = scmp.ne.s32.totalorder %s210, %s224
      %p226 = scmp.eq.s32.totalorder %s32, 0
      %p227 = por %p225, %p226
      %s229 = sadd.s32 %s228, 1
      %p232 = scmp.eq.s32.totalorder %s26, 1
      %p233 = scmp.ne.s32.totalorder %s228, %s230
      %p234 = scmp.eq.s32.totalorder %s26, 0
      %p235 = por %p233, %p234
      %p236 = scmp.ne.s32.totalorder %s228, %s230
      %p237 = scmp.eq.s32.totalorder %s31, 1
      %p238 = por %p236, %p237
      %p239 = scmp.ne.s32.totalorder %s230, %s231
      %p240 = scmp.eq.s32.totalorder %s31, 0
      %p241 = por %p239, %p240
      %p242 = scmp.ne.s32.totalorder %s230, %s231
      %p243 = scmp.eq.s32.totalorder %s32, 1
      %p244 = por %p242, %p243
      %p246 = scmp.ne.s32.totalorder %s231, %s245
      %p247 = scmp.eq.s32.totalorder %s32, 0
      %p248 = por %p246, %p247
      %s250 = sadd.s32 %s249, 1
      %p253 = scmp.eq.s32.totalorder %s26, 1
      %p254 = scmp.ne.s32.totalorder %s249, %s251
      %p255 = scmp.eq.s32.totalorder %s26, 0
      %p256 = por %p254, %p255
      %p257 = scmp.ne.s32.totalorder %s249, %s251
      %p258 = scmp.eq.s32.totalorder %s31, 1
      %p259 = por %p257, %p258
      %p260 = scmp.ne.s32.totalorder %s251, %s252
      %p261 = scmp.eq.s32.totalorder %s31, 0
      %p262 = por %p260, %p261
      %p263 = scmp.ne.s32.totalorder %s251, %s252
      %p264 = scmp.eq.s32.totalorder %s32, 1
      %p265 = por %p263, %p264
      %p267 = scmp.ne.s32.totalorder %s252, %s266
      %p268 = scmp.eq.s32.totalorder %s32, 0
      %p269 = por %p267, %p268
      %s271 = sadd.s32 %s270, 1
      %p274 = scmp.eq.s32.totalorder %s26, 1
      %p275 = scmp.ne.s32.totalorder %s270, %s272
      %p276 = scmp.eq.s32.totalorder %s26, 0
      %p277 = por %p275, %p276
      %p278 = scmp.ne.s32.totalorder %s270, %s272
      %p279 = scmp.eq.s32.totalorder %s31, 1
      %p280 = por %p278, %p279
      %p281 = scmp.ne.s32.totalorder %s272, %s273
      %p282 = scmp.eq.s32.totalorder %s31, 0
      %p283 = por %p281, %p282
      %p284 = scmp.ne.s32.totalorder %s272, %s273
      %p285 = scmp.eq.s32.totalorder %s32, 1
      %p286 = por %p284, %p285
      %p288 = scmp.ne.s32.totalorder %s273, %s287
      %p289 = scmp.eq.s32.totalorder %s32, 0
      %p290 = por %p288, %p289
      %s291 = ssub.s32 %s26, %s33
      %p292 = scmp.eq.s32.totalorder %s291, 0
      %s294 = sadd.s32 %s293, 1
      %s295 = scalar_select %p292, %s293, %s294
      %p298 = pneg %p292
      %p299 = scmp.eq.s32.totalorder %s26, 1
      %p300 = por %p298, %p299
      %p301 = scmp.ne.s32.totalorder %s293, %s296
      %p302 = scmp.eq.s32.totalorder %s26, 0
      %p303 = por %p301, %p302
      %p304 = scmp.ne.s32.totalorder %s293, %s296
      %p305 = scmp.eq.s32.totalorder %s31, 1
      %p306 = por %p304, %p305
      %p307 = scmp.ne.s32.totalorder %s296, %s297
      %p308 = scmp.eq.s32.totalorder %s31, 0
      %p309 = por %p307, %p308
      %p310 = scmp.ne.s32.totalorder %s296, %s297
      %p311 = scmp.eq.s32.totalorder %s32, 1
      %p312 = por %p310, %p311
      %p314 = scmp.ne.s32.totalorder %s297, %s313
      %p315 = scmp.eq.s32.totalorder %s32, 0
      %p316 = por %p314, %p315
      %p317 = scmp.le.s32.totalorder 1, %s26
      %p318 = scmp.lt.s32.totalorder %s26, 3
      %p319 = pnand %p317, %p318
      %p320 = pneg %p319
      // Predicated region
      $region9: #{tpu_custom_call.1} parent=5 // pred_check
        _
      $region10: #{tpu_custom_call.1} parent=5 // pred_check_branch
        %322 = sbr.rel (%p319) target = $region12
      $region11: #{tpu_custom_call.1} parent=5 // pred_region
        %s323 = ssub.s32 %s26, 1
        // Predicated region
        $region13: #{tpu_custom_call.1} parent=11 // pred_check
          %p324 = pneg %p73
        $region14: #{tpu_custom_call.1} parent=11 // pred_check_branch
          %326 = sbr.rel (%p324) target = $region16
        $region15: #{tpu_custom_call.1} parent=11 // pred_region
          _
        $region16: #{tpu_custom_call.1} parent=11 // pred_fallthru
          _
        // Predicated region
        $region17: #{tpu_custom_call.1} parent=11 // pred_check
          %p327 = pneg %p94
        $region18: #{tpu_custom_call.1} parent=11 // pred_check_branch
          %329 = sbr.rel (%p327) target = $region20
        $region19: #{tpu_custom_call.1} parent=11 // pred_region
          _
        $region20: #{tpu_custom_call.1} parent=11 // pred_fallthru
          _
        // Predicated region
        $region21: #{tpu_custom_call.1} parent=11 // pred_check
          %p330 = pneg %p115
        $region22: #{tpu_custom_call.1} parent=11 // pred_check_branch
          %332 = sbr.rel (%p330) target = $region24
        $region23: #{tpu_custom_call.1} parent=11 // pred_region
          %s334 = ssub.s32 3072, 3072
          %335 = vsyncadd [#allocation8], %s334
          %s336 = sshll.u32 [#allocation7], 4
          %s337 = int_to_ptr.vmem [resolvable:$true] %s336
          %342 = dma.hbm_to_vmem [thread:$0]  %s3, 3072, %s337, [#allocation8], 192, 192, 12
        $region24: #{tpu_custom_call.1} parent=11 // pred_fallthru
          _
        // Predicated region
        $region25: #{tpu_custom_call.1} parent=11 // pred_check
          %p343 = pneg %p136
        $region26: #{tpu_custom_call.1} parent=11 // pred_check_branch
          %345 = sbr.rel (%p343) target = $region28
        $region27: #{tpu_custom_call.1} parent=11 // pred_region
          %s347 = ssub.s32 1024, 1024
          %348 = vsyncadd [#allocation8], %s347
          %s349 = sshll.u32 [#allocation9], 4
          %s350 = int_to_ptr.vmem [resolvable:$true] %s349
          %355 = dma.hbm_to_vmem [thread:$0]  %s4, 1024, %s350, [#allocation8], 64, 64, 4
        $region28: #{tpu_custom_call.1} parent=11 // pred_fallthru
          _
        // Predicated region
        $region29: #{tpu_custom_call.1} parent=11 // pred_check
          %p356 = pneg %p157
        $region30: #{tpu_custom_call.1} parent=11 // pred_check_branch
          %358 = sbr.rel (%p356) target = $region32
        $region31: #{tpu_custom_call.1} parent=11 // pred_region
          _
        $region32: #{tpu_custom_call.1} parent=11 // pred_fallthru
          _
        // Predicated region
        $region33: #{tpu_custom_call.1} parent=11 // pred_check
          %p359 = pneg %p178
        $region34: #{tpu_custom_call.1} parent=11 // pred_check_branch
          %361 = sbr.rel (%p359) target = $region36
        $region35: #{tpu_custom_call.1} parent=11 // pred_region
          _
        $region36: #{tpu_custom_call.1} parent=11 // pred_fallthru
          _
        // Predicated region
        $region37: #{tpu_custom_call.1} parent=11 // pred_check
          %p362 = pneg %p199
        $region38: #{tpu_custom_call.1} parent=11 // pred_check_branch
          %364 = sbr.rel (%p362) target = $region40
        $region39: #{tpu_custom_call.1} parent=11 // pred_region
          _
        $region40: #{tpu_custom_call.1} parent=11 // pred_fallthru
          _
        // Predicated region
        $region41: #{tpu_custom_call.1} parent=11 // pred_check
          %p365 = pneg %p220
        $region42: #{tpu_custom_call.1} parent=11 // pred_check_branch
          %367 = sbr.rel (%p365) target = $region44
        $region43: #{tpu_custom_call.1} parent=11 // pred_region
          %s369 = ssub.s32 4096, 4096
          %370 = vsyncadd [#allocation11], %s369
          %s371 = sshll.u32 [#allocation10], 4
          %s372 = int_to_ptr.vmem [resolvable:$true] %s371
          %377 = dma.hbm_to_vmem [thread:$0]  %s8, 4096, %s372, [#allocation11], 256, 256, 16
        $region44: #{tpu_custom_call.1} parent=11 // pred_fallthru
          _
        // Predicated region
        $region45: #{tpu_custom_call.1} parent=11 // pred_check
          %p378 = pneg %p241
        $region46: #{tpu_custom_call.1} parent=11 // pred_check_branch
          %380 = sbr.rel (%p378) target = $region48
        $region47: #{tpu_custom_call.1} parent=11 // pred_region
          _
        $region48: #{tpu_custom_call.1} parent=11 // pred_fallthru
          _
        // Predicated region
        $region49: #{tpu_custom_call.1} parent=11 // pred_check
          %p381 = pneg %p262
        $region50: #{tpu_custom_call.1} parent=11 // pred_check_branch
          %383 = sbr.rel (%p381) target = $region52
        $region51: #{tpu_custom_call.1} parent=11 // pred_region
          %s385 = ssub.s32 4096, 4096
          %386 = vsyncadd [#allocation11], %s385
          %s387 = sshll.u32 [#allocation12], 4
          %s388 = int_to_ptr.vmem [resolvable:$true] %s387
          %393 = dma.hbm_to_vmem [thread:$0]  %s10, 4096, %s388, [#allocation11], 64, 64, 4
        $region52: #{tpu_custom_call.1} parent=11 // pred_fallthru
          _
        // Predicated region
        $region53: #{tpu_custom_call.1} parent=11 // pred_check
          %p394 = pneg %p283
        $region54: #{tpu_custom_call.1} parent=11 // pred_check_branch
          %396 = sbr.rel (%p394) target = $region56
        $region55: #{tpu_custom_call.1} parent=11 // pred_region
          _
        $region56: #{tpu_custom_call.1} parent=11 // pred_fallthru
          _
      $region12: #{tpu_custom_call.1} parent=5 // pred_fallthru
        _
      %p397 = scmp.lt.s32.totalorder %s26, 2
      // Predicated region
      $region57: #{tpu_custom_call.1} parent=5 // pred_check
        %p398 = pneg %p397
      $region58: #{tpu_custom_call.1} parent=5 // pred_check_branch
        %400 = sbr.rel (%p398) target = $region60
      $region59: #{tpu_custom_call.1} parent=5 // pred_region
        // Predicated region
        $region61: #{tpu_custom_call.1} parent=59 // pred_check
          %p401 = pneg %p46
        $region62: #{tpu_custom_call.1} parent=59 // pred_check_branch
          %403 = sbr.rel (%p401) target = $region64
        $region63: #{tpu_custom_call.1} parent=59 // pred_region
          %s404 = sand.u32 %s36, 1
          %s405 = scalar_lea.sflag [#allocation5], %s404
          %s406 = sand.u32 %s36, 1
          %s407 = smul.addr %s406, 128
          %s408 = scalar_lea.vmem [#allocation4], %s407
          %s410 = ssub.s32 2048, 2048
          %411 = vsyncadd %s405, %s410
          %s412 = smul.addr %s26, 16
          %s413 = smul.addr %s412, 128
          %s414 = scalar_lea.hbm %s0, %s413
          %s415 = sshll.u32 %s408, 4
          %s416 = int_to_ptr.vmem [resolvable:$true] %s415
          %421 = dma.hbm_to_vmem [thread:$0]  %s414, 2048, %s416, %s405, 128, 128, 8
        $region64: #{tpu_custom_call.1} parent=59 // pred_fallthru
          _
      $region60: #{tpu_custom_call.1} parent=5 // pred_fallthru
        _
      %p422 = scmp.le.s32.totalorder 1, %s26
      %p423 = scmp.lt.s32.totalorder %s26, 3
      %p424 = pnand %p422, %p423
      %p425 = pneg %p424
      // Predicated region
      $region65: #{tpu_custom_call.1} parent=5 // pred_check
        _
      $region66: #{tpu_custom_call.1} parent=5 // pred_check_branch
        %427 = sbr.rel (%p424) target = $region68
      $region67: #{tpu_custom_call.1} parent=5 // pred_region
        %s428 = ssub.s32 %s26, 1
        %s429 = sand.u32 %s39, 1
        %s430 = scalar_lea.sflag [#allocation5], %s429
        %s431 = sand.u32 %s39, 1
        %s432 = smul.addr %s431, 128
        %s433 = scalar_lea.vmem [#allocation4], %s432
        // Predicated region
        $region69: #{tpu_custom_call.1} parent=67 // pred_check
          %p434 = pneg %p52
        $region70: #{tpu_custom_call.1} parent=67 // pred_check_branch
          %436 = sbr.rel (%p434) target = $region72
        $region71: #{tpu_custom_call.1} parent=67 // pred_region
          %437 = dma.done %s430, 2048
        $region72: #{tpu_custom_call.1} parent=67 // pred_fallthru
          _
        // Predicated region
        $region73: #{tpu_custom_call.1} parent=67 // pred_check
          %p438 = pneg %p115
        $region74: #{tpu_custom_call.1} parent=67 // pred_check_branch
          %440 = sbr.rel (%p438) target = $region76
        $region75: #{tpu_custom_call.1} parent=67 // pred_region
          %441 = dma.done [#allocation8], 3072
        $region76: #{tpu_custom_call.1} parent=67 // pred_fallthru
          _
        // Predicated region
        $region77: #{tpu_custom_call.1} parent=67 // pred_check
          %p442 = pneg %p136
        $region78: #{tpu_custom_call.1} parent=67 // pred_check_branch
          %444 = sbr.rel (%p442) target = $region80
        $region79: #{tpu_custom_call.1} parent=67 // pred_region
          %445 = dma.done [#allocation8], 1024
        $region80: #{tpu_custom_call.1} parent=67 // pred_fallthru
          _
        // Predicated region
        $region81: #{tpu_custom_call.1} parent=67 // pred_check
          %p446 = pneg %p220
        $region82: #{tpu_custom_call.1} parent=67 // pred_check_branch
          %448 = sbr.rel (%p446) target = $region84
        $region83: #{tpu_custom_call.1} parent=67 // pred_region
          %449 = dma.done [#allocation11], 4096
        $region84: #{tpu_custom_call.1} parent=67 // pred_fallthru
          _
        // Predicated region
        $region85: #{tpu_custom_call.1} parent=67 // pred_check
          %p450 = pneg %p262
        $region86: #{tpu_custom_call.1} parent=67 // pred_check_branch
          %452 = sbr.rel (%p450) target = $region88
        $region87: #{tpu_custom_call.1} parent=67 // pred_region
          %453 = dma.done [#allocation11], 4096
        $region88: #{tpu_custom_call.1} parent=67 // pred_fallthru
          _
        %s454 = sand.u32 %s39, 1
        %s455 = scalar_lea.sflag [#allocation5], %s454
        %s456 = sand.u32 %s39, 1
        %s457 = smul.addr %s456, 128
        %s458 = scalar_lea.vmem [#allocation4], %s457
        %p459 = pneg %p52
        %p460 = pneg %p49
        %p461 = pneg %p73
        %p462 = pneg %p70
        %p463 = pneg %p94
        %p464 = pneg %p91
        %p465 = pneg %p115
        %p466 = pneg %p112
        %p467 = pneg %p136
        %p468 = pneg %p133
        %p469 = pneg %p157
        %p470 = pneg %p154
        %p471 = pneg %p178
        %p472 = pneg %p175
        %p473 = pneg %p199
        %p474 = pneg %p196
        %p475 = pneg %p220
        %p476 = pneg %p217
        %p477 = pneg %p241
        %p478 = pneg %p238
        %p479 = pneg %p262
        %p480 = pneg %p259
        %p481 = pneg %p283
        %p482 = pneg %p280
        %p483 = pneg %p309
        %p484 = pneg %p306
        %s485 = sand.u32 %s296, 1
        %s486 = scalar_lea.sflag [#allocation6], %s485
        %s487 = sand.u32 %s296, 1
        %s488 = smul.addr %s487, 128
        %s489 = scalar_lea.vmem [#allocation13], %s488
        %v491 = vld [vmem:[%s433] sm:$0xff]
        %v492 = vld [vmem:[%s433 + $0x8] sm:$0xff]
        %v493 = vld [vmem:[%s433 + $0x10] sm:$0xff]
        %v494 = vld [vmem:[%s433 + $0x18] sm:$0xff]
        %v495 = vld [vmem:[%s433 + $0x20] sm:$0xff]
        %v496 = vld [vmem:[%s433 + $0x28] sm:$0xff]
        %v497 = vld [vmem:[%s433 + $0x30] sm:$0xff]
        %v498 = vld [vmem:[%s433 + $0x38] sm:$0xff]
        %v499 = vld [vmem:[%s433 + $0x40] sm:$0xff]
        %v500 = vld [vmem:[%s433 + $0x48] sm:$0xff]
        %v501 = vld [vmem:[%s433 + $0x50] sm:$0xff]
        %v502 = vld [vmem:[%s433 + $0x58] sm:$0xff]
        %v503 = vld [vmem:[%s433 + $0x60] sm:$0xff]
        %v504 = vld [vmem:[%s433 + $0x68] sm:$0xff]
        %v505 = vld [vmem:[%s433 + $0x70] sm:$0xff]
        %v506 = vld [vmem:[%s433 + $0x78] sm:$0xff]
        %v507 = vld [vmem:[%s1] sm:$0x1]
        %v508 = vld [vmem:[%s2] sm:$0x1]
        %509 = vadd.xlane.f32.xlu0 %v491
        %v510 = vpop.xlane.xlu0 %509
        %511 = vadd.xlane.f32.xlu0 %v492
        %v512 = vpop.xlane.xlu0 %511
        %513 = vadd.xlane.f32.xlu0 %v493
        %v514 = vpop.xlane.xlu0 %513
        %515 = vadd.xlane.f32.xlu0 %v494
        %v516 = vpop.xlane.xlu0 %515
        %517 = vadd.xlane.f32.xlu0 %v495
        %v518 = vpop.xlane.xlu0 %517
        %519 = vadd.xlane.f32.xlu0 %v496
        %v520 = vpop.xlane.xlu0 %519
        %521 = vadd.xlane.f32.xlu0 %v497
        %v522 = vpop.xlane.xlu0 %521
        %523 = vadd.xlane.f32.xlu0 %v498
        %v524 = vpop.xlane.xlu0 %523
        %525 = vadd.xlane.f32.xlu0 %v499
        %v526 = vpop.xlane.xlu0 %525
        %527 = vadd.xlane.f32.xlu0 %v500
        %v528 = vpop.xlane.xlu0 %527
        %529 = vadd.xlane.f32.xlu0 %v501
        %v530 = vpop.xlane.xlu0 %529
        %531 = vadd.xlane.f32.xlu0 %v502
        %v532 = vpop.xlane.xlu0 %531
        %533 = vadd.xlane.f32.xlu0 %v503
        %v534 = vpop.xlane.xlu0 %533
        %535 = vadd.xlane.f32.xlu0 %v504
        %v536 = vpop.xlane.xlu0 %535
        %537 = vadd.xlane.f32.xlu0 %v505
        %v538 = vpop.xlane.xlu0 %537
        %539 = vadd.xlane.f32.xlu0 %v506
        %v540 = vpop.xlane.xlu0 %539
        %v541 = vrcp.pop 128.0
        %v542 = vmul.f32 %v510, %v541
        %v543 = vmul.f32 %v512, %v541
        %v544 = vmul.f32 %v514, %v541
        %v545 = vmul.f32 %v516, %v541
        %v546 = vmul.f32 %v518, %v541
        %v547 = vmul.f32 %v520, %v541
        %v548 = vmul.f32 %v522, %v541
        %v549 = vmul.f32 %v524, %v541
        %v550 = vmul.f32 %v526, %v541
        %v551 = vmul.f32 %v528, %v541
        %v552 = vmul.f32 %v530, %v541
        %v553 = vmul.f32 %v532, %v541
        %v554 = vmul.f32 %v534, %v541
        %v555 = vmul.f32 %v536, %v541
        %v556 = vmul.f32 %v538, %v541
        %v557 = vmul.f32 %v540, %v541
        %v558 = vmul.f32 %v491, %v491
        %v559 = vmul.f32 %v492, %v492
        %v560 = vmul.f32 %v493, %v493
        %v561 = vmul.f32 %v494, %v494
        %v562 = vmul.f32 %v495, %v495
        %v563 = vmul.f32 %v496, %v496
        %v564 = vmul.f32 %v497, %v497
        %v565 = vmul.f32 %v498, %v498
        %v566 = vmul.f32 %v499, %v499
        %v567 = vmul.f32 %v500, %v500
        %v568 = vmul.f32 %v501, %v501
        %v569 = vmul.f32 %v502, %v502
        %v570 = vmul.f32 %v503, %v503
        %v571 = vmul.f32 %v504, %v504
        %v572 = vmul.f32 %v505, %v505
        %v573 = vmul.f32 %v506, %v506
        %574 = vadd.xlane.f32.xlu0 %v558
        %v575 = vpop.xlane.xlu0 %574
        %576 = vadd.xlane.f32.xlu0 %v559
        %v577 = vpop.xlane.xlu0 %576
        %578 = vadd.xlane.f32.xlu0 %v560
        %v579 = vpop.xlane.xlu0 %578
        %580 = vadd.xlane.f32.xlu0 %v561
        %v581 = vpop.xlane.xlu0 %580
        %582 = vadd.xlane.f32.xlu0 %v562
        %v583 = vpop.xlane.xlu0 %582
        %584 = vadd.xlane.f32.xlu0 %v563
        %v585 = vpop.xlane.xlu0 %584
        %586 = vadd.xlane.f32.xlu0 %v564
        %v587 = vpop.xlane.xlu0 %586
        %588 = vadd.xlane.f32.xlu0 %v565
        %v589 = vpop.xlane.xlu0 %588
        %590 = vadd.xlane.f32.xlu0 %v566
        %v591 = vpop.xlane.xlu0 %590
        %592 = vadd.xlane.f32.xlu0 %v567
        %v593 = vpop.xlane.xlu0 %592
        %594 = vadd.xlane.f32.xlu0 %v568
        %v595 = vpop.xlane.xlu0 %594
        %596 = vadd.xlane.f32.xlu0 %v569
        %v597 = vpop.xlane.xlu0 %596
        %598 = vadd.xlane.f32.xlu0 %v570
        %v599 = vpop.xlane.xlu0 %598
        %600 = vadd.xlane.f32.xlu0 %v571
        %v601 = vpop.xlane.xlu0 %600
        %602 = vadd.xlane.f32.xlu0 %v572
        %v603 = vpop.xlane.xlu0 %602
        %604 = vadd.xlane.f32.xlu0 %v573
        %v605 = vpop.xlane.xlu0 %604
        %v606 = vmul.f32 %v575, %v541
        %v607 = vmul.f32 %v577, %v541
        %v608 = vmul.f32 %v579, %v541
        %v609 = vmul.f32 %v581, %v541
        %v610 = vmul.f32 %v583, %v541
        %v611 = vmul.f32 %v585, %v541
        %v612 = vmul.f32 %v587, %v541
        %v613 = vmul.f32 %v589, %v541
        %v614 = vmul.f32 %v591, %v541
        %v615 = vmul.f32 %v593, %v541
        %v616 = vmul.f32 %v595, %v541
        %v617 = vmul.f32 %v597, %v541
        %v618 = vmul.f32 %v599, %v541
        %v619 = vmul.f32 %v601, %v541
        %v620 = vmul.f32 %v603, %v541
        %v621 = vmul.f32 %v605, %v541
        %v622 = vmul.f32 %v542, %v542
        %v623 = vmul.f32 %v543, %v543
        %v624 = vmul.f32 %v544, %v544
        %v625 = vmul.f32 %v545, %v545
        %v626 = vmul.f32 %v546, %v546
        %v627 = vmul.f32 %v547, %v547
        %v628 = vmul.f32 %v548, %v548
        %v629 = vmul.f32 %v549, %v549
        %v630 = vmul.f32 %v550, %v550
        %v631 = vmul.f32 %v551, %v551
        %v632 = vmul.f32 %v552, %v552
        %v633 = vmul.f32 %v553, %v553
        %v634 = vmul.f32 %v554, %v554
        %v635 = vmul.f32 %v555, %v555
        %v636 = vmul.f32 %v556, %v556
        %v637 = vmul.f32 %v557, %v557
        %v638 = vsub.f32 %v606, %v622
        %v639 = vsub.f32 %v607, %v623
        %v640 = vsub.f32 %v608, %v624
        %v641 = vsub.f32 %v609, %v625
        %v642 = vsub.f32 %v610, %v626
        %v643 = vsub.f32 %v611, %v627
        %v644 = vsub.f32 %v612, %v628
        %v645 = vsub.f32 %v613, %v629
        %v646 = vsub.f32 %v614, %v630
        %v647 = vsub.f32 %v615, %v631
        %v648 = vsub.f32 %v616, %v632
        %v649 = vsub.f32 %v617, %v633
        %v650 = vsub.f32 %v618, %v634
        %v651 = vsub.f32 %v619, %v635
        %v652 = vsub.f32 %v620, %v636
        %v653 = vsub.f32 %v621, %v637
        %v654 = vsub.f32 %v491, %v542
        %v655 = vsub.f32 %v492, %v543
        %v656 = vsub.f32 %v493, %v544
        %v657 = vsub.f32 %v494, %v545
        %v658 = vsub.f32 %v495, %v546
        %v659 = vsub.f32 %v496, %v547
        %v660 = vsub.f32 %v497, %v548
        %v661 = vsub.f32 %v498, %v549
        %v662 = vsub.f32 %v499, %v550
        %v663 = vsub.f32 %v500, %v551
        %v664 = vsub.f32 %v501, %v552
        %v665 = vsub.f32 %v502, %v553
        %v666 = vsub.f32 %v503, %v554
        %v667 = vsub.f32 %v504, %v555
        %v668 = vsub.f32 %v505, %v556
        %v669 = vsub.f32 %v506, %v557
        %v670 = vadd.f32 %v638, 1e-05
        %v671 = vadd.f32 %v639, 1e-05
        %v672 = vadd.f32 %v640, 1e-05
        %v673 = vadd.f32 %v641, 1e-05
        %v674 = vadd.f32 %v642, 1e-05
        %v675 = vadd.f32 %v643, 1e-05
        %v676 = vadd.f32 %v644, 1e-05
        %v677 = vadd.f32 %v645, 1e-05
        %v678 = vadd.f32 %v646, 1e-05
        %v679 = vadd.f32 %v647, 1e-05
        %v680 = vadd.f32 %v648, 1e-05
        %v681 = vadd.f32 %v649, 1e-05
        %v682 = vadd.f32 %v650, 1e-05
        %v683 = vadd.f32 %v651, 1e-05
        %v684 = vadd.f32 %v652, 1e-05
        %v685 = vadd.f32 %v653, 1e-05
        %v686 = vrsqrt.pop %v670
        %v687 = vrsqrt.pop %v671
        %v688 = vrsqrt.pop %v672
        %v689 = vrsqrt.pop %v673
        %v690 = vrsqrt.pop %v674
        %v691 = vrsqrt.pop %v675
        %v692 = vrsqrt.pop %v676
        %v693 = vrsqrt.pop %v677
        %v694 = vrsqrt.pop %v678
        %v695 = vrsqrt.pop %v679
        %v696 = vrsqrt.pop %v680
        %v697 = vrsqrt.pop %v681
        %v698 = vrsqrt.pop %v682
        %v699 = vrsqrt.pop %v683
        %v700 = vrsqrt.pop %v684
        %v701 = vrsqrt.pop %v685
        %v702 = vmul.f32 %v654, %v686
        %v703 = vmul.f32 %v655, %v687
        %v704 = vmul.f32 %v656, %v688
        %v705 = vmul.f32 %v657, %v689
        %v706 = vmul.f32 %v658, %v690
        %v707 = vmul.f32 %v659, %v691
        %v708 = vmul.f32 %v660, %v692
        %v709 = vmul.f32 %v661, %v693
        %v710 = vmul.f32 %v662, %v694
        %v711 = vmul.f32 %v663, %v695
        %v712 = vmul.f32 %v664, %v696
        %v713 = vmul.f32 %v665, %v697
        %v714 = vmul.f32 %v666, %v698
        %v715 = vmul.f32 %v667, %v699
        %v716 = vmul.f32 %v668, %v700
        %v717 = vmul.f32 %v669, %v701
        %v719 = vlaneseq
        %v720 = vshrl.u32 %v719, 7
        %v721 = vsub.s32 0, %v720
        %v722 = vrot.slane %v507, %v721
        %v724 = vmul.f32 %v702, %v722
        %v725 = vmul.f32 %v703, %v722
        %v726 = vmul.f32 %v704, %v722
        %v727 = vmul.f32 %v705, %v722
        %v728 = vmul.f32 %v706, %v722
        %v729 = vmul.f32 %v707, %v722
        %v730 = vmul.f32 %v708, %v722
        %v731 = vmul.f32 %v709, %v722
        %v732 = vmul.f32 %v710, %v722
        %v733 = vmul.f32 %v711, %v722
        %v734 = vmul.f32 %v712, %v722
        %v735 = vmul.f32 %v713, %v722
        %v736 = vmul.f32 %v714, %v722
        %v737 = vmul.f32 %v715, %v722
        %v738 = vmul.f32 %v716, %v722
        %v739 = vmul.f32 %v717, %v722
        %v741 = vlaneseq
        %v742 = vshrl.u32 %v741, 7
        %v743 = vsub.s32 0, %v742
        %v744 = vrot.slane %v508, %v743
        %v746 = vadd.f32 %v724, %v744
        %v747 = vadd.f32 %v725, %v744
        %v748 = vadd.f32 %v726, %v744
        %v749 = vadd.f32 %v727, %v744
        %v750 = vadd.f32 %v728, %v744
        %v751 = vadd.f32 %v729, %v744
        %v752 = vadd.f32 %v730, %v744
        %v753 = vadd.f32 %v731, %v744
        %v754 = vadd.f32 %v732, %v744
        %v755 = vadd.f32 %v733, %v744
        %v756 = vadd.f32 %v734, %v744
        %v757 = vadd.f32 %v735, %v744
        %v758 = vadd.f32 %v736, %v744
        %v759 = vadd.f32 %v737, %v744
        %v760 = vadd.f32 %v738, %v744
        %v761 = vadd.f32 %v739, %v744
        %v762 = vpack.c.bf16 %v747, %v746
        %v763 = vpack.c.bf16 %v749, %v748
        %v764 = vpack.c.bf16 %v751, %v750
        %v765 = vpack.c.bf16 %v753, %v752
        %v766 = vpack.c.bf16 %v755, %v754
        %v767 = vpack.c.bf16 %v757, %v756
        %v768 = vpack.c.bf16 %v759, %v758
        %v769 = vpack.c.bf16 %v761, %v760
        %v770 = vld [vmem:[#allocation7] sm:$0xff]
        %v771 = vld [vmem:[#allocation7 + $0x8] sm:$0xf]
        %v772 = vld [vmem:[#allocation7 + $0xc] sm:$0xff]
        %v773 = vld [vmem:[#allocation7 + $0x14] sm:$0xf]
        %v774 = vld [vmem:[#allocation7 + $0x18] sm:$0xff]
        %v775 = vld [vmem:[#allocation7 + $0x20] sm:$0xf]
        %v776 = vld [vmem:[#allocation7 + $0x24] sm:$0xff]
        %v777 = vld [vmem:[#allocation7 + $0x2c] sm:$0xf]
        %v778 = vld [vmem:[#allocation7 + $0x30] sm:$0xff]
        %v779 = vld [vmem:[#allocation7 + $0x38] sm:$0xf]
        %v780 = vld [vmem:[#allocation7 + $0x3c] sm:$0xff]
        %v781 = vld [vmem:[#allocation7 + $0x44] sm:$0xf]
        %v782 = vld [vmem:[#allocation7 + $0x48] sm:$0xff]
        %v783 = vld [vmem:[#allocation7 + $0x50] sm:$0xf]
        %v784 = vld [vmem:[#allocation7 + $0x54] sm:$0xff]
        %v785 = vld [vmem:[#allocation7 + $0x5c] sm:$0xf]
        %v786 = vld [vmem:[#allocation7 + $0x60] sm:$0xff]
        %v787 = vld [vmem:[#allocation7 + $0x68] sm:$0xf]
        %v788 = vld [vmem:[#allocation7 + $0x6c] sm:$0xff]
        %v789 = vld [vmem:[#allocation7 + $0x74] sm:$0xf]
        %v790 = vld [vmem:[#allocation7 + $0x78] sm:$0xff]
        %v791 = vld [vmem:[#allocation7 + $0x80] sm:$0xf]
        %v792 = vld [vmem:[#allocation7 + $0x84] sm:$0xff]
        %v793 = vld [vmem:[#allocation7 + $0x8c] sm:$0xf]
        %v794 = vld [vmem:[#allocation7 + $0x90] sm:$0xff]
        %v795 = vld [vmem:[#allocation7 + $0x98] sm:$0xf]
        %v796 = vld [vmem:[#allocation7 + $0x9c] sm:$0xff]
        %v797 = vld [vmem:[#allocation7 + $0xa4] sm:$0xf]
        %v798 = vld [vmem:[#allocation7 + $0xa8] sm:$0xff]
        %v799 = vld [vmem:[#allocation7 + $0xb0] sm:$0xf]
        %v800 = vld [vmem:[#allocation7 + $0xb4] sm:$0xff]
        %v801 = vld [vmem:[#allocation7 + $0xbc] sm:$0xf]
        %v834 = vunpack.c.l.b16 %v770
        %v835 = vunpack.c.h.b16 %v770
        %v836 = vunpack.c.l.b16 %v771
        %v837 = vunpack.c.l.b16 %v772
        %v838 = vunpack.c.h.b16 %v772
        %v839 = vunpack.c.l.b16 %v773
        %v840 = vunpack.c.l.b16 %v774
        %v841 = vunpack.c.h.b16 %v774
        %v842 = vunpack.c.l.b16 %v775
        %v843 = vunpack.c.l.b16 %v776
        %v844 = vunpack.c.h.b16 %v776
        %v845 = vunpack.c.l.b16 %v777
        %v846 = vunpack.c.l.b16 %v778
        %v847 = vunpack.c.h.b16 %v778
        %v848 = vunpack.c.l.b16 %v779
        %v849 = vunpack.c.l.b16 %v780
        %v850 = vunpack.c.h.b16 %v780
        %v851 = vunpack.c.l.b16 %v781
        %v852 = vunpack.c.l.b16 %v782
        %v853 = vunpack.c.h.b16 %v782
        %v854 = vunpack.c.l.b16 %v783
        %v855 = vunpack.c.l.b16 %v784
        %v856 = vunpack.c.h.b16 %v784
        %v857 = vunpack.c.l.b16 %v785
        %v858 = vunpack.c.l.b16 %v786
        %v859 = vunpack.c.h.b16 %v786
        %v860 = vunpack.c.l.b16 %v787
        %v861 = vunpack.c.l.b16 %v788
        %v862 = vunpack.c.h.b16 %v788
        %v863 = vunpack.c.l.b16 %v789
        %v864 = vunpack.c.l.b16 %v790
        %v865 = vunpack.c.h.b16 %v790
        %v866 = vunpack.c.l.b16 %v791
        %v867 = vunpack.c.l.b16 %v792
        %v868 = vunpack.c.h.b16 %v792
        %v869 = vunpack.c.l.b16 %v793
        %v870 = vunpack.c.l.b16 %v794
        %v871 = vunpack.c.h.b16 %v794
        %v872 = vunpack.c.l.b16 %v795
        %v873 = vunpack.c.l.b16 %v796
        %v874 = vunpack.c.h.b16 %v796
        %v875 = vunpack.c.l.b16 %v797
        %v876 = vunpack.c.l.b16 %v798
        %v877 = vunpack.c.h.b16 %v798
        %v878 = vunpack.c.l.b16 %v799
        %v879 = vunpack.c.l.b16 %v800
        %v880 = vunpack.c.h.b16 %v800
        %v881 = vunpack.c.l.b16 %v801
        %v882 = vpack.c.b16 %v837, %v834
        %v883 = vpack.c.b16 %v838, %v835
        %v884 = vpack.c.b16 %v839, %v836
        %v885 = vpack.c.b16 %v843, %v840
        %v886 = vpack.c.b16 %v844, %v841
        %v887 = vpack.c.b16 %v845, %v842
        %v888 = vpack.c.b16 %v849, %v846
        %v889 = vpack.c.b16 %v850, %v847
        %v890 = vpack.c.b16 %v851, %v848
        %v891 = vpack.c.b16 %v855, %v852
        %v892 = vpack.c.b16 %v856, %v853
        %v893 = vpack.c.b16 %v857, %v854
        %v894 = vpack.c.b16 %v861, %v858
        %v895 = vpack.c.b16 %v862, %v859
        %v896 = vpack.c.b16 %v863, %v860
        %v897 = vpack.c.b16 %v867, %v864
        %v898 = vpack.c.b16 %v868, %v865
        %v899 = vpack.c.b16 %v869, %v866
        %v900 = vpack.c.b16 %v873, %v870
        %v901 = vpack.c.b16 %v874, %v871
        %v902 = vpack.c.b16 %v875, %v872
        %v903 = vpack.c.b16 %v879, %v876
        %v904 = vpack.c.b16 %v880, %v877
        %v905 = vpack.c.b16 %v881, %v878
        %930 = vmatprep.subr.bf16.mxu0 %v883
        %931 = vmatpush1.bf16.msra.mxu0 %v882
        %932 = vmatprep.subr.bf16.mxu0 %v886
        %933 = vmatpush1.bf16.msra.mxu0 %v885
        %934 = vmatprep.subr.bf16.mxu0 %v889
        %935 = vmatpush1.bf16.msra.mxu0 %v888
        %936 = vmatprep.subr.bf16.mxu0 %v892
        %937 = vmatpush1.bf16.msra.mxu0 %v891
        %938 = vmatprep.subr.bf16.mxu0 %v895
        %939 = vmatpush1.bf16.msra.mxu0 %v894
        %940 = vmatprep.subr.bf16.mxu0 %v898
        %941 = vmatpush1.bf16.msra.mxu0 %v897
        %942 = vmatprep.subr.bf16.mxu0 %v901
        %943 = vmatpush1.bf16.msra.mxu0 %v900
        %944 = vmatprep.subr.bf16.mxu0 %v904
        %945 = vmatpush1.bf16.msra.mxu0 %v903
        %946 = vmatprep.subr.bf16.mxu0 0
        %947 = vmatpush1.bf16.msra.mxu0 0
        %948 = vmatprep.subr.bf16.mxu0 0
        %949 = vmatpush1.bf16.msra.mxu0 0
        %950 = vmatprep.subr.bf16.mxu0 0
        %951 = vmatpush1.bf16.msra.mxu0 0
        %952 = vmatprep.subr.bf16.mxu0 0
        %953 = vmatpush1.bf16.msra.mxu0 0
        %954 = vmatprep.subr.bf16.mxu0 0
        %955 = vmatpush1.bf16.msra.mxu0 0
        %956 = vmatprep.subr.bf16.mxu0 0
        %957 = vmatpush1.bf16.msra.mxu0 0
        %958 = vmatprep.subr.bf16.mxu0 0
        %959 = vmatpush1.bf16.msra.mxu0 0
        %960 = vmatprep.subr.bf16.mxu0 0
        %961 = vmatpush1.bf16.msra.mxu0 0
        %962 = vmatprep.mubr.bf16.mxu0 0
        %963 = vmatmul.mubr.bf16.gmra.mrb[0].mxu0 %v762
        %v964 = vpop.f32.mrb[0].mxu0
        %v965 = vadd.f32 0.0, %v964
        %v966 = vpop.f32.mrb[0].mxu0
        %v967 = vadd.f32 0.0, %v966
        %v968 = vpop.f32.mrb[0].mxu0
        %v969 = vadd.f32 0.0, %v968
        %v970 = vpop.f32.mrb[0].mxu0
        %v971 = vadd.f32 0.0, %v970
        %972 = vmatprep.mubr.bf16.mxu0 0
        %973 = vmatmul.mubr.bf16.gmra.mrb[0].mxu0 %v763
        %v974 = vpop.f32.mrb[0].mxu0
        %v975 = vadd.f32 0.0, %v974
        %v976 = vpop.f32.mrb[0].mxu0
        %v977 = vadd.f32 0.0, %v976
        %v978 = vpop.f32.mrb[0].mxu0
        %v979 = vadd.f32 0.0, %v978
        %v980 = vpop.f32.mrb[0].mxu0
        %v981 = vadd.f32 0.0, %v980
        %982 = vmatprep.mubr.bf16.mxu0 0
        %983 = vmatmul.mubr.bf16.gmra.mrb[0].mxu0 %v764
        %v984 = vpop.f32.mrb[0].mxu0
        %v985 = vadd.f32 0.0, %v984
        %v986 = vpop.f32.mrb[0].mxu0
        %v987 = vadd.f32 0.0, %v986
        %v988 = vpop.f32.mrb[0].mxu0
        %v989 = vadd.f32 0.0, %v988
        %v990 = vpop.f32.mrb[0].mxu0
        %v991 = vadd.f32 0.0, %v990
        %992 = vmatprep.mubr.bf16.mxu0 0
        %993 = vmatmul.mubr.bf16.gmra.mrb[0].mxu0 %v765
        %v994 = vpop.f32.mrb[0].mxu0
        %v995 = vadd.f32 0.0, %v994
        %v996 = vpop.f32.mrb[0].mxu0
        %v997 = vadd.f32 0.0, %v996
        %v998 = vpop.f32.mrb[0].mxu0
        %v999 = vadd.f32 0.0, %v998
        %v1000 = vpop.f32.mrb[0].mxu0
        %v1001 = vadd.f32 0.0, %v1000
        %1002 = vmatprep.mubr.bf16.mxu0 0
        %1003 = vmatmul.mubr.bf16.gmra.mrb[0].mxu0 %v766
        %v1004 = vpop.f32.mrb[0].mxu0
        %v1005 = vadd.f32 0.0, %v1004
        %v1006 = vpop.f32.mrb[0].mxu0
        %v1007 = vadd.f32 0.0, %v1006
        %v1008 = vpop.f32.mrb[0].mxu0
        %v1009 = vadd.f32 0.0, %v1008
        %v1010 = vpop.f32.mrb[0].mxu0
        %v1011 = vadd.f32 0.0, %v1010
        %1012 = vmatprep.mubr.bf16.mxu0 0
        %1013 = vmatmul.mubr.bf16.gmra.mrb[0].mxu0 %v767
        %v1014 = vpop.f32.mrb[0].mxu0
        %v1015 = vadd.f32 0.0, %v1014
        %v1016 = vpop.f32.mrb[0].mxu0
        %v1017 = vadd.f32 0.0, %v1016
        %v1018 = vpop.f32.mrb[0].mxu0
        %v1019 = vadd.f32 0.0, %v1018
        %v1020 = vpop.f32.mrb[0].mxu0
        %v1021 = vadd.f32 0.0, %v1020
        %1022 = vmatprep.mubr.bf16.mxu0 0
        %1023 = vmatmul.mubr.bf16.gmra.mrb[0].mxu0 %v768
        %v1024 = vpop.f32.mrb[0].mxu0
        %v1025 = vadd.f32 0.0, %v1024
        %v1026 = vpop.f32.mrb[0].mxu0
        %v1027 = vadd.f32 0.0, %v1026
        %v1028 = vpop.f32.mrb[0].mxu0
        %v1029 = vadd.f32 0.0, %v1028
        %v1030 = vpop.f32.mrb[0].mxu0
        %v1031 = vadd.f32 0.0, %v1030
        %1032 = vmatprep.mubr.bf16.mxu0 0
        %1033 = vmatmul.mubr.bf16.gmra.mrb[0].mxu0 %v769
        %v1034 = vpop.f32.mrb[0].mxu0
        %v1035 = vadd.f32 0.0, %v1034
        %v1036 = vpop.f32.mrb[0].mxu0
        %v1037 = vadd.f32 0.0, %v1036
        %v1038 = vpop.f32.mrb[0].mxu0
        %v1039 = vadd.f32 0.0, %v1038
        %v1040 = vpop.f32.mrb[0].mxu0
        %v1041 = vadd.f32 0.0, %v1040
        %1042 = vdwg.mxu0
        %1043 = vmatprep.subr.bf16.mxu0 0
        %1044 = vmatpush1.bf16.msra.mxu0 %v884
        %1045 = vmatprep.subr.bf16.mxu0 0
        %1046 = vmatpush1.bf16.msra.mxu0 %v887
        %1047 = vmatprep.subr.bf16.mxu0 0
        %1048 = vmatpush1.bf16.msra.mxu0 %v890
        %1049 = vmatprep.subr.bf16.mxu0 0
        %1050 = vmatpush1.bf16.msra.mxu0 %v893
        %1051 = vmatprep.subr.bf16.mxu0 0
        %1052 = vmatpush1.bf16.msra.mxu0 %v896
        %1053 = vmatprep.subr.bf16.mxu0 0
        %1054 = vmatpush1.bf16.msra.mxu0 %v899
        %1055 = vmatprep.subr.bf16.mxu0 0
        %1056 = vmatpush1.bf16.msra.mxu0 %v902
        %1057 = vmatprep.subr.bf16.mxu0 0
        %1058 = vmatpush1.bf16.msra.mxu0 %v905
        %1059 = vmatprep.subr.bf16.mxu0 0
        %1060 = vmatpush1.bf16.msra.mxu0 0
        %1061 = vmatprep.subr.bf16.mxu0 0
        %1062 = vmatpush1.bf16.msra.mxu0 0
        %1063 = vmatprep.subr.bf16.mxu0 0
        %1064 = vmatpush1.bf16.msra.mxu0 0
        %1065 = vmatprep.subr.bf16.mxu0 0
        %1066 = vmatpush1.bf16.msra.mxu0 0
        %1067 = vmatprep.subr.bf16.mxu0 0
        %1068 = vmatpush1.bf16.msra.mxu0 0
        %1069 = vmatprep.subr.bf16.mxu0 0
        %1070 = vmatpush1.bf16.msra.mxu0 0
        %1071 = vmatprep.subr.bf16.mxu0 0
        %1072 = vmatpush1.bf16.msra.mxu0 0
        %1073 = vmatprep.subr.bf16.mxu0 0
        %1074 = vmatpush1.bf16.msra.mxu0 0
        %1075 = vmatprep.mubr.bf16.mxu0 0
        %1076 = vmatmul.mubr.bf16.gmra.mrb[0].mxu0 %v762
        %v1077 = vpop.f32.mrb[0].mxu0
        %v1078 = vadd.f32 0.0, %v1077
        %v1079 = vpop.f32.mrb[0].mxu0
        %v1080 = vpop.f32.mrb[0].mxu0
        %v1081 = vadd.f32 0.0, %v1080
        %v1082 = vpop.f32.mrb[0].mxu0
        %1083 = vmatprep.mubr.bf16.mxu0 0
        %1084 = vmatmul.mubr.bf16.gmra.mrb[0].mxu0 %v763
        %v1085 = vpop.f32.mrb[0].mxu0
        %v1086 = vadd.f32 0.0, %v1085
        %v1087 = vpop.f32.mrb[0].mxu0
        %v1088 = vpop.f32.mrb[0].mxu0
        %v1089 = vadd.f32 0.0, %v1088
        %v1090 = vpop.f32.mrb[0].mxu0
        %1091 = vmatprep.mubr.bf16.mxu0 0
        %1092 = vmatmul.mubr.bf16.gmra.mrb[0].mxu0 %v764
        %v1093 = vpop.f32.mrb[0].mxu0
        %v1094 = vadd.f32 0.0, %v1093
        %v1095 = vpop.f32.mrb[0].mxu0
        %v1096 = vpop.f32.mrb[0].mxu0
        %v1097 = vadd.f32 0.0, %v1096
        %v1098 = vpop.f32.mrb[0].mxu0
        %1099 = vmatprep.mubr.bf16.mxu0 0
        %1100 = vmatmul.mubr.bf16.gmra.mrb[0].mxu0 %v765
        %v1101 = vpop.f32.mrb[0].mxu0
        %v1102 = vadd.f32 0.0, %v1101
        %v1103 = vpop.f32.mrb[0].mxu0
        %v1104 = vpop.f32.mrb[0].mxu0
        %v1105 = vadd.f32 0.0, %v1104
        %v1106 = vpop.f32.mrb[0].mxu0
        %1107 = vmatprep.mubr.bf16.mxu0 0
        %1108 = vmatmul.mubr.bf16.gmra.mrb[0].mxu0 %v766
        %v1109 = vpop.f32.mrb[0].mxu0
        %v1110 = vadd.f32 0.0, %v1109
        %v1111 = vpop.f32.mrb[0].mxu0
        %v1112 = vpop.f32.mrb[0].mxu0
        %v1113 = vadd.f32 0.0, %v1112
        %v1114 = vpop.f32.mrb[0].mxu0
        %1115 = vmatprep.mubr.bf16.mxu0 0
        %1116 = vmatmul.mubr.bf16.gmra.mrb[0].mxu0 %v767
        %v1117 = vpop.f32.mrb[0].mxu0
        %v1118 = vadd.f32 0.0, %v1117
        %v1119 = vpop.f32.mrb[0].mxu0
        %v1120 = vpop.f32.mrb[0].mxu0
        %v1121 = vadd.f32 0.0, %v1120
        %v1122 = vpop.f32.mrb[0].mxu0
        %1123 = vmatprep.mubr.bf16.mxu0 0
        %1124 = vmatmul.mubr.bf16.gmra.mrb[0].mxu0 %v768
        %v1125 = vpop.f32.mrb[0].mxu0
        %v1126 = vadd.f32 0.0, %v1125
        %v1127 = vpop.f32.mrb[0].mxu0
        %v1128 = vpop.f32.mrb[0].mxu0
        %v1129 = vadd.f32 0.0, %v1128
        %v1130 = vpop.f32.mrb[0].mxu0
        %1131 = vmatprep.mubr.bf16.mxu0 0
        %1132 = vmatmul.mubr.bf16.gmra.mrb[0].mxu0 %v769
        %v1133 = vpop.f32.mrb[0].mxu0
        %v1134 = vadd.f32 0.0, %v1133
        %v1135 = vpop.f32.mrb[0].mxu0
        %v1136 = vpop.f32.mrb[0].mxu0
        %v1137 = vadd.f32 0.0, %v1136
        %v1138 = vpop.f32.mrb[0].mxu0
        %1139 = vdwg.mxu0
        %v1140 = vpack.c.bf16 %v969, %v965
        %v1141 = vpack.c.bf16 %v971, %v967
        %v1142 = vpack.c.bf16 %v1081, %v1078
        %v1143 = vpack.c.bf16 %v979, %v975
        %v1144 = vpack.c.bf16 %v981, %v977
        %v1145 = vpack.c.bf16 %v1089, %v1086
        %v1146 = vpack.c.bf16 %v989, %v985
        %v1147 = vpack.c.bf16 %v991, %v987
        %v1148 = vpack.c.bf16 %v1097, %v1094
        %v1149 = vpack.c.bf16 %v999, %v995
        %v1150 = vpack.c.bf16 %v1001, %v997
        %v1151 = vpack.c.bf16 %v1105, %v1102
        %v1152 = vpack.c.bf16 %v1009, %v1005
        %v1153 = vpack.c.bf16 %v1011, %v1007
        %v1154 = vpack.c.bf16 %v1113, %v1110
        %v1155 = vpack.c.bf16 %v1019, %v1015
        %v1156 = vpack.c.bf16 %v1021, %v1017
        %v1157 = vpack.c.bf16 %v1121, %v1118
        %v1158 = vpack.c.bf16 %v1029, %v1025
        %v1159 = vpack.c.bf16 %v1031, %v1027
        %v1160 = vpack.c.bf16 %v1129, %v1126
        %v1161 = vpack.c.bf16 %v1039, %v1035
        %v1162 = vpack.c.bf16 %v1041, %v1037
        %v1163 = vpack.c.bf16 %v1137, %v1134
        %vm1164 = vcmask 261120
        %1165 = vst.msk [vmem:[#allocation2] sm:$0xff] %vm1164, %v1140
        %1166 = vst.msk [vmem:[#allocation2 + $0x8] sm:$0xff] %vm1164, %v1143
        %1167 = vst.msk [vmem:[#allocation2 + $0x10] sm:$0xff] %vm1164, %v1146
        %1168 = vst.msk [vmem:[#allocation2 + $0x18] sm:$0xff] %vm1164, %v1149
        %1169 = vst.msk [vmem:[#allocation2 + $0x20] sm:$0xff] %vm1164, %v1152
        %1170 = vst.msk [vmem:[#allocation2 + $0x28] sm:$0xff] %vm1164, %v1155
        %1171 = vst.msk [vmem:[#allocation2 + $0x30] sm:$0xff] %vm1164, %v1158
        %1172 = vst.msk [vmem:[#allocation2 + $0x38] sm:$0xff] %vm1164, %v1161
        %1181 = vrot.lane.b32.xlu0 %v1140, 96
        %v1182 = vpop.permute.xlu0 %1181
        %1183 = vrot.lane.b32.xlu0 %v1143, 96
        %v1184 = vpop.permute.xlu0 %1183
        %1185 = vrot.lane.b32.xlu0 %v1146, 96
        %v1186 = vpop.permute.xlu0 %1185
        %1187 = vrot.lane.b32.xlu0 %v1149, 96
        %v1188 = vpop.permute.xlu0 %1187
        %1189 = vrot.lane.b32.xlu0 %v1152, 96
        %v1190 = vpop.permute.xlu0 %1189
        %1191 = vrot.lane.b32.xlu0 %v1155, 96
        %v1192 = vpop.permute.xlu0 %1191
        %1193 = vrot.lane.b32.xlu0 %v1158, 96
        %v1194 = vpop.permute.xlu0 %1193
        %1195 = vrot.lane.b32.xlu0 %v1161, 96
        %v1196 = vpop.permute.xlu0 %1195
        %s1205 = scalar_lea.vmem [#allocation2], 64
        %1206 = vst.msk [vmem:[%s1205] sm:$0xff] %vm1164, %v1182
        %1207 = vst.msk [vmem:[%s1205 + $0x8] sm:$0xff] %vm1164, %v1184
        %1208 = vst.msk [vmem:[%s1205 + $0x10] sm:$0xff] %vm1164, %v1186
        %1209 = vst.msk [vmem:[%s1205 + $0x18] sm:$0xff] %vm1164, %v1188
        %1210 = vst.msk [vmem:[%s1205 + $0x20] sm:$0xff] %vm1164, %v1190
        %1211 = vst.msk [vmem:[%s1205 + $0x28] sm:$0xff] %vm1164, %v1192
        %1212 = vst.msk [vmem:[%s1205 + $0x30] sm:$0xff] %vm1164, %v1194
        %1213 = vst.msk [vmem:[%s1205 + $0x38] sm:$0xff] %vm1164, %v1196
        %1214 = vrot.lane.b32.xlu0 %v1140, 64
        %v1215 = vpop.permute.xlu0 %1214
        %1216 = vrot.lane.b32.xlu0 %v1143, 64
        %v1217 = vpop.permute.xlu0 %1216
        %1218 = vrot.lane.b32.xlu0 %v1146, 64
        %v1219 = vpop.permute.xlu0 %1218
        %1220 = vrot.lane.b32.xlu0 %v1149, 64
        %v1221 = vpop.permute.xlu0 %1220
        %1222 = vrot.lane.b32.xlu0 %v1152, 64
        %v1223 = vpop.permute.xlu0 %1222
        %1224 = vrot.lane.b32.xlu0 %v1155, 64
        %v1225 = vpop.permute.xlu0 %1224
        %1226 = vrot.lane.b32.xlu0 %v1158, 64
        %v1227 = vpop.permute.xlu0 %1226
        %1228 = vrot.lane.b32.xlu0 %v1161, 64
        %v1229 = vpop.permute.xlu0 %1228
        %s1238 = scalar_lea.vmem [#allocation2], 128
        %1239 = vst.msk [vmem:[%s1238] sm:$0xff] %vm1164, %v1215
        %1240 = vst.msk [vmem:[%s1238 + $0x8] sm:$0xff] %vm1164, %v1217
        %1241 = vst.msk [vmem:[%s1238 + $0x10] sm:$0xff] %vm1164, %v1219
        %1242 = vst.msk [vmem:[%s1238 + $0x18] sm:$0xff] %vm1164, %v1221
        %1243 = vst.msk [vmem:[%s1238 + $0x20] sm:$0xff] %vm1164, %v1223
        %1244 = vst.msk [vmem:[%s1238 + $0x28] sm:$0xff] %vm1164, %v1225
        %1245 = vst.msk [vmem:[%s1238 + $0x30] sm:$0xff] %vm1164, %v1227
        %1246 = vst.msk [vmem:[%s1238 + $0x38] sm:$0xff] %vm1164, %v1229
        %1247 = vrot.lane.b32.xlu0 %v1140, 32
        %v1248 = vpop.permute.xlu0 %1247
        %1249 = vrot.lane.b32.xlu0 %v1143, 32
        %v1250 = vpop.permute.xlu0 %1249
        %1251 = vrot.lane.b32.xlu0 %v1146, 32
        %v1252 = vpop.permute.xlu0 %1251
        %1253 = vrot.lane.b32.xlu0 %v1149, 32
        %v1254 = vpop.permute.xlu0 %1253
        %1255 = vrot.lane.b32.xlu0 %v1152, 32
        %v1256 = vpop.permute.xlu0 %1255
        %1257 = vrot.lane.b32.xlu0 %v1155, 32
        %v1258 = vpop.permute.xlu0 %1257
        %1259 = vrot.lane.b32.xlu0 %v1158, 32
        %v1260 = vpop.permute.xlu0 %1259
        %1261 = vrot.lane.b32.xlu0 %v1161, 32
        %v1262 = vpop.permute.xlu0 %1261
        %s1271 = scalar_lea.vmem [#allocation2], 192
        %1272 = vst.msk [vmem:[%s1271] sm:$0xff] %vm1164, %v1248
        %1273 = vst.msk [vmem:[%s1271 + $0x8] sm:$0xff] %vm1164, %v1250
        %1274 = vst.msk [vmem:[%s1271 + $0x10] sm:$0xff] %vm1164, %v1252
        %1275 = vst.msk [vmem:[%s1271 + $0x18] sm:$0xff] %vm1164, %v1254
        %1276 = vst.msk [vmem:[%s1271 + $0x20] sm:$0xff] %vm1164, %v1256
        %1277 = vst.msk [vmem:[%s1271 + $0x28] sm:$0xff] %vm1164, %v1258
        %1278 = vst.msk [vmem:[%s1271 + $0x30] sm:$0xff] %vm1164, %v1260
        %1279 = vst.msk [vmem:[%s1271 + $0x38] sm:$0xff] %vm1164, %v1262
        %s1280 = scalar_lea.vmem [#allocation2], 256
        %1281 = vst.msk [vmem:[%s1280] sm:$0xff] %vm1164, %v1141
        %1282 = vst.msk [vmem:[%s1280 + $0x8] sm:$0xff] %vm1164, %v1144
        %1283 = vst.msk [vmem:[%s1280 + $0x10] sm:$0xff] %vm1164, %v1147
        %1284 = vst.msk [vmem:[%s1280 + $0x18] sm:$0xff] %vm1164, %v1150
        %1285 = vst.msk [vmem:[%s1280 + $0x20] sm:$0xff] %vm1164, %v1153
        %1286 = vst.msk [vmem:[%s1280 + $0x28] sm:$0xff] %vm1164, %v1156
        %1287 = vst.msk [vmem:[%s1280 + $0x30] sm:$0xff] %vm1164, %v1159
        %1288 = vst.msk [vmem:[%s1280 + $0x38] sm:$0xff] %vm1164, %v1162
        %1297 = vrot.lane.b32.xlu0 %v1141, 96
        %v1298 = vpop.permute.xlu0 %1297
        %1299 = vrot.lane.b32.xlu0 %v1144, 96
        %v1300 = vpop.permute.xlu0 %1299
        %1301 = vrot.lane.b32.xlu0 %v1147, 96
        %v1302 = vpop.permute.xlu0 %1301
        %1303 = vrot.lane.b32.xlu0 %v1150, 96
        %v1304 = vpop.permute.xlu0 %1303
        %1305 = vrot.lane.b32.xlu0 %v1153, 96
        %v1306 = vpop.permute.xlu0 %1305
        %1307 = vrot.lane.b32.xlu0 %v1156, 96
        %v1308 = vpop.permute.xlu0 %1307
        %1309 = vrot.lane.b32.xlu0 %v1159, 96
        %v1310 = vpop.permute.xlu0 %1309
        %1311 = vrot.lane.b32.xlu0 %v1162, 96
        %v1312 = vpop.permute.xlu0 %1311
        %s1321 = scalar_lea.vmem [#allocation2], 320
        %1322 = vst.msk [vmem:[%s1321] sm:$0xff] %vm1164, %v1298
        %1323 = vst.msk [vmem:[%s1321 + $0x8] sm:$0xff] %vm1164, %v1300
        %1324 = vst.msk [vmem:[%s1321 + $0x10] sm:$0xff] %vm1164, %v1302
        %1325 = vst.msk [vmem:[%s1321 + $0x18] sm:$0xff] %vm1164, %v1304
        %1326 = vst.msk [vmem:[%s1321 + $0x20] sm:$0xff] %vm1164, %v1306
        %1327 = vst.msk [vmem:[%s1321 + $0x28] sm:$0xff] %vm1164, %v1308
        %1328 = vst.msk [vmem:[%s1321 + $0x30] sm:$0xff] %vm1164, %v1310
        %1329 = vst.msk [vmem:[%s1321 + $0x38] sm:$0xff] %vm1164, %v1312
        %1330 = vrot.lane.b32.xlu0 %v1141, 64
        %v1331 = vpop.permute.xlu0 %1330
        %1332 = vrot.lane.b32.xlu0 %v1144, 64
        %v1333 = vpop.permute.xlu0 %1332
        %1334 = vrot.lane.b32.xlu0 %v1147, 64
        %v1335 = vpop.permute.xlu0 %1334
        %1336 = vrot.lane.b32.xlu0 %v1150, 64
        %v1337 = vpop.permute.xlu0 %1336
        %1338 = vrot.lane.b32.xlu0 %v1153, 64
        %v1339 = vpop.permute.xlu0 %1338
        %1340 = vrot.lane.b32.xlu0 %v1156, 64
        %v1341 = vpop.permute.xlu0 %1340
        %1342 = vrot.lane.b32.xlu0 %v1159, 64
        %v1343 = vpop.permute.xlu0 %1342
        %1344 = vrot.lane.b32.xlu0 %v1162, 64
        %v1345 = vpop.permute.xlu0 %1344
        %s1354 = scalar_lea.vmem [#allocation2], 384
        %1355 = vst.msk [vmem:[%s1354] sm:$0xff] %vm1164, %v1331
        %1356 = vst.msk [vmem:[%s1354 + $0x8] sm:$0xff] %vm1164, %v1333
        %1357 = vst.msk [vmem:[%s1354 + $0x10] sm:$0xff] %vm1164, %v1335
        %1358 = vst.msk [vmem:[%s1354 + $0x18] sm:$0xff] %vm1164, %v1337
        %1359 = vst.msk [vmem:[%s1354 + $0x20] sm:$0xff] %vm1164, %v1339
        %1360 = vst.msk [vmem:[%s1354 + $0x28] sm:$0xff] %vm1164, %v1341
        %1361 = vst.msk [vmem:[%s1354 + $0x30] sm:$0xff] %vm1164, %v1343
        %1362 = vst.msk [vmem:[%s1354 + $0x38] sm:$0xff] %vm1164, %v1345
        %1363 = vrot.lane.b32.xlu0 %v1141, 32
        %v1364 = vpop.permute.xlu0 %1363
        %1365 = vrot.lane.b32.xlu0 %v1144, 32
        %v1366 = vpop.permute.xlu0 %1365
        %1367 = vrot.lane.b32.xlu0 %v1147, 32
        %v1368 = vpop.permute.xlu0 %1367
        %1369 = vrot.lane.b32.xlu0 %v1150, 32
        %v1370 = vpop.permute.xlu0 %1369
        %1371 = vrot.lane.b32.xlu0 %v1153, 32
        %v1372 = vpop.permute.xlu0 %1371
        %1373 = vrot.lane.b32.xlu0 %v1156, 32
        %v1374 = vpop.permute.xlu0 %1373
        %1375 = vrot.lane.b32.xlu0 %v1159, 32
        %v1376 = vpop.permute.xlu0 %1375
        %1377 = vrot.lane.b32.xlu0 %v1162, 32
        %v1378 = vpop.permute.xlu0 %1377
        %s1387 = scalar_lea.vmem [#allocation2], 448
        %1388 = vst.msk [vmem:[%s1387] sm:$0xff] %vm1164, %v1364
        %1389 = vst.msk [vmem:[%s1387 + $0x8] sm:$0xff] %vm1164, %v1366
        %1390 = vst.msk [vmem:[%s1387 + $0x10] sm:$0xff] %vm1164, %v1368
        %1391 = vst.msk [vmem:[%s1387 + $0x18] sm:$0xff] %vm1164, %v1370
        %1392 = vst.msk [vmem:[%s1387 + $0x20] sm:$0xff] %vm1164, %v1372
        %1393 = vst.msk [vmem:[%s1387 + $0x28] sm:$0xff] %vm1164, %v1374
        %1394 = vst.msk [vmem:[%s1387 + $0x30] sm:$0xff] %vm1164, %v1376
        %1395 = vst.msk [vmem:[%s1387 + $0x38] sm:$0xff] %vm1164, %v1378
        %s1396 = scalar_lea.vmem [#allocation2], 512
        %1397 = vst.msk [vmem:[%s1396] sm:$0xff] %vm1164, %v1142
        %1398 = vst.msk [vmem:[%s1396 + $0x8] sm:$0xff] %vm1164, %v1145
        %1399 = vst.msk [vmem:[%s1396 + $0x10] sm:$0xff] %vm1164, %v1148
        %1400 = vst.msk [vmem:[%s1396 + $0x18] sm:$0xff] %vm1164, %v1151
        %1401 = vst.msk [vmem:[%s1396 + $0x20] sm:$0xff] %vm1164, %v1154
        %1402 = vst.msk [vmem:[%s1396 + $0x28] sm:$0xff] %vm1164, %v1157
        %1403 = vst.msk [vmem:[%s1396 + $0x30] sm:$0xff] %vm1164, %v1160
        %1404 = vst.msk [vmem:[%s1396 + $0x38] sm:$0xff] %vm1164, %v1163
        %1413 = vrot.lane.b32.xlu0 %v1142, 96
        %v1414 = vpop.permute.xlu0 %1413
        %1415 = vrot.lane.b32.xlu0 %v1145, 96
        %v1416 = vpop.permute.xlu0 %1415
        %1417 = vrot.lane.b32.xlu0 %v1148, 96
        %v1418 = vpop.permute.xlu0 %1417
        %1419 = vrot.lane.b32.xlu0 %v1151, 96
        %v1420 = vpop.permute.xlu0 %1419
        %1421 = vrot.lane.b32.xlu0 %v1154, 96
        %v1422 = vpop.permute.xlu0 %1421
        %1423 = vrot.lane.b32.xlu0 %v1157, 96
        %v1424 = vpop.permute.xlu0 %1423
        %1425 = vrot.lane.b32.xlu0 %v1160, 96
        %v1426 = vpop.permute.xlu0 %1425
        %1427 = vrot.lane.b32.xlu0 %v1163, 96
        %v1428 = vpop.permute.xlu0 %1427
        %s1437 = scalar_lea.vmem [#allocation2], 576
        %1438 = vst.msk [vmem:[%s1437] sm:$0xff] %vm1164, %v1414
        %1439 = vst.msk [vmem:[%s1437 + $0x8] sm:$0xff] %vm1164, %v1416
        %1440 = vst.msk [vmem:[%s1437 + $0x10] sm:$0xff] %vm1164, %v1418
        %1441 = vst.msk [vmem:[%s1437 + $0x18] sm:$0xff] %vm1164, %v1420
        %1442 = vst.msk [vmem:[%s1437 + $0x20] sm:$0xff] %vm1164, %v1422
        %1443 = vst.msk [vmem:[%s1437 + $0x28] sm:$0xff] %vm1164, %v1424
        %1444 = vst.msk [vmem:[%s1437 + $0x30] sm:$0xff] %vm1164, %v1426
        %1445 = vst.msk [vmem:[%s1437 + $0x38] sm:$0xff] %vm1164, %v1428
        %1446 = vrot.lane.b32.xlu0 %v1142, 64
        %v1447 = vpop.permute.xlu0 %1446
        %1448 = vrot.lane.b32.xlu0 %v1145, 64
        %v1449 = vpop.permute.xlu0 %1448
        %1450 = vrot.lane.b32.xlu0 %v1148, 64
        %v1451 = vpop.permute.xlu0 %1450
        %1452 = vrot.lane.b32.xlu0 %v1151, 64
        %v1453 = vpop.permute.xlu0 %1452
        %1454 = vrot.lane.b32.xlu0 %v1154, 64
        %v1455 = vpop.permute.xlu0 %1454
        %1456 = vrot.lane.b32.xlu0 %v1157, 64
        %v1457 = vpop.permute.xlu0 %1456
        %1458 = vrot.lane.b32.xlu0 %v1160, 64
        %v1459 = vpop.permute.xlu0 %1458
        %1460 = vrot.lane.b32.xlu0 %v1163, 64
        %v1461 = vpop.permute.xlu0 %1460
        %s1470 = scalar_lea.vmem [#allocation2], 640
        %1471 = vst.msk [vmem:[%s1470] sm:$0xff] %vm1164, %v1447
        %1472 = vst.msk [vmem:[%s1470 + $0x8] sm:$0xff] %vm1164, %v1449
        %1473 = vst.msk [vmem:[%s1470 + $0x10] sm:$0xff] %vm1164, %v1451
        %1474 = vst.msk [vmem:[%s1470 + $0x18] sm:$0xff] %vm1164, %v1453
        %1475 = vst.msk [vmem:[%s1470 + $0x20] sm:$0xff] %vm1164, %v1455
        %1476 = vst.msk [vmem:[%s1470 + $0x28] sm:$0xff] %vm1164, %v1457
        %1477 = vst.msk [vmem:[%s1470 + $0x30] sm:$0xff] %vm1164, %v1459
        %1478 = vst.msk [vmem:[%s1470 + $0x38] sm:$0xff] %vm1164, %v1461
        %1479 = vrot.lane.b32.xlu0 %v1142, 32
        %v1480 = vpop.permute.xlu0 %1479
        %1481 = vrot.lane.b32.xlu0 %v1145, 32
        %v1482 = vpop.permute.xlu0 %1481
        %1483 = vrot.lane.b32.xlu0 %v1148, 32
        %v1484 = vpop.permute.xlu0 %1483
        %1485 = vrot.lane.b32.xlu0 %v1151, 32
        %v1486 = vpop.permute.xlu0 %1485
        %1487 = vrot.lane.b32.xlu0 %v1154, 32
        %v1488 = vpop.permute.xlu0 %1487
        %1489 = vrot.lane.b32.xlu0 %v1157, 32
        %v1490 = vpop.permute.xlu0 %1489
        %1491 = vrot.lane.b32.xlu0 %v1160, 32
        %v1492 = vpop.permute.xlu0 %1491
        %1493 = vrot.lane.b32.xlu0 %v1163, 32
        %v1494 = vpop.permute.xlu0 %1493
        %s1503 = scalar_lea.vmem [#allocation2], 704
        %1504 = vst.msk [vmem:[%s1503] sm:$0xff] %vm1164, %v1480
        %1505 = vst.msk [vmem:[%s1503 + $0x8] sm:$0xff] %vm1164, %v1482
        %1506 = vst.msk [vmem:[%s1503 + $0x10] sm:$0xff] %vm1164, %v1484
        %1507 = vst.msk [vmem:[%s1503 + $0x18] sm:$0xff] %vm1164, %v1486
        %1508 = vst.msk [vmem:[%s1503 + $0x20] sm:$0xff] %vm1164, %v1488
        %1509 = vst.msk [vmem:[%s1503 + $0x28] sm:$0xff] %vm1164, %v1490
        %1510 = vst.msk [vmem:[%s1503 + $0x30] sm:$0xff] %vm1164, %v1492
        %1511 = vst.msk [vmem:[%s1503 + $0x38] sm:$0xff] %vm1164, %v1494
        %v1512 = vld [vmem:[%s5] sm:$0x1]
        %v1514 = vlaneseq
        %v1515 = vshrl.u32 %v1514, 7
        %v1516 = vsub.s32 0, %v1515
        %v1517 = vrot.slane %v1512, %v1516
        %v1519 = vadd.f32 %v491, %v1517
        %v1520 = vadd.f32 %v492, %v1517
        %v1521 = vadd.f32 %v493, %v1517
        %v1522 = vadd.f32 %v494, %v1517
        %v1523 = vadd.f32 %v495, %v1517
        %v1524 = vadd.f32 %v496, %v1517
        %v1525 = vadd.f32 %v497, %v1517
        %v1526 = vadd.f32 %v498, %v1517
        %v1527 = vadd.f32 %v499, %v1517
        %v1528 = vadd.f32 %v500, %v1517
        %v1529 = vadd.f32 %v501, %v1517
        %v1530 = vadd.f32 %v502, %v1517
        %v1531 = vadd.f32 %v503, %v1517
        %v1532 = vadd.f32 %v504, %v1517
        %v1533 = vadd.f32 %v505, %v1517
        %v1534 = vadd.f32 %v506, %v1517
        %1535 = vst [vmem:[#allocation3] sm:$0xff] %v1519
        %1536 = vst [vmem:[#allocation3 + $0x8] sm:$0xff] %v1520
        %1537 = vst [vmem:[#allocation3 + $0x10] sm:$0xff] %v1521
        %1538 = vst [vmem:[#allocation3 + $0x18] sm:$0xff] %v1522
        %1539 = vst [vmem:[#allocation3 + $0x20] sm:$0xff] %v1523
        %1540 = vst [vmem:[#allocation3 + $0x28] sm:$0xff] %v1524
        %1541 = vst [vmem:[#allocation3 + $0x30] sm:$0xff] %v1525
        %1542 = vst [vmem:[#allocation3 + $0x38] sm:$0xff] %v1526
        %1543 = vst [vmem:[#allocation3 + $0x40] sm:$0xff] %v1527
        %1544 = vst [vmem:[#allocation3 + $0x48] sm:$0xff] %v1528
        %1545 = vst [vmem:[#allocation3 + $0x50] sm:$0xff] %v1529
        %1546 = vst [vmem:[#allocation3 + $0x58] sm:$0xff] %v1530
        %1547 = vst [vmem:[#allocation3 + $0x60] sm:$0xff] %v1531
        %1548 = vst [vmem:[#allocation3 + $0x68] sm:$0xff] %v1532
        %1549 = vst [vmem:[#allocation3 + $0x70] sm:$0xff] %v1533
        %1550 = vst [vmem:[#allocation3 + $0x78] sm:$0xff] %v1534
        %v1551 = vlaneseq
        %v1552 = vshrl.u32 %v1551, 7
        %v1553 = vadd.s32 %v1552, 8
        %v1554 = vadd.s32 %v1552, 16
        %v1555 = vadd.s32 %v1552, 24
        %v1556 = vadd.s32 %v1552, 32
        %v1557 = vadd.s32 %v1552, 40
        %v1558 = vadd.s32 %v1552, 48
        %v1559 = vadd.s32 %v1552, 56
        %v1560 = vadd.s32 %v1552, 64
        %v1561 = vadd.s32 %v1552, 72
        %v1562 = vadd.s32 %v1552, 80
        %v1563 = vadd.s32 %v1552, 88
        %v1564 = vadd.s32 %v1552, 96
        %v1565 = vadd.s32 %v1552, 104
        %v1566 = vadd.s32 %v1552, 112
        %v1567 = vadd.s32 %v1552, 120
        %v1568 = vlaneseq
        %v1569 = vand.u32 %v1568, 127
        %vm1570 = vcmp.ge.s32.totalorder %v1552, %v1569
        %vm1571 = vcmp.ge.s32.totalorder %v1553, %v1569
        %vm1572 = vcmp.ge.s32.totalorder %v1554, %v1569
        %vm1573 = vcmp.ge.s32.totalorder %v1555, %v1569
        %vm1574 = vcmp.ge.s32.totalorder %v1556, %v1569
        %vm1575 = vcmp.ge.s32.totalorder %v1557, %v1569
        %vm1576 = vcmp.ge.s32.totalorder %v1558, %v1569
        %vm1577 = vcmp.ge.s32.totalorder %v1559, %v1569
        %vm1578 = vcmp.ge.s32.totalorder %v1560, %v1569
        %vm1579 = vcmp.ge.s32.totalorder %v1561, %v1569
        %vm1580 = vcmp.ge.s32.totalorder %v1562, %v1569
        %vm1581 = vcmp.ge.s32.totalorder %v1563, %v1569
        %vm1582 = vcmp.ge.s32.totalorder %v1564, %v1569
        %vm1583 = vcmp.ge.s32.totalorder %v1565, %v1569
        %vm1584 = vcmp.ge.s32.totalorder %v1566, %v1569
        %vm1585 = vcmp.ge.s32.totalorder %v1567, %v1569
        %v1586 = vld [vmem:[#allocation2] sm:$0xff]
        %v1587 = vld [vmem:[#allocation2 + $0x8] sm:$0xff]
        %v1588 = vld [vmem:[#allocation2 + $0x10] sm:$0xff]
        %v1589 = vld [vmem:[#allocation2 + $0x18] sm:$0xff]
        %v1590 = vld [vmem:[#allocation2 + $0x20] sm:$0xff]
        %v1591 = vld [vmem:[#allocation2 + $0x28] sm:$0xff]
        %v1592 = vld [vmem:[#allocation2 + $0x30] sm:$0xff]
        %v1593 = vld [vmem:[#allocation2 + $0x38] sm:$0xff]
        %v1594 = vld [vmem:[%s1280] sm:$0xff]
        %v1595 = vld [vmem:[%s1280 + $0x8] sm:$0xff]
        %v1596 = vld [vmem:[%s1280 + $0x10] sm:$0xff]
        %v1597 = vld [vmem:[%s1280 + $0x18] sm:$0xff]
        %v1598 = vld [vmem:[%s1280 + $0x20] sm:$0xff]
        %v1599 = vld [vmem:[%s1280 + $0x28] sm:$0xff]
        %v1600 = vld [vmem:[%s1280 + $0x30] sm:$0xff]
        %v1601 = vld [vmem:[%s1280 + $0x38] sm:$0xff]
        %v1602 = vld [vmem:[%s1396] sm:$0xff]
        %v1603 = vld [vmem:[%s1396 + $0x8] sm:$0xff]
        %v1604 = vld [vmem:[%s1396 + $0x10] sm:$0xff]
        %v1605 = vld [vmem:[%s1396 + $0x18] sm:$0xff]
        %v1606 = vld [vmem:[%s1396 + $0x20] sm:$0xff]
        %v1607 = vld [vmem:[%s1396 + $0x28] sm:$0xff]
        %v1608 = vld [vmem:[%s1396 + $0x30] sm:$0xff]
        %v1609 = vld [vmem:[%s1396 + $0x38] sm:$0xff]
        %v1611 = vsel %vm1164, %v1586, 0
        %v1614 = vsel %vm1164, %v1587, 0
        %v1617 = vsel %vm1164, %v1588, 0
        %v1620 = vsel %vm1164, %v1589, 0
        %v1623 = vsel %vm1164, %v1590, 0
        %v1626 = vsel %vm1164, %v1591, 0
        %v1629 = vsel %vm1164, %v1592, 0
        %v1632 = vsel %vm1164, %v1593, 0
        %v1635 = vsel %vm1164, %v1594, 0
        %v1638 = vsel %vm1164, %v1595, 0
        %v1641 = vsel %vm1164, %v1596, 0
        %v1644 = vsel %vm1164, %v1597, 0
        %v1647 = vsel %vm1164, %v1598, 0
        %v1650 = vsel %vm1164, %v1599, 0
        %v1653 = vsel %vm1164, %v1600, 0
        %v1656 = vsel %vm1164, %v1601, 0
        %1658 = vmatprep.subr.bf16.mxu0 0
        %1659 = vmatpush1.bf16.xpose.msra.mxu0 %v1635
        %1660 = vmatprep.subr.bf16.mxu0 0
        %1661 = vmatpush1.bf16.xpose.msra.mxu0 %v1638
        %1662 = vmatprep.subr.bf16.mxu0 0
        %1663 = vmatpush1.bf16.xpose.msra.mxu0 %v1641
        %1664 = vmatprep.subr.bf16.mxu0 0
        %1665 = vmatpush1.bf16.xpose.msra.mxu0 %v1644
        %1666 = vmatprep.subr.bf16.mxu0 0
        %1667 = vmatpush1.bf16.xpose.msra.mxu0 %v1647
        %1668 = vmatprep.subr.bf16.mxu0 0
        %1669 = vmatpush1.bf16.xpose.msra.mxu0 %v1650
        %1670 = vmatprep.subr.bf16.mxu0 0
        %1671 = vmatpush1.bf16.xpose.msra.mxu0 %v1653
        %1672 = vmatprep.subr.bf16.mxu0 0
        %1673 = vmatpush1.bf16.xpose.msra.mxu0 %v1656
        %1674 = vmatprep.subr.bf16.mxu0 0
        %1675 = vmatpush1.bf16.xpose.msra.mxu0 0
        %1676 = vmatprep.subr.bf16.mxu0 0
        %1677 = vmatpush1.bf16.xpose.msra.mxu0 0
        %1678 = vmatprep.subr.bf16.mxu0 0
        %1679 = vmatpush1.bf16.xpose.msra.mxu0 0
        %1680 = vmatprep.subr.bf16.mxu0 0
        %1681 = vmatpush1.bf16.xpose.msra.mxu0 0
        %1682 = vmatprep.subr.bf16.mxu0 0
        %1683 = vmatpush1.bf16.xpose.msra.mxu0 0
        %1684 = vmatprep.subr.bf16.mxu0 0
        %1685 = vmatpush1.bf16.xpose.msra.mxu0 0
        %1686 = vmatprep.subr.bf16.mxu0 0
        %1687 = vmatpush1.bf16.xpose.msra.mxu0 0
        %1688 = vmatprep.subr.bf16.mxu0 0
        %1689 = vmatpush1.bf16.xpose.msra.mxu0 0
        %1690 = vmatprep.mubr.bf16.mxu0 0
        %1691 = vmatmul.mubr.bf16.gmra.mrb[0].mxu0 %v1611
        %v1692 = vpop.f32.mrb[0].mxu0
        %v1693 = vadd.f32 0.0, %v1692
        %v1694 = vpop.f32.mrb[0].mxu0
        %v1695 = vpop.f32.mrb[0].mxu0
        %v1696 = vadd.f32 0.0, %v1695
        %v1697 = vpop.f32.mrb[0].mxu0
        %1698 = vmatprep.mubr.bf16.mxu0 0
        %1699 = vmatmul.mubr.bf16.gmra.mrb[0].mxu0 %v1614
        %v1700 = vpop.f32.mrb[0].mxu0
        %v1701 = vadd.f32 0.0, %v1700
        %v1702 = vpop.f32.mrb[0].mxu0
        %v1703 = vpop.f32.mrb[0].mxu0
        %v1704 = vadd.f32 0.0, %v1703
        %v1705 = vpop.f32.mrb[0].mxu0
        %1706 = vmatprep.mubr.bf16.mxu0 0
        %1707 = vmatmul.mubr.bf16.gmra.mrb[0].mxu0 %v1617
        %v1708 = vpop.f32.mrb[0].mxu0
        %v1709 = vadd.f32 0.0, %v1708
        %v1710 = vpop.f32.mrb[0].mxu0
        %v1711 = vpop.f32.mrb[0].mxu0
        %v1712 = vadd.f32 0.0, %v1711
        %v1713 = vpop.f32.mrb[0].mxu0
        %1714 = vmatprep.mubr.bf16.mxu0 0
        %1715 = vmatmul.mubr.bf16.gmra.mrb[0].mxu0 %v1620
        %v1716 = vpop.f32.mrb[0].mxu0
        %v1717 = vadd.f32 0.0, %v1716
        %v1718 = vpop.f32.mrb[0].mxu0
        %v1719 = vpop.f32.mrb[0].mxu0
        %v1720 = vadd.f32 0.0, %v1719
        %v1721 = vpop.f32.mrb[0].mxu0
        %1722 = vmatprep.mubr.bf16.mxu0 0
        %1723 = vmatmul.mubr.bf16.gmra.mrb[0].mxu0 %v1623
        %v1724 = vpop.f32.mrb[0].mxu0
        %v1725 = vadd.f32 0.0, %v1724
        %v1726 = vpop.f32.mrb[0].mxu0
        %v1727 = vpop.f32.mrb[0].mxu0
        %v1728 = vadd.f32 0.0, %v1727
        %v1729 = vpop.f32.mrb[0].mxu0
        %1730 = vmatprep.mubr.bf16.mxu0 0
        %1731 = vmatmul.mubr.bf16.gmra.mrb[0].mxu0 %v1626
        %v1732 = vpop.f32.mrb[0].mxu0
        %v1733 = vadd.f32 0.0, %v1732
        %v1734 = vpop.f32.mrb[0].mxu0
        %v1735 = vpop.f32.mrb[0].mxu0
        %v1736 = vadd.f32 0.0, %v1735
        %v1737 = vpop.f32.mrb[0].mxu0
        %1738 = vmatprep.mubr.bf16.mxu0 0
        %1739 = vmatmul.mubr.bf16.gmra.mrb[0].mxu0 %v1629
        %v1740 = vpop.f32.mrb[0].mxu0
        %v1741 = vadd.f32 0.0, %v1740
        %v1742 = vpop.f32.mrb[0].mxu0
        %v1743 = vpop.f32.mrb[0].mxu0
        %v1744 = vadd.f32 0.0, %v1743
        %v1745 = vpop.f32.mrb[0].mxu0
        %1746 = vmatprep.mubr.bf16.mxu0 0
        %1747 = vmatmul.mubr.bf16.gmra.mrb[0].mxu0 %v1632
        %v1748 = vpop.f32.mrb[0].mxu0
        %v1749 = vadd.f32 0.0, %v1748
        %v1750 = vpop.f32.mrb[0].mxu0
        %v1751 = vpop.f32.mrb[0].mxu0
        %v1752 = vadd.f32 0.0, %v1751
        %v1753 = vpop.f32.mrb[0].mxu0
        %1754 = vdwg.mxu0
        %v1755 = vsel %vm1570, %v1693, -1e+30
        %v1756 = vsel %vm1571, %v1696, -1e+30
        %v1757 = vsel %vm1572, %v1701, -1e+30
        %v1758 = vsel %vm1573, %v1704, -1e+30
        %v1759 = vsel %vm1574, %v1709, -1e+30
        %v1760 = vsel %vm1575, %v1712, -1e+30
        %v1761 = vsel %vm1576, %v1717, -1e+30
        %v1762 = vsel %vm1577, %v1720, -1e+30
        %v1763 = vsel %vm1578, %v1725, -1e+30
        %v1764 = vsel %vm1579, %v1728, -1e+30
        %v1765 = vsel %vm1580, %v1733, -1e+30
        %v1766 = vsel %vm1581, %v1736, -1e+30
        %v1767 = vsel %vm1582, %v1741, -1e+30
        %v1768 = vsel %vm1583, %v1744, -1e+30
        %v1769 = vsel %vm1584, %v1749, -1e+30
        %v1770 = vsel %vm1585, %v1752, -1e+30
        %1771 = vmax.xlane.f32.xlu0 %v1755
        %v1772 = vpop.xlane.xlu0 %1771
        %1773 = vmax.xlane.f32.xlu0 %v1756
        %v1774 = vpop.xlane.xlu0 %1773
        %1775 = vmax.xlane.f32.xlu0 %v1757
        %v1776 = vpop.xlane.xlu0 %1775
        %1777 = vmax.xlane.f32.xlu0 %v1758
        %v1778 = vpop.xlane.xlu0 %1777
        %1779 = vmax.xlane.f32.xlu0 %v1759
        %v1780 = vpop.xlane.xlu0 %1779
        %1781 = vmax.xlane.f32.xlu0 %v1760
        %v1782 = vpop.xlane.xlu0 %1781
        %1783 = vmax.xlane.f32.xlu0 %v1761
        %v1784 = vpop.xlane.xlu0 %1783
        %1785 = vmax.xlane.f32.xlu0 %v1762
        %v1786 = vpop.xlane.xlu0 %1785
        %1787 = vmax.xlane.f32.xlu0 %v1763
        %v1788 = vpop.xlane.xlu0 %1787
        %1789 = vmax.xlane.f32.xlu0 %v1764
        %v1790 = vpop.xlane.xlu0 %1789
        %1791 = vmax.xlane.f32.xlu0 %v1765
        %v1792 = vpop.xlane.xlu0 %1791
        %1793 = vmax.xlane.f32.xlu0 %v1766
        %v1794 = vpop.xlane.xlu0 %1793
        %1795 = vmax.xlane.f32.xlu0 %v1767
        %v1796 = vpop.xlane.xlu0 %1795
        %1797 = vmax.xlane.f32.xlu0 %v1768
        %v1798 = vpop.xlane.xlu0 %1797
        %1799 = vmax.xlane.f32.xlu0 %v1769
        %v1800 = vpop.xlane.xlu0 %1799
        %1801 = vmax.xlane.f32.xlu0 %v1770
        %v1802 = vpop.xlane.xlu0 %1801
        %v1803 = vsub.f32 %v1755, %v1772
        %v1804 = vsub.f32 %v1756, %v1774
        %v1805 = vsub.f32 %v1757, %v1776
        %v1806 = vsub.f32 %v1758, %v1778
        %v1807 = vsub.f32 %v1759, %v1780
        %v1808 = vsub.f32 %v1760, %v1782
        %v1809 = vsub.f32 %v1761, %v1784
        %v1810 = vsub.f32 %v1762, %v1786
        %v1811 = vsub.f32 %v1763, %v1788
        %v1812 = vsub.f32 %v1764, %v1790
        %v1813 = vsub.f32 %v1765, %v1792
        %v1814 = vsub.f32 %v1766, %v1794
        %v1815 = vsub.f32 %v1767, %v1796
        %v1816 = vsub.f32 %v1768, %v1798
        %v1817 = vsub.f32 %v1769, %v1800
        %v1818 = vsub.f32 %v1770, %v1802
        %v1819 = vmul.f32 %v1803, 1.442695
        %v1820 = vpow.pop %v1819
        %v1821 = vmul.f32 %v1804, 1.442695
        %v1822 = vpow.pop %v1821
        %v1823 = vmul.f32 %v1805, 1.442695
        %v1824 = vpow.pop %v1823
        %v1825 = vmul.f32 %v1806, 1.442695
        %v1826 = vpow.pop %v1825
        %v1827 = vmul.f32 %v1807, 1.442695
        %v1828 = vpow.pop %v1827
        %v1829 = vmul.f32 %v1808, 1.442695
        %v1830 = vpow.pop %v1829
        %v1831 = vmul.f32 %v1809, 1.442695
        %v1832 = vpow.pop %v1831
        %v1833 = vmul.f32 %v1810, 1.442695
        %v1834 = vpow.pop %v1833
        %v1835 = vmul.f32 %v1811, 1.442695
        %v1836 = vpow.pop %v1835
        %v1837 = vmul.f32 %v1812, 1.442695
        %v1838 = vpow.pop %v1837
        %v1839 = vmul.f32 %v1813, 1.442695
        %v1840 = vpow.pop %v1839
        %v1841 = vmul.f32 %v1814, 1.442695
        %v1842 = vpow.pop %v1841
        %v1843 = vmul.f32 %v1815, 1.442695
        %v1844 = vpow.pop %v1843
        %v1845 = vmul.f32 %v1816, 1.442695
        %v1846 = vpow.pop %v1845
        %v1847 = vmul.f32 %v1817, 1.442695
        %v1848 = vpow.pop %v1847
        %v1849 = vmul.f32 %v1818, 1.442695
        %v1850 = vpow.pop %v1849
        %1851 = vadd.xlane.f32.xlu0 %v1820
        %v1852 = vpop.xlane.xlu0 %1851
        %1853 = vadd.xlane.f32.xlu0 %v1822
        %v1854 = vpop.xlane.xlu0 %1853
        %1855 = vadd.xlane.f32.xlu0 %v1824
        %v1856 = vpop.xlane.xlu0 %1855
        %1857 = vadd.xlane.f32.xlu0 %v1826
        %v1858 = vpop.xlane.xlu0 %1857
        %1859 = vadd.xlane.f32.xlu0 %v1828
        %v1860 = vpop.xlane.xlu0 %1859
        %1861 = vadd.xlane.f32.xlu0 %v1830
        %v1862 = vpop.xlane.xlu0 %1861
        %1863 = vadd.xlane.f32.xlu0 %v1832
        %v1864 = vpop.xlane.xlu0 %1863
        %1865 = vadd.xlane.f32.xlu0 %v1834
        %v1866 = vpop.xlane.xlu0 %1865
        %1867 = vadd.xlane.f32.xlu0 %v1836
        %v1868 = vpop.xlane.xlu0 %1867
        %1869 = vadd.xlane.f32.xlu0 %v1838
        %v1870 = vpop.xlane.xlu0 %1869
        %1871 = vadd.xlane.f32.xlu0 %v1840
        %v1872 = vpop.xlane.xlu0 %1871
        %1873 = vadd.xlane.f32.xlu0 %v1842
        %v1874 = vpop.xlane.xlu0 %1873
        %1875 = vadd.xlane.f32.xlu0 %v1844
        %v1876 = vpop.xlane.xlu0 %1875
        %1877 = vadd.xlane.f32.xlu0 %v1846
        %v1878 = vpop.xlane.xlu0 %1877
        %1879 = vadd.xlane.f32.xlu0 %v1848
        %v1880 = vpop.xlane.xlu0 %1879
        %1881 = vadd.xlane.f32.xlu0 %v1850
        %v1882 = vpop.xlane.xlu0 %1881
        %v1883 = vpack.c.bf16 %v1822, %v1820
        %v1884 = vpack.c.bf16 %v1826, %v1824
        %v1885 = vpack.c.bf16 %v1830, %v1828
        %v1886 = vpack.c.bf16 %v1834, %v1832
        %v1887 = vpack.c.bf16 %v1838, %v1836
        %v1888 = vpack.c.bf16 %v1842, %v1840
        %v1889 = vpack.c.bf16 %v1846, %v1844
        %v1890 = vpack.c.bf16 %v1850, %v1848
        %1891 = vmatprep.subr.bf16.mxu0 0
        %1892 = vmatpush1.bf16.msra.mxu0 %v1602
        %1893 = vmatprep.subr.bf16.mxu0 0
        %1894 = vmatpush1.bf16.msra.mxu0 %v1603
        %1895 = vmatprep.subr.bf16.mxu0 0
        %1896 = vmatpush1.bf16.msra.mxu0 %v1604
        %1897 = vmatprep.subr.bf16.mxu0 0
        %1898 = vmatpush1.bf16.msra.mxu0 %v1605
        %1899 = vmatprep.subr.bf16.mxu0 0
        %1900 = vmatpush1.bf16.msra.mxu0 %v1606
        %1901 = vmatprep.subr.bf16.mxu0 0
        %1902 = vmatpush1.bf16.msra.mxu0 %v1607
        %1903 = vmatprep.subr.bf16.mxu0 0
        %1904 = vmatpush1.bf16.msra.mxu0 %v1608
        %1905 = vmatprep.subr.bf16.mxu0 0
        %1906 = vmatpush1.bf16.msra.mxu0 %v1609
        %1907 = vmatprep.subr.bf16.mxu0 0
        %1908 = vmatpush1.bf16.msra.mxu0 0
        %1909 = vmatprep.subr.bf16.mxu0 0
        %1910 = vmatpush1.bf16.msra.mxu0 0
        %1911 = vmatprep.subr.bf16.mxu0 0
        %1912 = vmatpush1.bf16.msra.mxu0 0
        %1913 = vmatprep.subr.bf16.mxu0 0
        %1914 = vmatpush1.bf16.msra.mxu0 0
        %1915 = vmatprep.subr.bf16.mxu0 0
        %1916 = vmatpush1.bf16.msra.mxu0 0
        %1917 = vmatprep.subr.bf16.mxu0 0
        %1918 = vmatpush1.bf16.msra.mxu0 0
        %1919 = vmatprep.subr.bf16.mxu0 0
        %1920 = vmatpush1.bf16.msra.mxu0 0
        %1921 = vmatprep.subr.bf16.mxu0 0
        %1922 = vmatpush1.bf16.msra.mxu0 0
        %1923 = vmatprep.mubr.bf16.mxu0 0
        %1924 = vmatmul.mubr.bf16.gmra.mrb[0].mxu0 %v1883
        %v1925 = vpop.f32.mrb[0].mxu0
        %v1926 = vadd.f32 0.0, %v1925
        %v1927 = vpop.f32.mrb[0].mxu0
        %v1928 = vpop.f32.mrb[0].mxu0
        %v1929 = vadd.f32 0.0, %v1928
        %v1930 = vpop.f32.mrb[0].mxu0
        %1931 = vmatprep.mubr.bf16.mxu0 0
        %1932 = vmatmul.mubr.bf16.gmra.mrb[0].mxu0 %v1884
        %v1933 = vpop.f32.mrb[0].mxu0
        %v1934 = vadd.f32 0.0, %v1933
        %v1935 = vpop.f32.mrb[0].mxu0
        %v1936 = vpop.f32.mrb[0].mxu0
        %v1937 = vadd.f32 0.0, %v1936
        %v1938 = vpop.f32.mrb[0].mxu0
        %1939 = vmatprep.mubr.bf16.mxu0 0
        %1940 = vmatmul.mubr.bf16.gmra.mrb[0].mxu0 %v1885
        %v1941 = vpop.f32.mrb[0].mxu0
        %v1942 = vadd.f32 0.0, %v1941
        %v1943 = vpop.f32.mrb[0].mxu0
        %v1944 = vpop.f32.mrb[0].mxu0
        %v1945 = vadd.f32 0.0, %v1944
        %v1946 = vpop.f32.mrb[0].mxu0
        %1947 = vmatprep.mubr.bf16.mxu0 0
        %1948 = vmatmul.mubr.bf16.gmra.mrb[0].mxu0 %v1886
        %v1949 = vpop.f32.mrb[0].mxu0
        %v1950 = vadd.f32 0.0, %v1949
        %v1951 = vpop.f32.mrb[0].mxu0
        %v1952 = vpop.f32.mrb[0].mxu0
        %v1953 = vadd.f32 0.0, %v1952
        %v1954 = vpop.f32.mrb[0].mxu0
        %1955 = vmatprep.mubr.bf16.mxu0 0
        %1956 = vmatmul.mubr.bf16.gmra.mrb[0].mxu0 %v1887
        %v1957 = vpop.f32.mrb[0].mxu0
        %v1958 = vadd.f32 0.0, %v1957
        %v1959 = vpop.f32.mrb[0].mxu0
        %v1960 = vpop.f32.mrb[0].mxu0
        %v1961 = vadd.f32 0.0, %v1960
        %v1962 = vpop.f32.mrb[0].mxu0
        %1963 = vmatprep.mubr.bf16.mxu0 0
        %1964 = vmatmul.mubr.bf16.gmra.mrb[0].mxu0 %v1888
        %v1965 = vpop.f32.mrb[0].mxu0
        %v1966 = vadd.f32 0.0, %v1965
        %v1967 = vpop.f32.mrb[0].mxu0
        %v1968 = vpop.f32.mrb[0].mxu0
        %v1969 = vadd.f32 0.0, %v1968
        %v1970 = vpop.f32.mrb[0].mxu0
        %1971 = vmatprep.mubr.bf16.mxu0 0
        %1972 = vmatmul.mubr.bf16.gmra.mrb[0].mxu0 %v1889
        %v1973 = vpop.f32.mrb[0].mxu0
        %v1974 = vadd.f32 0.0, %v1973
        %v1975 = vpop.f32.mrb[0].mxu0
        %v1976 = vpop.f32.mrb[0].mxu0
        %v1977 = vadd.f32 0.0, %v1976
        %v1978 = vpop.f32.mrb[0].mxu0
        %1979 = vmatprep.mubr.bf16.mxu0 0
        %1980 = vmatmul.mubr.bf16.gmra.mrb[0].mxu0 %v1890
        %v1981 = vpop.f32.mrb[0].mxu0
        %v1982 = vadd.f32 0.0, %v1981
        %v1983 = vpop.f32.mrb[0].mxu0
        %v1984 = vpop.f32.mrb[0].mxu0
        %v1985 = vadd.f32 0.0, %v1984
        %v1986 = vpop.f32.mrb[0].mxu0
        %1987 = vdwg.mxu0
        %v1988 = vrcp.pop %v1852
        %v1989 = vrcp.pop %v1854
        %v1990 = vrcp.pop %v1856
        %v1991 = vrcp.pop %v1858
        %v1992 = vrcp.pop %v1860
        %v1993 = vrcp.pop %v1862
        %v1994 = vrcp.pop %v1864
        %v1995 = vrcp.pop %v1866
        %v1996 = vrcp.pop %v1868
        %v1997 = vrcp.pop %v1870
        %v1998 = vrcp.pop %v1872
        %v1999 = vrcp.pop %v1874
        %v2000 = vrcp.pop %v1876
        %v2001 = vrcp.pop %v1878
        %v2002 = vrcp.pop %v1880
        %v2003 = vrcp.pop %v1882
        %v2004 = vmul.f32 %v1926, %v1988
        %v2005 = vmul.f32 %v1929, %v1989
        %v2006 = vmul.f32 %v1934, %v1990
        %v2007 = vmul.f32 %v1937, %v1991
        %v2008 = vmul.f32 %v1942, %v1992
        %v2009 = vmul.f32 %v1945, %v1993
        %v2010 = vmul.f32 %v1950, %v1994
        %v2011 = vmul.f32 %v1953, %v1995
        %v2012 = vmul.f32 %v1958, %v1996
        %v2013 = vmul.f32 %v1961, %v1997
        %v2014 = vmul.f32 %v1966, %v1998
        %v2015 = vmul.f32 %v1969, %v1999
        %v2016 = vmul.f32 %v1974, %v2000
        %v2017 = vmul.f32 %v1977, %v2001
        %v2018 = vmul.f32 %v1982, %v2002
        %v2019 = vmul.f32 %v1985, %v2003
        %v2020 = vld [vmem:[#allocation3] sm:$0xff]
        %v2021 = vld [vmem:[#allocation3 + $0x8] sm:$0xff]
        %v2022 = vld [vmem:[#allocation3 + $0x10] sm:$0xff]
        %v2023 = vld [vmem:[#allocation3 + $0x18] sm:$0xff]
        %v2024 = vld [vmem:[#allocation3 + $0x20] sm:$0xff]
        %v2025 = vld [vmem:[#allocation3 + $0x28] sm:$0xff]
        %v2026 = vld [vmem:[#allocation3 + $0x30] sm:$0xff]
        %v2027 = vld [vmem:[#allocation3 + $0x38] sm:$0xff]
        %v2028 = vld [vmem:[#allocation3 + $0x40] sm:$0xff]
        %v2029 = vld [vmem:[#allocation3 + $0x48] sm:$0xff]
        %v2030 = vld [vmem:[#allocation3 + $0x50] sm:$0xff]
        %v2031 = vld [vmem:[#allocation3 + $0x58] sm:$0xff]
        %v2032 = vld [vmem:[#allocation3 + $0x60] sm:$0xff]
        %v2033 = vld [vmem:[#allocation3 + $0x68] sm:$0xff]
        %v2034 = vld [vmem:[#allocation3 + $0x70] sm:$0xff]
        %v2035 = vld [vmem:[#allocation3 + $0x78] sm:$0xff]
        %v2036 = vpack.c.bf16 %v2005, %v2004
        %v2037 = vpack.c.bf16 %v2007, %v2006
        %v2038 = vpack.c.bf16 %v2009, %v2008
        %v2039 = vpack.c.bf16 %v2011, %v2010
        %v2040 = vpack.c.bf16 %v2013, %v2012
        %v2041 = vpack.c.bf16 %v2015, %v2014
        %v2042 = vpack.c.bf16 %v2017, %v2016
        %v2043 = vpack.c.bf16 %v2019, %v2018
        %v2044 = vld [vmem:[#allocation9] sm:$0xf]
        %v2045 = vld [vmem:[#allocation9 + $0x4] sm:$0xf]
        %v2046 = vld [vmem:[#allocation9 + $0x8] sm:$0xf]
        %v2047 = vld [vmem:[#allocation9 + $0xc] sm:$0xf]
        %v2052 = vunpack.c.l.b16 %v2044
        %v2053 = vunpack.c.l.b16 %v2045
        %v2054 = vunpack.c.l.b16 %v2046
        %v2055 = vunpack.c.l.b16 %v2047
        %v2056 = vpack.c.b16 %v2053, %v2052
        %v2057 = vpack.c.b16 %v2055, %v2054
        %v2061 = vsel %vm1164, %v2036, 0
        %v2064 = vsel %vm1164, %v2037, 0
        %v2067 = vsel %vm1164, %v2038, 0
        %v2070 = vsel %vm1164, %v2039, 0
        %v2073 = vsel %vm1164, %v2040, 0
        %v2076 = vsel %vm1164, %v2041, 0
        %v2079 = vsel %vm1164, %v2042, 0
        %v2082 = vsel %vm1164, %v2043, 0
        %2084 = vmatprep.subr.bf16.mxu0 0
        %2085 = vmatpush1.bf16.msra.mxu0 %v2056
        %2086 = vmatprep.subr.bf16.mxu0 0
        %2087 = vmatpush1.bf16.msra.mxu0 %v2057
        %2088 = vmatprep.subr.bf16.mxu0 0
        %2089 = vmatpush1.bf16.msra.mxu0 0
        %2090 = vmatprep.subr.bf16.mxu0 0
        %2091 = vmatpush1.bf16.msra.mxu0 0
        %2092 = vmatprep.subr.bf16.mxu0 0
        %2093 = vmatpush1.bf16.msra.mxu0 0
        %2094 = vmatprep.subr.bf16.mxu0 0
        %2095 = vmatpush1.bf16.msra.mxu0 0
        %2096 = vmatprep.subr.bf16.mxu0 0
        %2097 = vmatpush1.bf16.msra.mxu0 0
        %2098 = vmatprep.subr.bf16.mxu0 0
        %2099 = vmatpush1.bf16.msra.mxu0 0
        %2100 = vmatprep.subr.bf16.mxu0 0
        %2101 = vmatpush1.bf16.msra.mxu0 0
        %2102 = vmatprep.subr.bf16.mxu0 0
        %2103 = vmatpush1.bf16.msra.mxu0 0
        %2104 = vmatprep.subr.bf16.mxu0 0
        %2105 = vmatpush1.bf16.msra.mxu0 0
        %2106 = vmatprep.subr.bf16.mxu0 0
        %2107 = vmatpush1.bf16.msra.mxu0 0
        %2108 = vmatprep.subr.bf16.mxu0 0
        %2109 = vmatpush1.bf16.msra.mxu0 0
        %2110 = vmatprep.subr.bf16.mxu0 0
        %2111 = vmatpush1.bf16.msra.mxu0 0
        %2112 = vmatprep.subr.bf16.mxu0 0
        %2113 = vmatpush1.bf16.msra.mxu0 0
        %2114 = vmatprep.subr.bf16.mxu0 0
        %2115 = vmatpush1.bf16.msra.mxu0 0
        %2116 = vmatprep.mubr.bf16.mxu0 0
        %2117 = vmatmul.mubr.bf16.gmra.mrb[0].mxu0 %v2061
        %v2118 = vpop.f32.mrb[0].mxu0
        %v2119 = vadd.f32 0.0, %v2118
        %v2120 = vpop.f32.mrb[0].mxu0
        %v2121 = vpop.f32.mrb[0].mxu0
        %v2122 = vadd.f32 0.0, %v2121
        %v2123 = vpop.f32.mrb[0].mxu0
        %2124 = vmatprep.mubr.bf16.mxu0 0
        %2125 = vmatmul.mubr.bf16.gmra.mrb[0].mxu0 %v2064
        %v2126 = vpop.f32.mrb[0].mxu0
        %v2127 = vadd.f32 0.0, %v2126
        %v2128 = vpop.f32.mrb[0].mxu0
        %v2129 = vpop.f32.mrb[0].mxu0
        %v2130 = vadd.f32 0.0, %v2129
        %v2131 = vpop.f32.mrb[0].mxu0
        %2132 = vmatprep.mubr.bf16.mxu0 0
        %2133 = vmatmul.mubr.bf16.gmra.mrb[0].mxu0 %v2067
        %v2134 = vpop.f32.mrb[0].mxu0
        %v2135 = vadd.f32 0.0, %v2134
        %v2136 = vpop.f32.mrb[0].mxu0
        %v2137 = vpop.f32.mrb[0].mxu0
        %v2138 = vadd.f32 0.0, %v2137
        %v2139 = vpop.f32.mrb[0].mxu0
        %2140 = vmatprep.mubr.bf16.mxu0 0
        %2141 = vmatmul.mubr.bf16.gmra.mrb[0].mxu0 %v2070
        %v2142 = vpop.f32.mrb[0].mxu0
        %v2143 = vadd.f32 0.0, %v2142
        %v2144 = vpop.f32.mrb[0].mxu0
        %v2145 = vpop.f32.mrb[0].mxu0
        %v2146 = vadd.f32 0.0, %v2145
        %v2147 = vpop.f32.mrb[0].mxu0
        %2148 = vmatprep.mubr.bf16.mxu0 0
        %2149 = vmatmul.mubr.bf16.gmra.mrb[0].mxu0 %v2073
        %v2150 = vpop.f32.mrb[0].mxu0
        %v2151 = vadd.f32 0.0, %v2150
        %v2152 = vpop.f32.mrb[0].mxu0
        %v2153 = vpop.f32.mrb[0].mxu0
        %v2154 = vadd.f32 0.0, %v2153
        %v2155 = vpop.f32.mrb[0].mxu0
        %2156 = vmatprep.mubr.bf16.mxu0 0
        %2157 = vmatmul.mubr.bf16.gmra.mrb[0].mxu0 %v2076
        %v2158 = vpop.f32.mrb[0].mxu0
        %v2159 = vadd.f32 0.0, %v2158
        %v2160 = vpop.f32.mrb[0].mxu0
        %v2161 = vpop.f32.mrb[0].mxu0
        %v2162 = vadd.f32 0.0, %v2161
        %v2163 = vpop.f32.mrb[0].mxu0
        %2164 = vmatprep.mubr.bf16.mxu0 0
        %2165 = vmatmul.mubr.bf16.gmra.mrb[0].mxu0 %v2079
        %v2166 = vpop.f32.mrb[0].mxu0
        %v2167 = vadd.f32 0.0, %v2166
        %v2168 = vpop.f32.mrb[0].mxu0
        %v2169 = vpop.f32.mrb[0].mxu0
        %v2170 = vadd.f32 0.0, %v2169
        %v2171 = vpop.f32.mrb[0].mxu0
        %2172 = vmatprep.mubr.bf16.mxu0 0
        %2173 = vmatmul.mubr.bf16.gmra.mrb[0].mxu0 %v2082
        %v2174 = vpop.f32.mrb[0].mxu0
        %v2175 = vadd.f32 0.0, %v2174
        %v2176 = vpop.f32.mrb[0].mxu0
        %v2177 = vpop.f32.mrb[0].mxu0
        %v2178 = vadd.f32 0.0, %v2177
        %v2179 = vpop.f32.mrb[0].mxu0
        %2180 = vdwg.mxu0
        %v2181 = vadd.f32 %v2020, %v2119
        %v2182 = vadd.f32 %v2021, %v2122
        %v2183 = vadd.f32 %v2022, %v2127
        %v2184 = vadd.f32 %v2023, %v2130
        %v2185 = vadd.f32 %v2024, %v2135
        %v2186 = vadd.f32 %v2025, %v2138
        %v2187 = vadd.f32 %v2026, %v2143
        %v2188 = vadd.f32 %v2027, %v2146
        %v2189 = vadd.f32 %v2028, %v2151
        %v2190 = vadd.f32 %v2029, %v2154
        %v2191 = vadd.f32 %v2030, %v2159
        %v2192 = vadd.f32 %v2031, %v2162
        %v2193 = vadd.f32 %v2032, %v2167
        %v2194 = vadd.f32 %v2033, %v2170
        %v2195 = vadd.f32 %v2034, %v2175
        %v2196 = vadd.f32 %v2035, %v2178
        %2197 = vst [vmem:[#allocation3] sm:$0xff] %v2181
        %2198 = vst [vmem:[#allocation3 + $0x8] sm:$0xff] %v2182
        %2199 = vst [vmem:[#allocation3 + $0x10] sm:$0xff] %v2183
        %2200 = vst [vmem:[#allocation3 + $0x18] sm:$0xff] %v2184
        %2201 = vst [vmem:[#allocation3 + $0x20] sm:$0xff] %v2185
        %2202 = vst [vmem:[#allocation3 + $0x28] sm:$0xff] %v2186
        %2203 = vst [vmem:[#allocation3 + $0x30] sm:$0xff] %v2187
        %2204 = vst [vmem:[#allocation3 + $0x38] sm:$0xff] %v2188
        %2205 = vst [vmem:[#allocation3 + $0x40] sm:$0xff] %v2189
        %2206 = vst [vmem:[#allocation3 + $0x48] sm:$0xff] %v2190
        %2207 = vst [vmem:[#allocation3 + $0x50] sm:$0xff] %v2191
        %2208 = vst [vmem:[#allocation3 + $0x58] sm:$0xff] %v2192
        %2209 = vst [vmem:[#allocation3 + $0x60] sm:$0xff] %v2193
        %2210 = vst [vmem:[#allocation3 + $0x68] sm:$0xff] %v2194
        %2211 = vst [vmem:[#allocation3 + $0x70] sm:$0xff] %v2195
        %2212 = vst [vmem:[#allocation3 + $0x78] sm:$0xff] %v2196
        %v2213 = vld [vmem:[%s1205] sm:$0xff]
        %v2214 = vld [vmem:[%s1205 + $0x8] sm:$0xff]
        %v2215 = vld [vmem:[%s1205 + $0x10] sm:$0xff]
        %v2216 = vld [vmem:[%s1205 + $0x18] sm:$0xff]
        %v2217 = vld [vmem:[%s1205 + $0x20] sm:$0xff]
        %v2218 = vld [vmem:[%s1205 + $0x28] sm:$0xff]
        %v2219 = vld [vmem:[%s1205 + $0x30] sm:$0xff]
        %v2220 = vld [vmem:[%s1205 + $0x38] sm:$0xff]
        %v2221 = vld [vmem:[%s1321] sm:$0xff]
        %v2222 = vld [vmem:[%s1321 + $0x8] sm:$0xff]
        %v2223 = vld [vmem:[%s1321 + $0x10] sm:$0xff]
        %v2224 = vld [vmem:[%s1321 + $0x18] sm:$0xff]
        %v2225 = vld [vmem:[%s1321 + $0x20] sm:$0xff]
        %v2226 = vld [vmem:[%s1321 + $0x28] sm:$0xff]
        %v2227 = vld [vmem:[%s1321 + $0x30] sm:$0xff]
        %v2228 = vld [vmem:[%s1321 + $0x38] sm:$0xff]
        %v2229 = vld [vmem:[%s1437] sm:$0xff]
        %v2230 = vld [vmem:[%s1437 + $0x8] sm:$0xff]
        %v2231 = vld [vmem:[%s1437 + $0x10] sm:$0xff]
        %v2232 = vld [vmem:[%s1437 + $0x18] sm:$0xff]
        %v2233 = vld [vmem:[%s1437 + $0x20] sm:$0xff]
        %v2234 = vld [vmem:[%s1437 + $0x28] sm:$0xff]
        %v2235 = vld [vmem:[%s1437 + $0x30] sm:$0xff]
        %v2236 = vld [vmem:[%s1437 + $0x38] sm:$0xff]
        %v2238 = vsel %vm1164, %v2213, 0
        %v2241 = vsel %vm1164, %v2214, 0
        %v2244 = vsel %vm1164, %v2215, 0
        %v2247 = vsel %vm1164, %v2216, 0
        %v2250 = vsel %vm1164, %v2217, 0
        %v2253 = vsel %vm1164, %v2218, 0
        %v2256 = vsel %vm1164, %v2219, 0
        %v2259 = vsel %vm1164, %v2220, 0
        %v2262 = vsel %vm1164, %v2221, 0
        %v2265 = vsel %vm1164, %v2222, 0
        %v2268 = vsel %vm1164, %v2223, 0
        %v2271 = vsel %vm1164, %v2224, 0
        %v2274 = vsel %vm1164, %v2225, 0
        %v2277 = vsel %vm1164, %v2226, 0
        %v2280 = vsel %vm1164, %v2227, 0
        %v2283 = vsel %vm1164, %v2228, 0
        %2285 = vmatprep.subr.bf16.mxu0 0
        %2286 = vmatpush1.bf16.xpose.msra.mxu0 %v2262
        %2287 = vmatprep.subr.bf16.mxu0 0
        %2288 = vmatpush1.bf16.xpose.msra.mxu0 %v2265
        %2289 = vmatprep.subr.bf16.mxu0 0
        %2290 = vmatpush1.bf16.xpose.msra.mxu0 %v2268
        %2291 = vmatprep.subr.bf16.mxu0 0
        %2292 = vmatpush1.bf16.xpose.msra.mxu0 %v2271
        %2293 = vmatprep.subr.bf16.mxu0 0
        %2294 = vmatpush1.bf16.xpose.msra.mxu0 %v2274
        %2295 = vmatprep.subr.bf16.mxu0 0
        %2296 = vmatpush1.bf16.xpose.msra.mxu0 %v2277
        %2297 = vmatprep.subr.bf16.mxu0 0
        %2298 = vmatpush1.bf16.xpose.msra.mxu0 %v2280
        %2299 = vmatprep.subr.bf16.mxu0 0
        %2300 = vmatpush1.bf16.xpose.msra.mxu0 %v2283
        %2301 = vmatprep.subr.bf16.mxu0 0
        %2302 = vmatpush1.bf16.xpose.msra.mxu0 0
        %2303 = vmatprep.subr.bf16.mxu0 0
        %2304 = vmatpush1.bf16.xpose.msra.mxu0 0
        %2305 = vmatprep.subr.bf16.mxu0 0
        %2306 = vmatpush1.bf16.xpose.msra.mxu0 0
        %2307 = vmatprep.subr.bf16.mxu0 0
        %2308 = vmatpush1.bf16.xpose.msra.mxu0 0
        %2309 = vmatprep.subr.bf16.mxu0 0
        %2310 = vmatpush1.bf16.xpose.msra.mxu0 0
        %2311 = vmatprep.subr.bf16.mxu0 0
        %2312 = vmatpush1.bf16.xpose.msra.mxu0 0
        %2313 = vmatprep.subr.bf16.mxu0 0
        %2314 = vmatpush1.bf16.xpose.msra.mxu0 0
        %2315 = vmatprep.subr.bf16.mxu0 0
        %2316 = vmatpush1.bf16.xpose.msra.mxu0 0
        %2317 = vmatprep.mubr.bf16.mxu0 0
        %2318 = vmatmul.mubr.bf16.gmra.mrb[0].mxu0 %v2238
        %v2319 = vpop.f32.mrb[0].mxu0
        %v2320 = vadd.f32 0.0, %v2319
        %v2321 = vpop.f32.mrb[0].mxu0
        %v2322 = vpop.f32.mrb[0].mxu0
        %v2323 = vadd.f32 0.0, %v2322
        %v2324 = vpop.f32.mrb[0].mxu0
        %2325 = vmatprep.mubr.bf16.mxu0 0
        %2326 = vmatmul.mubr.bf16.gmra.mrb[0].mxu0 %v2241
        %v2327 = vpop.f32.mrb[0].mxu0
        %v2328 = vadd.f32 0.0, %v2327
        %v2329 = vpop.f32.mrb[0].mxu0
        %v2330 = vpop.f32.mrb[0].mxu0
        %v2331 = vadd.f32 0.0, %v2330
        %v2332 = vpop.f32.mrb[0].mxu0
        %2333 = vmatprep.mubr.bf16.mxu0 0
        %2334 = vmatmul.mubr.bf16.gmra.mrb[0].mxu0 %v2244
        %v2335 = vpop.f32.mrb[0].mxu0
        %v2336 = vadd.f32 0.0, %v2335
        %v2337 = vpop.f32.mrb[0].mxu0
        %v2338 = vpop.f32.mrb[0].mxu0
        %v2339 = vadd.f32 0.0, %v2338
        %v2340 = vpop.f32.mrb[0].mxu0
        %2341 = vmatprep.mubr.bf16.mxu0 0
        %2342 = vmatmul.mubr.bf16.gmra.mrb[0].mxu0 %v2247
        %v2343 = vpop.f32.mrb[0].mxu0
        %v2344 = vadd.f32 0.0, %v2343
        %v2345 = vpop.f32.mrb[0].mxu0
        %v2346 = vpop.f32.mrb[0].mxu0
        %v2347 = vadd.f32 0.0, %v2346
        %v2348 = vpop.f32.mrb[0].mxu0
        %2349 = vmatprep.mubr.bf16.mxu0 0
        %2350 = vmatmul.mubr.bf16.gmra.mrb[0].mxu0 %v2250
        %v2351 = vpop.f32.mrb[0].mxu0
        %v2352 = vadd.f32 0.0, %v2351
        %v2353 = vpop.f32.mrb[0].mxu0
        %v2354 = vpop.f32.mrb[0].mxu0
        %v2355 = vadd.f32 0.0, %v2354
        %v2356 = vpop.f32.mrb[0].mxu0
        %2357 = vmatprep.mubr.bf16.mxu0 0
        %2358 = vmatmul.mubr.bf16.gmra.mrb[0].mxu0 %v2253
        %v2359 = vpop.f32.mrb[0].mxu0
        %v2360 = vadd.f32 0.0, %v2359
        %v2361 = vpop.f32.mrb[0].mxu0
        %v2362 = vpop.f32.mrb[0].mxu0
        %v2363 = vadd.f32 0.0, %v2362
        %v2364 = vpop.f32.mrb[0].mxu0
        %2365 = vmatprep.mubr.bf16.mxu0 0
        %2366 = vmatmul.mubr.bf16.gmra.mrb[0].mxu0 %v2256
        %v2367 = vpop.f32.mrb[0].mxu0
        %v2368 = vadd.f32 0.0, %v2367
        %v2369 = vpop.f32.mrb[0].mxu0
        %v2370 = vpop.f32.mrb[0].mxu0
        %v2371 = vadd.f32 0.0, %v2370
        %v2372 = vpop.f32.mrb[0].mxu0
        %2373 = vmatprep.mubr.bf16.mxu0 0
        %2374 = vmatmul.mubr.bf16.gmra.mrb[0].mxu0 %v2259
        %v2375 = vpop.f32.mrb[0].mxu0
        %v2376 = vadd.f32 0.0, %v2375
        %v2377 = vpop.f32.mrb[0].mxu0
        %v2378 = vpop.f32.mrb[0].mxu0
        %v2379 = vadd.f32 0.0, %v2378
        %v2380 = vpop.f32.mrb[0].mxu0
        %2381 = vdwg.mxu0
        %v2382 = vsel %vm1570, %v2320, -1e+30
        %v2383 = vsel %vm1571, %v2323, -1e+30
        %v2384 = vsel %vm1572, %v2328, -1e+30
        %v2385 = vsel %vm1573, %v2331, -1e+30
        %v2386 = vsel %vm1574, %v2336, -1e+30
        %v2387 = vsel %vm1575, %v2339, -1e+30
        %v2388 = vsel %vm1576, %v2344, -1e+30
        %v2389 = vsel %vm1577, %v2347, -1e+30
        %v2390 = vsel %vm1578, %v2352, -1e+30
        %v2391 = vsel %vm1579, %v2355, -1e+30
        %v2392 = vsel %vm1580, %v2360, -1e+30
        %v2393 = vsel %vm1581, %v2363, -1e+30
        %v2394 = vsel %vm1582, %v2368, -1e+30
        %v2395 = vsel %vm1583, %v2371, -1e+30
        %v2396 = vsel %vm1584, %v2376, -1e+30
        %v2397 = vsel %vm1585, %v2379, -1e+30
        %2398 = vmax.xlane.f32.xlu0 %v2382
        %v2399 = vpop.xlane.xlu0 %2398
        %2400 = vmax.xlane.f32.xlu0 %v2383
        %v2401 = vpop.xlane.xlu0 %2400
        %2402 = vmax.xlane.f32.xlu0 %v2384
        %v2403 = vpop.xlane.xlu0 %2402
        %2404 = vmax.xlane.f32.xlu0 %v2385
        %v2405 = vpop.xlane.xlu0 %2404
        %2406 = vmax.xlane.f32.xlu0 %v2386
        %v2407 = vpop.xlane.xlu0 %2406
        %2408 = vmax.xlane.f32.xlu0 %v2387
        %v2409 = vpop.xlane.xlu0 %2408
        %2410 = vmax.xlane.f32.xlu0 %v2388
        %v2411 = vpop.xlane.xlu0 %2410
        %2412 = vmax.xlane.f32.xlu0 %v2389
        %v2413 = vpop.xlane.xlu0 %2412
        %2414 = vmax.xlane.f32.xlu0 %v2390
        %v2415 = vpop.xlane.xlu0 %2414
        %2416 = vmax.xlane.f32.xlu0 %v2391
        %v2417 = vpop.xlane.xlu0 %2416
        %2418 = vmax.xlane.f32.xlu0 %v2392
        %v2419 = vpop.xlane.xlu0 %2418
        %2420 = vmax.xlane.f32.xlu0 %v2393
        %v2421 = vpop.xlane.xlu0 %2420
        %2422 = vmax.xlane.f32.xlu0 %v2394
        %v2423 = vpop.xlane.xlu0 %2422
        %2424 = vmax.xlane.f32.xlu0 %v2395
        %v2425 = vpop.xlane.xlu0 %2424
        %2426 = vmax.xlane.f32.xlu0 %v2396
        %v2427 = vpop.xlane.xlu0 %2426
        %2428 = vmax.xlane.f32.xlu0 %v2397
        %v2429 = vpop.xlane.xlu0 %2428
        %v2430 = vsub.f32 %v2382, %v2399
        %v2431 = vsub.f32 %v2383, %v2401
        %v2432 = vsub.f32 %v2384, %v2403
        %v2433 = vsub.f32 %v2385, %v2405
        %v2434 = vsub.f32 %v2386, %v2407
        %v2435 = vsub.f32 %v2387, %v2409
        %v2436 = vsub.f32 %v2388, %v2411
        %v2437 = vsub.f32 %v2389, %v2413
        %v2438 = vsub.f32 %v2390, %v2415
        %v2439 = vsub.f32 %v2391, %v2417
        %v2440 = vsub.f32 %v2392, %v2419
        %v2441 = vsub.f32 %v2393, %v2421
        %v2442 = vsub.f32 %v2394, %v2423
        %v2443 = vsub.f32 %v2395, %v2425
        %v2444 = vsub.f32 %v2396, %v2427
        %v2445 = vsub.f32 %v2397, %v2429
        %v2446 = vmul.f32 %v2430, 1.442695
        %v2447 = vpow.pop %v2446
        %v2448 = vmul.f32 %v2431, 1.442695
        %v2449 = vpow.pop %v2448
        %v2450 = vmul.f32 %v2432, 1.442695
        %v2451 = vpow.pop %v2450
        %v2452 = vmul.f32 %v2433, 1.442695
        %v2453 = vpow.pop %v2452
        %v2454 = vmul.f32 %v2434, 1.442695
        %v2455 = vpow.pop %v2454
        %v2456 = vmul.f32 %v2435, 1.442695
        %v2457 = vpow.pop %v2456
        %v2458 = vmul.f32 %v2436, 1.442695
        %v2459 = vpow.pop %v2458
        %v2460 = vmul.f32 %v2437, 1.442695
        %v2461 = vpow.pop %v2460
        %v2462 = vmul.f32 %v2438, 1.442695
        %v2463 = vpow.pop %v2462
        %v2464 = vmul.f32 %v2439, 1.442695
        %v2465 = vpow.pop %v2464
        %v2466 = vmul.f32 %v2440, 1.442695
        %v2467 = vpow.pop %v2466
        %v2468 = vmul.f32 %v2441, 1.442695
        %v2469 = vpow.pop %v2468
        %v2470 = vmul.f32 %v2442, 1.442695
        %v2471 = vpow.pop %v2470
        %v2472 = vmul.f32 %v2443, 1.442695
        %v2473 = vpow.pop %v2472
        %v2474 = vmul.f32 %v2444, 1.442695
        %v2475 = vpow.pop %v2474
        %v2476 = vmul.f32 %v2445, 1.442695
        %v2477 = vpow.pop %v2476
        %2478 = vadd.xlane.f32.xlu0 %v2447
        %v2479 = vpop.xlane.xlu0 %2478
        %2480 = vadd.xlane.f32.xlu0 %v2449
        %v2481 = vpop.xlane.xlu0 %2480
        %2482 = vadd.xlane.f32.xlu0 %v2451
        %v2483 = vpop.xlane.xlu0 %2482
        %2484 = vadd.xlane.f32.xlu0 %v2453
        %v2485 = vpop.xlane.xlu0 %2484
        %2486 = vadd.xlane.f32.xlu0 %v2455
        %v2487 = vpop.xlane.xlu0 %2486
        %2488 = vadd.xlane.f32.xlu0 %v2457
        %v2489 = vpop.xlane.xlu0 %2488
        %2490 = vadd.xlane.f32.xlu0 %v2459
        %v2491 = vpop.xlane.xlu0 %2490
        %2492 = vadd.xlane.f32.xlu0 %v2461
        %v2493 = vpop.xlane.xlu0 %2492
        %2494 = vadd.xlane.f32.xlu0 %v2463
        %v2495 = vpop.xlane.xlu0 %2494
        %2496 = vadd.xlane.f32.xlu0 %v2465
        %v2497 = vpop.xlane.xlu0 %2496
        %2498 = vadd.xlane.f32.xlu0 %v2467
        %v2499 = vpop.xlane.xlu0 %2498
        %2500 = vadd.xlane.f32.xlu0 %v2469
        %v2501 = vpop.xlane.xlu0 %2500
        %2502 = vadd.xlane.f32.xlu0 %v2471
        %v2503 = vpop.xlane.xlu0 %2502
        %2504 = vadd.xlane.f32.xlu0 %v2473
        %v2505 = vpop.xlane.xlu0 %2504
        %2506 = vadd.xlane.f32.xlu0 %v2475
        %v2507 = vpop.xlane.xlu0 %2506
        %2508 = vadd.xlane.f32.xlu0 %v2477
        %v2509 = vpop.xlane.xlu0 %2508
        %v2510 = vpack.c.bf16 %v2449, %v2447
        %v2511 = vpack.c.bf16 %v2453, %v2451
        %v2512 = vpack.c.bf16 %v2457, %v2455
        %v2513 = vpack.c.bf16 %v2461, %v2459
        %v2514 = vpack.c.bf16 %v2465, %v2463
        %v2515 = vpack.c.bf16 %v2469, %v2467
        %v2516 = vpack.c.bf16 %v2473, %v2471
        %v2517 = vpack.c.bf16 %v2477, %v2475
        %2518 = vmatprep.subr.bf16.mxu0 0
        %2519 = vmatpush1.bf16.msra.mxu0 %v2229
        %2520 = vmatprep.subr.bf16.mxu0 0
        %2521 = vmatpush1.bf16.msra.mxu0 %v2230
        %2522 = vmatprep.subr.bf16.mxu0 0
        %2523 = vmatpush1.bf16.msra.mxu0 %v2231
        %2524 = vmatprep.subr.bf16.mxu0 0
        %2525 = vmatpush1.bf16.msra.mxu0 %v2232
        %2526 = vmatprep.subr.bf16.mxu0 0
        %2527 = vmatpush1.bf16.msra.mxu0 %v2233
        %2528 = vmatprep.subr.bf16.mxu0 0
        %2529 = vmatpush1.bf16.msra.mxu0 %v2234
        %2530 = vmatprep.subr.bf16.mxu0 0
        %2531 = vmatpush1.bf16.msra.mxu0 %v2235
        %2532 = vmatprep.subr.bf16.mxu0 0
        %2533 = vmatpush1.bf16.msra.mxu0 %v2236
        %2534 = vmatprep.subr.bf16.mxu0 0
        %2535 = vmatpush1.bf16.msra.mxu0 0
        %2536 = vmatprep.subr.bf16.mxu0 0
        %2537 = vmatpush1.bf16.msra.mxu0 0
        %2538 = vmatprep.subr.bf16.mxu0 0
        %2539 = vmatpush1.bf16.msra.mxu0 0
        %2540 = vmatprep.subr.bf16.mxu0 0
        %2541 = vmatpush1.bf16.msra.mxu0 0
        %2542 = vmatprep.subr.bf16.mxu0 0
        %2543 = vmatpush1.bf16.msra.mxu0 0
        %2544 = vmatprep.subr.bf16.mxu0 0
        %2545 = vmatpush1.bf16.msra.mxu0 0
        %2546 = vmatprep.subr.bf16.mxu0 0
        %2547 = vmatpush1.bf16.msra.mxu0 0
        %2548 = vmatprep.subr.bf16.mxu0 0
        %2549 = vmatpush1.bf16.msra.mxu0 0
        %2550 = vmatprep.mubr.bf16.mxu0 0
        %2551 = vmatmul.mubr.bf16.gmra.mrb[0].mxu0 %v2510
        %v2552 = vpop.f32.mrb[0].mxu0
        %v2553 = vadd.f32 0.0, %v2552
        %v2554 = vpop.f32.mrb[0].mxu0
        %v2555 = vpop.f32.mrb[0].mxu0
        %v2556 = vadd.f32 0.0, %v2555
        %v2557 = vpop.f32.mrb[0].mxu0
        %2558 = vmatprep.mubr.bf16.mxu0 0
        %2559 = vmatmul.mubr.bf16.gmra.mrb[0].mxu0 %v2511
        %v2560 = vpop.f32.mrb[0].mxu0
        %v2561 = vadd.f32 0.0, %v2560
        %v2562 = vpop.f32.mrb[0].mxu0
        %v2563 = vpop.f32.mrb[0].mxu0
        %v2564 = vadd.f32 0.0, %v2563
        %v2565 = vpop.f32.mrb[0].mxu0
        %2566 = vmatprep.mubr.bf16.mxu0 0
        %2567 = vmatmul.mubr.bf16.gmra.mrb[0].mxu0 %v2512
        %v2568 = vpop.f32.mrb[0].mxu0
        %v2569 = vadd.f32 0.0, %v2568
        %v2570 = vpop.f32.mrb[0].mxu0
        %v2571 = vpop.f32.mrb[0].mxu0
        %v2572 = vadd.f32 0.0, %v2571
        %v2573 = vpop.f32.mrb[0].mxu0
        %2574 = vmatprep.mubr.bf16.mxu0 0
        %2575 = vmatmul.mubr.bf16.gmra.mrb[0].mxu0 %v2513
        %v2576 = vpop.f32.mrb[0].mxu0
        %v2577 = vadd.f32 0.0, %v2576
        %v2578 = vpop.f32.mrb[0].mxu0
        %v2579 = vpop.f32.mrb[0].mxu0
        %v2580 = vadd.f32 0.0, %v2579
        %v2581 = vpop.f32.mrb[0].mxu0
        %2582 = vmatprep.mubr.bf16.mxu0 0
        %2583 = vmatmul.mubr.bf16.gmra.mrb[0].mxu0 %v2514
        %v2584 = vpop.f32.mrb[0].mxu0
        %v2585 = vadd.f32 0.0, %v2584
        %v2586 = vpop.f32.mrb[0].mxu0
        %v2587 = vpop.f32.mrb[0].mxu0
        %v2588 = vadd.f32 0.0, %v2587
        %v2589 = vpop.f32.mrb[0].mxu0
        %2590 = vmatprep.mubr.bf16.mxu0 0
        %2591 = vmatmul.mubr.bf16.gmra.mrb[0].mxu0 %v2515
        %v2592 = vpop.f32.mrb[0].mxu0
        %v2593 = vadd.f32 0.0, %v2592
        %v2594 = vpop.f32.mrb[0].mxu0
        %v2595 = vpop.f32.mrb[0].mxu0
        %v2596 = vadd.f32 0.0, %v2595
        %v2597 = vpop.f32.mrb[0].mxu0
        %2598 = vmatprep.mubr.bf16.mxu0 0
        %2599 = vmatmul.mubr.bf16.gmra.mrb[0].mxu0 %v2516
        %v2600 = vpop.f32.mrb[0].mxu0
        %v2601 = vadd.f32 0.0, %v2600
        %v2602 = vpop.f32.mrb[0].mxu0
        %v2603 = vpop.f32.mrb[0].mxu0
        %v2604 = vadd.f32 0.0, %v2603
        %v2605 = vpop.f32.mrb[0].mxu0
        %2606 = vmatprep.mubr.bf16.mxu0 0
        %2607 = vmatmul.mubr.bf16.gmra.mrb[0].mxu0 %v2517
        %v2608 = vpop.f32.mrb[0].mxu0
        %v2609 = vadd.f32 0.0, %v2608
        %v2610 = vpop.f32.mrb[0].mxu0
        %v2611 = vpop.f32.mrb[0].mxu0
        %v2612 = vadd.f32 0.0, %v2611
        %v2613 = vpop.f32.mrb[0].mxu0
        %2614 = vdwg.mxu0
        %v2615 = vrcp.pop %v2479
        %v2616 = vrcp.pop %v2481
        %v2617 = vrcp.pop %v2483
        %v2618 = vrcp.pop %v2485
        %v2619 = vrcp.pop %v2487
        %v2620 = vrcp.pop %v2489
        %v2621 = vrcp.pop %v2491
        %v2622 = vrcp.pop %v2493
        %v2623 = vrcp.pop %v2495
        %v2624 = vrcp.pop %v2497
        %v2625 = vrcp.pop %v2499
        %v2626 = vrcp.pop %v2501
        %v2627 = vrcp.pop %v2503
        %v2628 = vrcp.pop %v2505
        %v2629 = vrcp.pop %v2507
        %v2630 = vrcp.pop %v2509
        %v2631 = vmul.f32 %v2553, %v2615
        %v2632 = vmul.f32 %v2556, %v2616
        %v2633 = vmul.f32 %v2561, %v2617
        %v2634 = vmul.f32 %v2564, %v2618
        %v2635 = vmul.f32 %v2569, %v2619
        %v2636 = vmul.f32 %v2572, %v2620
        %v2637 = vmul.f32 %v2577, %v2621
        %v2638 = vmul.f32 %v2580, %v2622
        %v2639 = vmul.f32 %v2585, %v2623
        %v2640 = vmul.f32 %v2588, %v2624
        %v2641 = vmul.f32 %v2593, %v2625
        %v2642 = vmul.f32 %v2596, %v2626
        %v2643 = vmul.f32 %v2601, %v2627
        %v2644 = vmul.f32 %v2604, %v2628
        %v2645 = vmul.f32 %v2609, %v2629
        %v2646 = vmul.f32 %v2612, %v2630
        %v2647 = vld [vmem:[#allocation3] sm:$0xff]
        %v2648 = vld [vmem:[#allocation3 + $0x8] sm:$0xff]
        %v2649 = vld [vmem:[#allocation3 + $0x10] sm:$0xff]
        %v2650 = vld [vmem:[#allocation3 + $0x18] sm:$0xff]
        %v2651 = vld [vmem:[#allocation3 + $0x20] sm:$0xff]
        %v2652 = vld [vmem:[#allocation3 + $0x28] sm:$0xff]
        %v2653 = vld [vmem:[#allocation3 + $0x30] sm:$0xff]
        %v2654 = vld [vmem:[#allocation3 + $0x38] sm:$0xff]
        %v2655 = vld [vmem:[#allocation3 + $0x40] sm:$0xff]
        %v2656 = vld [vmem:[#allocation3 + $0x48] sm:$0xff]
        %v2657 = vld [vmem:[#allocation3 + $0x50] sm:$0xff]
        %v2658 = vld [vmem:[#allocation3 + $0x58] sm:$0xff]
        %v2659 = vld [vmem:[#allocation3 + $0x60] sm:$0xff]
        %v2660 = vld [vmem:[#allocation3 + $0x68] sm:$0xff]
        %v2661 = vld [vmem:[#allocation3 + $0x70] sm:$0xff]
        %v2662 = vld [vmem:[#allocation3 + $0x78] sm:$0xff]
        %v2663 = vpack.c.bf16 %v2632, %v2631
        %v2664 = vpack.c.bf16 %v2634, %v2633
        %v2665 = vpack.c.bf16 %v2636, %v2635
        %v2666 = vpack.c.bf16 %v2638, %v2637
        %v2667 = vpack.c.bf16 %v2640, %v2639
        %v2668 = vpack.c.bf16 %v2642, %v2641
        %v2669 = vpack.c.bf16 %v2644, %v2643
        %v2670 = vpack.c.bf16 %v2646, %v2645
        %s2671 = scalar_lea.vmem [#allocation9], 16
        %v2672 = vld [vmem:[%s2671] sm:$0xf]
        %v2673 = vld [vmem:[%s2671 + $0x4] sm:$0xf]
        %v2674 = vld [vmem:[%s2671 + $0x8] sm:$0xf]
        %v2675 = vld [vmem:[%s2671 + $0xc] sm:$0xf]
        %v2680 = vunpack.c.l.b16 %v2672
        %v2681 = vunpack.c.l.b16 %v2673
        %v2682 = vunpack.c.l.b16 %v2674
        %v2683 = vunpack.c.l.b16 %v2675
        %v2684 = vpack.c.b16 %v2681, %v2680
        %v2685 = vpack.c.b16 %v2683, %v2682
        %v2689 = vsel %vm1164, %v2663, 0
        %v2692 = vsel %vm1164, %v2664, 0
        %v2695 = vsel %vm1164, %v2665, 0
        %v2698 = vsel %vm1164, %v2666, 0
        %v2701 = vsel %vm1164, %v2667, 0
        %v2704 = vsel %vm1164, %v2668, 0
        %v2707 = vsel %vm1164, %v2669, 0
        %v2710 = vsel %vm1164, %v2670, 0
        %2712 = vmatprep.subr.bf16.mxu0 0
        %2713 = vmatpush1.bf16.msra.mxu0 %v2684
        %2714 = vmatprep.subr.bf16.mxu0 0
        %2715 = vmatpush1.bf16.msra.mxu0 %v2685
        %2716 = vmatprep.subr.bf16.mxu0 0
        %2717 = vmatpush1.bf16.msra.mxu0 0
        %2718 = vmatprep.subr.bf16.mxu0 0
        %2719 = vmatpush1.bf16.msra.mxu0 0
        %2720 = vmatprep.subr.bf16.mxu0 0
        %2721 = vmatpush1.bf16.msra.mxu0 0
        %2722 = vmatprep.subr.bf16.mxu0 0
        %2723 = vmatpush1.bf16.msra.mxu0 0
        %2724 = vmatprep.subr.bf16.mxu0 0
        %2725 = vmatpush1.bf16.msra.mxu0 0
        %2726 = vmatprep.subr.bf16.mxu0 0
        %2727 = vmatpush1.bf16.msra.mxu0 0
        %2728 = vmatprep.subr.bf16.mxu0 0
        %2729 = vmatpush1.bf16.msra.mxu0 0
        %2730 = vmatprep.subr.bf16.mxu0 0
        %2731 = vmatpush1.bf16.msra.mxu0 0
        %2732 = vmatprep.subr.bf16.mxu0 0
        %2733 = vmatpush1.bf16.msra.mxu0 0
        %2734 = vmatprep.subr.bf16.mxu0 0
        %2735 = vmatpush1.bf16.msra.mxu0 0
        %2736 = vmatprep.subr.bf16.mxu0 0
        %2737 = vmatpush1.bf16.msra.mxu0 0
        %2738 = vmatprep.subr.bf16.mxu0 0
        %2739 = vmatpush1.bf16.msra.mxu0 0
        %2740 = vmatprep.subr.bf16.mxu0 0
        %2741 = vmatpush1.bf16.msra.mxu0 0
        %2742 = vmatprep.subr.bf16.mxu0 0
        %2743 = vmatpush1.bf16.msra.mxu0 0
        %2744 = vmatprep.mubr.bf16.mxu0 0
        %2745 = vmatmul.mubr.bf16.gmra.mrb[0].mxu0 %v2689
        %v2746 = vpop.f32.mrb[0].mxu0
        %v2747 = vadd.f32 0.0, %v2746
        %v2748 = vpop.f32.mrb[0].mxu0
        %v2749 = vpop.f32.mrb[0].mxu0
        %v2750 = vadd.f32 0.0, %v2749
        %v2751 = vpop.f32.mrb[0].mxu0
        %2752 = vmatprep.mubr.bf16.mxu0 0
        %2753 = vmatmul.mubr.bf16.gmra.mrb[0].mxu0 %v2692
        %v2754 = vpop.f32.mrb[0].mxu0
        %v2755 = vadd.f32 0.0, %v2754
        %v2756 = vpop.f32.mrb[0].mxu0
        %v2757 = vpop.f32.mrb[0].mxu0
        %v2758 = vadd.f32 0.0, %v2757
        %v2759 = vpop.f32.mrb[0].mxu0
        %2760 = vmatprep.mubr.bf16.mxu0 0
        %2761 = vmatmul.mubr.bf16.gmra.mrb[0].mxu0 %v2695
        %v2762 = vpop.f32.mrb[0].mxu0
        %v2763 = vadd.f32 0.0, %v2762
        %v2764 = vpop.f32.mrb[0].mxu0
        %v2765 = vpop.f32.mrb[0].mxu0
        %v2766 = vadd.f32 0.0, %v2765
        %v2767 = vpop.f32.mrb[0].mxu0
        %2768 = vmatprep.mubr.bf16.mxu0 0
        %2769 = vmatmul.mubr.bf16.gmra.mrb[0].mxu0 %v2698
        %v2770 = vpop.f32.mrb[0].mxu0
        %v2771 = vadd.f32 0.0, %v2770
        %v2772 = vpop.f32.mrb[0].mxu0
        %v2773 = vpop.f32.mrb[0].mxu0
        %v2774 = vadd.f32 0.0, %v2773
        %v2775 = vpop.f32.mrb[0].mxu0
        %2776 = vmatprep.mubr.bf16.mxu0 0
        %2777 = vmatmul.mubr.bf16.gmra.mrb[0].mxu0 %v2701
        %v2778 = vpop.f32.mrb[0].mxu0
        %v2779 = vadd.f32 0.0, %v2778
        %v2780 = vpop.f32.mrb[0].mxu0
        %v2781 = vpop.f32.mrb[0].mxu0
        %v2782 = vadd.f32 0.0, %v2781
        %v2783 = vpop.f32.mrb[0].mxu0
        %2784 = vmatprep.mubr.bf16.mxu0 0
        %2785 = vmatmul.mubr.bf16.gmra.mrb[0].mxu0 %v2704
        %v2786 = vpop.f32.mrb[0].mxu0
        %v2787 = vadd.f32 0.0, %v2786
        %v2788 = vpop.f32.mrb[0].mxu0
        %v2789 = vpop.f32.mrb[0].mxu0
        %v2790 = vadd.f32 0.0, %v2789
        %v2791 = vpop.f32.mrb[0].mxu0
        %2792 = vmatprep.mubr.bf16.mxu0 0
        %2793 = vmatmul.mubr.bf16.gmra.mrb[0].mxu0 %v2707
        %v2794 = vpop.f32.mrb[0].mxu0
        %v2795 = vadd.f32 0.0, %v2794
        %v2796 = vpop.f32.mrb[0].mxu0
        %v2797 = vpop.f32.mrb[0].mxu0
        %v2798 = vadd.f32 0.0, %v2797
        %v2799 = vpop.f32.mrb[0].mxu0
        %2800 = vmatprep.mubr.bf16.mxu0 0
        %2801 = vmatmul.mubr.bf16.gmra.mrb[0].mxu0 %v2710
        %v2802 = vpop.f32.mrb[0].mxu0
        %v2803 = vadd.f32 0.0, %v2802
        %v2804 = vpop.f32.mrb[0].mxu0
        %v2805 = vpop.f32.mrb[0].mxu0
        %v2806 = vadd.f32 0.0, %v2805
        %v2807 = vpop.f32.mrb[0].mxu0
        %2808 = vdwg.mxu0
        %v2809 = vadd.f32 %v2647, %v2747
        %v2810 = vadd.f32 %v2648, %v2750
        %v2811 = vadd.f32 %v2649, %v2755
        %v2812 = vadd.f32 %v2650, %v2758
        %v2813 = vadd.f32 %v2651, %v2763
        %v2814 = vadd.f32 %v2652, %v2766
        %v2815 = vadd.f32 %v2653, %v2771
        %v2816 = vadd.f32 %v2654, %v2774
        %v2817 = vadd.f32 %v2655, %v2779
        %v2818 = vadd.f32 %v2656, %v2782
        %v2819 = vadd.f32 %v2657, %v2787
        %v2820 = vadd.f32 %v2658, %v2790
        %v2821 = vadd.f32 %v2659, %v2795
        %v2822 = vadd.f32 %v2660, %v2798
        %v2823 = vadd.f32 %v2661, %v2803
        %v2824 = vadd.f32 %v2662, %v2806
        %2825 = vst [vmem:[#allocation3] sm:$0xff] %v2809
        %2826 = vst [vmem:[#allocation3 + $0x8] sm:$0xff] %v2810
        %2827 = vst [vmem:[#allocation3 + $0x10] sm:$0xff] %v2811
        %2828 = vst [vmem:[#allocation3 + $0x18] sm:$0xff] %v2812
        %2829 = vst [vmem:[#allocation3 + $0x20] sm:$0xff] %v2813
        %2830 = vst [vmem:[#allocation3 + $0x28] sm:$0xff] %v2814
        %2831 = vst [vmem:[#allocation3 + $0x30] sm:$0xff] %v2815
        %2832 = vst [vmem:[#allocation3 + $0x38] sm:$0xff] %v2816
        %2833 = vst [vmem:[#allocation3 + $0x40] sm:$0xff] %v2817
        %2834 = vst [vmem:[#allocation3 + $0x48] sm:$0xff] %v2818
        %2835 = vst [vmem:[#allocation3 + $0x50] sm:$0xff] %v2819
        %2836 = vst [vmem:[#allocation3 + $0x58] sm:$0xff] %v2820
        %2837 = vst [vmem:[#allocation3 + $0x60] sm:$0xff] %v2821
        %2838 = vst [vmem:[#allocation3 + $0x68] sm:$0xff] %v2822
        %2839 = vst [vmem:[#allocation3 + $0x70] sm:$0xff] %v2823
        %2840 = vst [vmem:[#allocation3 + $0x78] sm:$0xff] %v2824
        %v2841 = vld [vmem:[%s1238] sm:$0xff]
        %v2842 = vld [vmem:[%s1238 + $0x8] sm:$0xff]
        %v2843 = vld [vmem:[%s1238 + $0x10] sm:$0xff]
        %v2844 = vld [vmem:[%s1238 + $0x18] sm:$0xff]
        %v2845 = vld [vmem:[%s1238 + $0x20] sm:$0xff]
        %v2846 = vld [vmem:[%s1238 + $0x28] sm:$0xff]
        %v2847 = vld [vmem:[%s1238 + $0x30] sm:$0xff]
        %v2848 = vld [vmem:[%s1238 + $0x38] sm:$0xff]
        %v2849 = vld [vmem:[%s1354] sm:$0xff]
        %v2850 = vld [vmem:[%s1354 + $0x8] sm:$0xff]
        %v2851 = vld [vmem:[%s1354 + $0x10] sm:$0xff]
        %v2852 = vld [vmem:[%s1354 + $0x18] sm:$0xff]
        %v2853 = vld [vmem:[%s1354 + $0x20] sm:$0xff]
        %v2854 = vld [vmem:[%s1354 + $0x28] sm:$0xff]
        %v2855 = vld [vmem:[%s1354 + $0x30] sm:$0xff]
        %v2856 = vld [vmem:[%s1354 + $0x38] sm:$0xff]
        %v2857 = vld [vmem:[%s1470] sm:$0xff]
        %v2858 = vld [vmem:[%s1470 + $0x8] sm:$0xff]
        %v2859 = vld [vmem:[%s1470 + $0x10] sm:$0xff]
        %v2860 = vld [vmem:[%s1470 + $0x18] sm:$0xff]
        %v2861 = vld [vmem:[%s1470 + $0x20] sm:$0xff]
        %v2862 = vld [vmem:[%s1470 + $0x28] sm:$0xff]
        %v2863 = vld [vmem:[%s1470 + $0x30] sm:$0xff]
        %v2864 = vld [vmem:[%s1470 + $0x38] sm:$0xff]
        %v2866 = vsel %vm1164, %v2841, 0
        %v2869 = vsel %vm1164, %v2842, 0
        %v2872 = vsel %vm1164, %v2843, 0
        %v2875 = vsel %vm1164, %v2844, 0
        %v2878 = vsel %vm1164, %v2845, 0
        %v2881 = vsel %vm1164, %v2846, 0
        %v2884 = vsel %vm1164, %v2847, 0
        %v2887 = vsel %vm1164, %v2848, 0
        %v2890 = vsel %vm1164, %v2849, 0
        %v2893 = vsel %vm1164, %v2850, 0
        %v2896 = vsel %vm1164, %v2851, 0
        %v2899 = vsel %vm1164, %v2852, 0
        %v2902 = vsel %vm1164, %v2853, 0
        %v2905 = vsel %vm1164, %v2854, 0
        %v2908 = vsel %vm1164, %v2855, 0
        %v2911 = vsel %vm1164, %v2856, 0
        %2913 = vmatprep.subr.bf16.mxu0 0
        %2914 = vmatpush1.bf16.xpose.msra.mxu0 %v2890
        %2915 = vmatprep.subr.bf16.mxu0 0
        %2916 = vmatpush1.bf16.xpose.msra.mxu0 %v2893
        %2917 = vmatprep.subr.bf16.mxu0 0
        %2918 = vmatpush1.bf16.xpose.msra.mxu0 %v2896
        %2919 = vmatprep.subr.bf16.mxu0 0
        %2920 = vmatpush1.bf16.xpose.msra.mxu0 %v2899
        %2921 = vmatprep.subr.bf16.mxu0 0
        %2922 = vmatpush1.bf16.xpose.msra.mxu0 %v2902
        %2923 = vmatprep.subr.bf16.mxu0 0
        %2924 = vmatpush1.bf16.xpose.msra.mxu0 %v2905
        %2925 = vmatprep.subr.bf16.mxu0 0
        %2926 = vmatpush1.bf16.xpose.msra.mxu0 %v2908
        %2927 = vmatprep.subr.bf16.mxu0 0
        %2928 = vmatpush1.bf16.xpose.msra.mxu0 %v2911
        %2929 = vmatprep.subr.bf16.mxu0 0
        %2930 = vmatpush1.bf16.xpose.msra.mxu0 0
        %2931 = vmatprep.subr.bf16.mxu0 0
        %2932 = vmatpush1.bf16.xpose.msra.mxu0 0
        %2933 = vmatprep.subr.bf16.mxu0 0
        %2934 = vmatpush1.bf16.xpose.msra.mxu0 0
        %2935 = vmatprep.subr.bf16.mxu0 0
        %2936 = vmatpush1.bf16.xpose.msra.mxu0 0
        %2937 = vmatprep.subr.bf16.mxu0 0
        %2938 = vmatpush1.bf16.xpose.msra.mxu0 0
        %2939 = vmatprep.subr.bf16.mxu0 0
        %2940 = vmatpush1.bf16.xpose.msra.mxu0 0
        %2941 = vmatprep.subr.bf16.mxu0 0
        %2942 = vmatpush1.bf16.xpose.msra.mxu0 0
        %2943 = vmatprep.subr.bf16.mxu0 0
        %2944 = vmatpush1.bf16.xpose.msra.mxu0 0
        %2945 = vmatprep.mubr.bf16.mxu0 0
        %2946 = vmatmul.mubr.bf16.gmra.mrb[0].mxu0 %v2866
        %v2947 = vpop.f32.mrb[0].mxu0
        %v2948 = vadd.f32 0.0, %v2947
        %v2949 = vpop.f32.mrb[0].mxu0
        %v2950 = vpop.f32.mrb[0].mxu0
        %v2951 = vadd.f32 0.0, %v2950
        %v2952 = vpop.f32.mrb[0].mxu0
        %2953 = vmatprep.mubr.bf16.mxu0 0
        %2954 = vmatmul.mubr.bf16.gmra.mrb[0].mxu0 %v2869
        %v2955 = vpop.f32.mrb[0].mxu0
        %v2956 = vadd.f32 0.0, %v2955
        %v2957 = vpop.f32.mrb[0].mxu0
        %v2958 = vpop.f32.mrb[0].mxu0
        %v2959 = vadd.f32 0.0, %v2958
        %v2960 = vpop.f32.mrb[0].mxu0
        %2961 = vmatprep.mubr.bf16.mxu0 0
        %2962 = vmatmul.mubr.bf16.gmra.mrb[0].mxu0 %v2872
        %v2963 = vpop.f32.mrb[0].mxu0
        %v2964 = vadd.f32 0.0, %v2963
        %v2965 = vpop.f32.mrb[0].mxu0
        %v2966 = vpop.f32.mrb[0].mxu0
        %v2967 = vadd.f32 0.0, %v2966
        %v2968 = vpop.f32.mrb[0].mxu0
        %2969 = vmatprep.mubr.bf16.mxu0 0
        %2970 = vmatmul.mubr.bf16.gmra.mrb[0].mxu0 %v2875
        %v2971 = vpop.f32.mrb[0].mxu0
        %v2972 = vadd.f32 0.0, %v2971
        %v2973 = vpop.f32.mrb[0].mxu0
        %v2974 = vpop.f32.mrb[0].mxu0
        %v2975 = vadd.f32 0.0, %v2974
        %v2976 = vpop.f32.mrb[0].mxu0
        %2977 = vmatprep.mubr.bf16.mxu0 0
        %2978 = vmatmul.mubr.bf16.gmra.mrb[0].mxu0 %v2878
        %v2979 = vpop.f32.mrb[0].mxu0
        %v2980 = vadd.f32 0.0, %v2979
        %v2981 = vpop.f32.mrb[0].mxu0
        %v2982 = vpop.f32.mrb[0].mxu0
        %v2983 = vadd.f32 0.0, %v2982
        %v2984 = vpop.f32.mrb[0].mxu0
        %2985 = vmatprep.mubr.bf16.mxu0 0
        %2986 = vmatmul.mubr.bf16.gmra.mrb[0].mxu0 %v2881
        %v2987 = vpop.f32.mrb[0].mxu0
        %v2988 = vadd.f32 0.0, %v2987
        %v2989 = vpop.f32.mrb[0].mxu0
        %v2990 = vpop.f32.mrb[0].mxu0
        %v2991 = vadd.f32 0.0, %v2990
        %v2992 = vpop.f32.mrb[0].mxu0
        %2993 = vmatprep.mubr.bf16.mxu0 0
        %2994 = vmatmul.mubr.bf16.gmra.mrb[0].mxu0 %v2884
        %v2995 = vpop.f32.mrb[0].mxu0
        %v2996 = vadd.f32 0.0, %v2995
        %v2997 = vpop.f32.mrb[0].mxu0
        %v2998 = vpop.f32.mrb[0].mxu0
        %v2999 = vadd.f32 0.0, %v2998
        %v3000 = vpop.f32.mrb[0].mxu0
        %3001 = vmatprep.mubr.bf16.mxu0 0
        %3002 = vmatmul.mubr.bf16.gmra.mrb[0].mxu0 %v2887
        %v3003 = vpop.f32.mrb[0].mxu0
        %v3004 = vadd.f32 0.0, %v3003
        %v3005 = vpop.f32.mrb[0].mxu0
        %v3006 = vpop.f32.mrb[0].mxu0
        %v3007 = vadd.f32 0.0, %v3006
        %v3008 = vpop.f32.mrb[0].mxu0
        %3009 = vdwg.mxu0
        %v3010 = vsel %vm1570, %v2948, -1e+30
        %v3011 = vsel %vm1571, %v2951, -1e+30
        %v3012 = vsel %vm1572, %v2956, -1e+30
        %v3013 = vsel %vm1573, %v2959, -1e+30
        %v3014 = vsel %vm1574, %v2964, -1e+30
        %v3015 = vsel %vm1575, %v2967, -1e+30
        %v3016 = vsel %vm1576, %v2972, -1e+30
        %v3017 = vsel %vm1577, %v2975, -1e+30
        %v3018 = vsel %vm1578, %v2980, -1e+30
        %v3019 = vsel %vm1579, %v2983, -1e+30
        %v3020 = vsel %vm1580, %v2988, -1e+30
        %v3021 = vsel %vm1581, %v2991, -1e+30
        %v3022 = vsel %vm1582, %v2996, -1e+30
        %v3023 = vsel %vm1583, %v2999, -1e+30
        %v3024 = vsel %vm1584, %v3004, -1e+30
        %v3025 = vsel %vm1585, %v3007, -1e+30
        %3026 = vmax.xlane.f32.xlu0 %v3010
        %v3027 = vpop.xlane.xlu0 %3026
        %3028 = vmax.xlane.f32.xlu0 %v3011
        %v3029 = vpop.xlane.xlu0 %3028
        %3030 = vmax.xlane.f32.xlu0 %v3012
        %v3031 = vpop.xlane.xlu0 %3030
        %3032 = vmax.xlane.f32.xlu0 %v3013
        %v3033 = vpop.xlane.xlu0 %3032
        %3034 = vmax.xlane.f32.xlu0 %v3014
        %v3035 = vpop.xlane.xlu0 %3034
        %3036 = vmax.xlane.f32.xlu0 %v3015
        %v3037 = vpop.xlane.xlu0 %3036
        %3038 = vmax.xlane.f32.xlu0 %v3016
        %v3039 = vpop.xlane.xlu0 %3038
        %3040 = vmax.xlane.f32.xlu0 %v3017
        %v3041 = vpop.xlane.xlu0 %3040
        %3042 = vmax.xlane.f32.xlu0 %v3018
        %v3043 = vpop.xlane.xlu0 %3042
        %3044 = vmax.xlane.f32.xlu0 %v3019
        %v3045 = vpop.xlane.xlu0 %3044
        %3046 = vmax.xlane.f32.xlu0 %v3020
        %v3047 = vpop.xlane.xlu0 %3046
        %3048 = vmax.xlane.f32.xlu0 %v3021
        %v3049 = vpop.xlane.xlu0 %3048
        %3050 = vmax.xlane.f32.xlu0 %v3022
        %v3051 = vpop.xlane.xlu0 %3050
        %3052 = vmax.xlane.f32.xlu0 %v3023
        %v3053 = vpop.xlane.xlu0 %3052
        %3054 = vmax.xlane.f32.xlu0 %v3024
        %v3055 = vpop.xlane.xlu0 %3054
        %3056 = vmax.xlane.f32.xlu0 %v3025
        %v3057 = vpop.xlane.xlu0 %3056
        %v3058 = vsub.f32 %v3010, %v3027
        %v3059 = vsub.f32 %v3011, %v3029
        %v3060 = vsub.f32 %v3012, %v3031
        %v3061 = vsub.f32 %v3013, %v3033
        %v3062 = vsub.f32 %v3014, %v3035
        %v3063 = vsub.f32 %v3015, %v3037
        %v3064 = vsub.f32 %v3016, %v3039
        %v3065 = vsub.f32 %v3017, %v3041
        %v3066 = vsub.f32 %v3018, %v3043
        %v3067 = vsub.f32 %v3019, %v3045
        %v3068 = vsub.f32 %v3020, %v3047
        %v3069 = vsub.f32 %v3021, %v3049
        %v3070 = vsub.f32 %v3022, %v3051
        %v3071 = vsub.f32 %v3023, %v3053
        %v3072 = vsub.f32 %v3024, %v3055
        %v3073 = vsub.f32 %v3025, %v3057
        %v3074 = vmul.f32 %v3058, 1.442695
        %v3075 = vpow.pop %v3074
        %v3076 = vmul.f32 %v3059, 1.442695
        %v3077 = vpow.pop %v3076
        %v3078 = vmul.f32 %v3060, 1.442695
        %v3079 = vpow.pop %v3078
        %v3080 = vmul.f32 %v3061, 1.442695
        %v3081 = vpow.pop %v3080
        %v3082 = vmul.f32 %v3062, 1.442695
        %v3083 = vpow.pop %v3082
        %v3084 = vmul.f32 %v3063, 1.442695
        %v3085 = vpow.pop %v3084
        %v3086 = vmul.f32 %v3064, 1.442695
        %v3087 = vpow.pop %v3086
        %v3088 = vmul.f32 %v3065, 1.442695
        %v3089 = vpow.pop %v3088
        %v3090 = vmul.f32 %v3066, 1.442695
        %v3091 = vpow.pop %v3090
        %v3092 = vmul.f32 %v3067, 1.442695
        %v3093 = vpow.pop %v3092
        %v3094 = vmul.f32 %v3068, 1.442695
        %v3095 = vpow.pop %v3094
        %v3096 = vmul.f32 %v3069, 1.442695
        %v3097 = vpow.pop %v3096
        %v3098 = vmul.f32 %v3070, 1.442695
        %v3099 = vpow.pop %v3098
        %v3100 = vmul.f32 %v3071, 1.442695
        %v3101 = vpow.pop %v3100
        %v3102 = vmul.f32 %v3072, 1.442695
        %v3103 = vpow.pop %v3102
        %v3104 = vmul.f32 %v3073, 1.442695
        %v3105 = vpow.pop %v3104
        %3106 = vadd.xlane.f32.xlu0 %v3075
        %v3107 = vpop.xlane.xlu0 %3106
        %3108 = vadd.xlane.f32.xlu0 %v3077
        %v3109 = vpop.xlane.xlu0 %3108
        %3110 = vadd.xlane.f32.xlu0 %v3079
        %v3111 = vpop.xlane.xlu0 %3110
        %3112 = vadd.xlane.f32.xlu0 %v3081
        %v3113 = vpop.xlane.xlu0 %3112
        %3114 = vadd.xlane.f32.xlu0 %v3083
        %v3115 = vpop.xlane.xlu0 %3114
        %3116 = vadd.xlane.f32.xlu0 %v3085
        %v3117 = vpop.xlane.xlu0 %3116
        %3118 = vadd.xlane.f32.xlu0 %v3087
        %v3119 = vpop.xlane.xlu0 %3118
        %3120 = vadd.xlane.f32.xlu0 %v3089
        %v3121 = vpop.xlane.xlu0 %3120
        %3122 = vadd.xlane.f32.xlu0 %v3091
        %v3123 = vpop.xlane.xlu0 %3122
        %3124 = vadd.xlane.f32.xlu0 %v3093
        %v3125 = vpop.xlane.xlu0 %3124
        %3126 = vadd.xlane.f32.xlu0 %v3095
        %v3127 = vpop.xlane.xlu0 %3126
        %3128 = vadd.xlane.f32.xlu0 %v3097
        %v3129 = vpop.xlane.xlu0 %3128
        %3130 = vadd.xlane.f32.xlu0 %v3099
        %v3131 = vpop.xlane.xlu0 %3130
        %3132 = vadd.xlane.f32.xlu0 %v3101
        %v3133 = vpop.xlane.xlu0 %3132
        %3134 = vadd.xlane.f32.xlu0 %v3103
        %v3135 = vpop.xlane.xlu0 %3134
        %3136 = vadd.xlane.f32.xlu0 %v3105
        %v3137 = vpop.xlane.xlu0 %3136
        %v3138 = vpack.c.bf16 %v3077, %v3075
        %v3139 = vpack.c.bf16 %v3081, %v3079
        %v3140 = vpack.c.bf16 %v3085, %v3083
        %v3141 = vpack.c.bf16 %v3089, %v3087
        %v3142 = vpack.c.bf16 %v3093, %v3091
        %v3143 = vpack.c.bf16 %v3097, %v3095
        %v3144 = vpack.c.bf16 %v3101, %v3099
        %v3145 = vpack.c.bf16 %v3105, %v3103
        %3146 = vmatprep.subr.bf16.mxu0 0
        %3147 = vmatpush1.bf16.msra.mxu0 %v2857
        %3148 = vmatprep.subr.bf16.mxu0 0
        %3149 = vmatpush1.bf16.msra.mxu0 %v2858
        %3150 = vmatprep.subr.bf16.mxu0 0
        %3151 = vmatpush1.bf16.msra.mxu0 %v2859
        %3152 = vmatprep.subr.bf16.mxu0 0
        %3153 = vmatpush1.bf16.msra.mxu0 %v2860
        %3154 = vmatprep.subr.bf16.mxu0 0
        %3155 = vmatpush1.bf16.msra.mxu0 %v2861
        %3156 = vmatprep.subr.bf16.mxu0 0
        %3157 = vmatpush1.bf16.msra.mxu0 %v2862
        %3158 = vmatprep.subr.bf16.mxu0 0
        %3159 = vmatpush1.bf16.msra.mxu0 %v2863
        %3160 = vmatprep.subr.bf16.mxu0 0
        %3161 = vmatpush1.bf16.msra.mxu0 %v2864
        %3162 = vmatprep.subr.bf16.mxu0 0
        %3163 = vmatpush1.bf16.msra.mxu0 0
        %3164 = vmatprep.subr.bf16.mxu0 0
        %3165 = vmatpush1.bf16.msra.mxu0 0
        %3166 = vmatprep.subr.bf16.mxu0 0
        %3167 = vmatpush1.bf16.msra.mxu0 0
        %3168 = vmatprep.subr.bf16.mxu0 0
        %3169 = vmatpush1.bf16.msra.mxu0 0
        %3170 = vmatprep.subr.bf16.mxu0 0
        %3171 = vmatpush1.bf16.msra.mxu0 0
        %3172 = vmatprep.subr.bf16.mxu0 0
        %3173 = vmatpush1.bf16.msra.mxu0 0
        %3174 = vmatprep.subr.bf16.mxu0 0
        %3175 = vmatpush1.bf16.msra.mxu0 0
        %3176 = vmatprep.subr.bf16.mxu0 0
        %3177 = vmatpush1.bf16.msra.mxu0 0
        %3178 = vmatprep.mubr.bf16.mxu0 0
        %3179 = vmatmul.mubr.bf16.gmra.mrb[0].mxu0 %v3138
        %v3180 = vpop.f32.mrb[0].mxu0
        %v3181 = vadd.f32 0.0, %v3180
        %v3182 = vpop.f32.mrb[0].mxu0
        %v3183 = vpop.f32.mrb[0].mxu0
        %v3184 = vadd.f32 0.0, %v3183
        %v3185 = vpop.f32.mrb[0].mxu0
        %3186 = vmatprep.mubr.bf16.mxu0 0
        %3187 = vmatmul.mubr.bf16.gmra.mrb[0].mxu0 %v3139
        %v3188 = vpop.f32.mrb[0].mxu0
        %v3189 = vadd.f32 0.0, %v3188
        %v3190 = vpop.f32.mrb[0].mxu0
        %v3191 = vpop.f32.mrb[0].mxu0
        %v3192 = vadd.f32 0.0, %v3191
        %v3193 = vpop.f32.mrb[0].mxu0
        %3194 = vmatprep.mubr.bf16.mxu0 0
        %3195 = vmatmul.mubr.bf16.gmra.mrb[0].mxu0 %v3140
        %v3196 = vpop.f32.mrb[0].mxu0
        %v3197 = vadd.f32 0.0, %v3196
        %v3198 = vpop.f32.mrb[0].mxu0
        %v3199 = vpop.f32.mrb[0].mxu0
        %v3200 = vadd.f32 0.0, %v3199
        %v3201 = vpop.f32.mrb[0].mxu0
        %3202 = vmatprep.mubr.bf16.mxu0 0
        %3203 = vmatmul.mubr.bf16.gmra.mrb[0].mxu0 %v3141
        %v3204 = vpop.f32.mrb[0].mxu0
        %v3205 = vadd.f32 0.0, %v3204
        %v3206 = vpop.f32.mrb[0].mxu0
        %v3207 = vpop.f32.mrb[0].mxu0
        %v3208 = vadd.f32 0.0, %v3207
        %v3209 = vpop.f32.mrb[0].mxu0
        %3210 = vmatprep.mubr.bf16.mxu0 0
        %3211 = vmatmul.mubr.bf16.gmra.mrb[0].mxu0 %v3142
        %v3212 = vpop.f32.mrb[0].mxu0
        %v3213 = vadd.f32 0.0, %v3212
        %v3214 = vpop.f32.mrb[0].mxu0
        %v3215 = vpop.f32.mrb[0].mxu0
        %v3216 = vadd.f32 0.0, %v3215
        %v3217 = vpop.f32.mrb[0].mxu0
        %3218 = vmatprep.mubr.bf16.mxu0 0
        %3219 = vmatmul.mubr.bf16.gmra.mrb[0].mxu0 %v3143
        %v3220 = vpop.f32.mrb[0].mxu0
        %v3221 = vadd.f32 0.0, %v3220
        %v3222 = vpop.f32.mrb[0].mxu0
        %v3223 = vpop.f32.mrb[0].mxu0
        %v3224 = vadd.f32 0.0, %v3223
        %v3225 = vpop.f32.mrb[0].mxu0
        %3226 = vmatprep.mubr.bf16.mxu0 0
        %3227 = vmatmul.mubr.bf16.gmra.mrb[0].mxu0 %v3144
        %v3228 = vpop.f32.mrb[0].mxu0
        %v3229 = vadd.f32 0.0, %v3228
        %v3230 = vpop.f32.mrb[0].mxu0
        %v3231 = vpop.f32.mrb[0].mxu0
        %v3232 = vadd.f32 0.0, %v3231
        %v3233 = vpop.f32.mrb[0].mxu0
        %3234 = vmatprep.mubr.bf16.mxu0 0
        %3235 = vmatmul.mubr.bf16.gmra.mrb[0].mxu0 %v3145
        %v3236 = vpop.f32.mrb[0].mxu0
        %v3237 = vadd.f32 0.0, %v3236
        %v3238 = vpop.f32.mrb[0].mxu0
        %v3239 = vpop.f32.mrb[0].mxu0
        %v3240 = vadd.f32 0.0, %v3239
        %v3241 = vpop.f32.mrb[0].mxu0
        %3242 = vdwg.mxu0
        %v3243 = vrcp.pop %v3107
        %v3244 = vrcp.pop %v3109
        %v3245 = vrcp.pop %v3111
        %v3246 = vrcp.pop %v3113
        %v3247 = vrcp.pop %v3115
        %v3248 = vrcp.pop %v3117
        %v3249 = vrcp.pop %v3119
        %v3250 = vrcp.pop %v3121
        %v3251 = vrcp.pop %v3123
        %v3252 = vrcp.pop %v3125
        %v3253 = vrcp.pop %v3127
        %v3254 = vrcp.pop %v3129
        %v3255 = vrcp.pop %v3131
        %v3256 = vrcp.pop %v3133
        %v3257 = vrcp.pop %v3135
        %v3258 = vrcp.pop %v3137
        %v3259 = vmul.f32 %v3181, %v3243
        %v3260 = vmul.f32 %v3184, %v3244
        %v3261 = vmul.f32 %v3189, %v3245
        %v3262 = vmul.f32 %v3192, %v3246
        %v3263 = vmul.f32 %v3197, %v3247
        %v3264 = vmul.f32 %v3200, %v3248
        %v3265 = vmul.f32 %v3205, %v3249
        %v3266 = vmul.f32 %v3208, %v3250
        %v3267 = vmul.f32 %v3213, %v3251
        %v3268 = vmul.f32 %v3216, %v3252
        %v3269 = vmul.f32 %v3221, %v3253
        %v3270 = vmul.f32 %v3224, %v3254
        %v3271 = vmul.f32 %v3229, %v3255
        %v3272 = vmul.f32 %v3232, %v3256
        %v3273 = vmul.f32 %v3237, %v3257
        %v3274 = vmul.f32 %v3240, %v3258
        %v3275 = vld [vmem:[#allocation3] sm:$0xff]
        %v3276 = vld [vmem:[#allocation3 + $0x8] sm:$0xff]
        %v3277 = vld [vmem:[#allocation3 + $0x10] sm:$0xff]
        %v3278 = vld [vmem:[#allocation3 + $0x18] sm:$0xff]
        %v3279 = vld [vmem:[#allocation3 + $0x20] sm:$0xff]
        %v3280 = vld [vmem:[#allocation3 + $0x28] sm:$0xff]
        %v3281 = vld [vmem:[#allocation3 + $0x30] sm:$0xff]
        %v3282 = vld [vmem:[#allocation3 + $0x38] sm:$0xff]
        %v3283 = vld [vmem:[#allocation3 + $0x40] sm:$0xff]
        %v3284 = vld [vmem:[#allocation3 + $0x48] sm:$0xff]
        %v3285 = vld [vmem:[#allocation3 + $0x50] sm:$0xff]
        %v3286 = vld [vmem:[#allocation3 + $0x58] sm:$0xff]
        %v3287 = vld [vmem:[#allocation3 + $0x60] sm:$0xff]
        %v3288 = vld [vmem:[#allocation3 + $0x68] sm:$0xff]
        %v3289 = vld [vmem:[#allocation3 + $0x70] sm:$0xff]
        %v3290 = vld [vmem:[#allocation3 + $0x78] sm:$0xff]
        %v3291 = vpack.c.bf16 %v3260, %v3259
        %v3292 = vpack.c.bf16 %v3262, %v3261
        %v3293 = vpack.c.bf16 %v3264, %v3263
        %v3294 = vpack.c.bf16 %v3266, %v3265
        %v3295 = vpack.c.bf16 %v3268, %v3267
        %v3296 = vpack.c.bf16 %v3270, %v3269
        %v3297 = vpack.c.bf16 %v3272, %v3271
        %v3298 = vpack.c.bf16 %v3274, %v3273
        %s3299 = scalar_lea.vmem [#allocation9], 32
        %v3300 = vld [vmem:[%s3299] sm:$0xf]
        %v3301 = vld [vmem:[%s3299 + $0x4] sm:$0xf]
        %v3302 = vld [vmem:[%s3299 + $0x8] sm:$0xf]
        %v3303 = vld [vmem:[%s3299 + $0xc] sm:$0xf]
        %v3308 = vunpack.c.l.b16 %v3300
        %v3309 = vunpack.c.l.b16 %v3301
        %v3310 = vunpack.c.l.b16 %v3302
        %v3311 = vunpack.c.l.b16 %v3303
        %v3312 = vpack.c.b16 %v3309, %v3308
        %v3313 = vpack.c.b16 %v3311, %v3310
        %v3317 = vsel %vm1164, %v3291, 0
        %v3320 = vsel %vm1164, %v3292, 0
        %v3323 = vsel %vm1164, %v3293, 0
        %v3326 = vsel %vm1164, %v3294, 0
        %v3329 = vsel %vm1164, %v3295, 0
        %v3332 = vsel %vm1164, %v3296, 0
        %v3335 = vsel %vm1164, %v3297, 0
        %v3338 = vsel %vm1164, %v3298, 0
        %3340 = vmatprep.subr.bf16.mxu0 0
        %3341 = vmatpush1.bf16.msra.mxu0 %v3312
        %3342 = vmatprep.subr.bf16.mxu0 0
        %3343 = vmatpush1.bf16.msra.mxu0 %v3313
        %3344 = vmatprep.subr.bf16.mxu0 0
        %3345 = vmatpush1.bf16.msra.mxu0 0
        %3346 = vmatprep.subr.bf16.mxu0 0
        %3347 = vmatpush1.bf16.msra.mxu0 0
        %3348 = vmatprep.subr.bf16.mxu0 0
        %3349 = vmatpush1.bf16.msra.mxu0 0
        %3350 = vmatprep.subr.bf16.mxu0 0
        %3351 = vmatpush1.bf16.msra.mxu0 0
        %3352 = vmatprep.subr.bf16.mxu0 0
        %3353 = vmatpush1.bf16.msra.mxu0 0
        %3354 = vmatprep.subr.bf16.mxu0 0
        %3355 = vmatpush1.bf16.msra.mxu0 0
        %3356 = vmatprep.subr.bf16.mxu0 0
        %3357 = vmatpush1.bf16.msra.mxu0 0
        %3358 = vmatprep.subr.bf16.mxu0 0
        %3359 = vmatpush1.bf16.msra.mxu0 0
        %3360 = vmatprep.subr.bf16.mxu0 0
        %3361 = vmatpush1.bf16.msra.mxu0 0
        %3362 = vmatprep.subr.bf16.mxu0 0
        %3363 = vmatpush1.bf16.msra.mxu0 0
        %3364 = vmatprep.subr.bf16.mxu0 0
        %3365 = vmatpush1.bf16.msra.mxu0 0
        %3366 = vmatprep.subr.bf16.mxu0 0
        %3367 = vmatpush1.bf16.msra.mxu0 0
        %3368 = vmatprep.subr.bf16.mxu0 0
        %3369 = vmatpush1.bf16.msra.mxu0 0
        %3370 = vmatprep.subr.bf16.mxu0 0
        %3371 = vmatpush1.bf16.msra.mxu0 0
        %3372 = vmatprep.mubr.bf16.mxu0 0
        %3373 = vmatmul.mubr.bf16.gmra.mrb[0].mxu0 %v3317
        %v3374 = vpop.f32.mrb[0].mxu0
        %v3375 = vadd.f32 0.0, %v3374
        %v3376 = vpop.f32.mrb[0].mxu0
        %v3377 = vpop.f32.mrb[0].mxu0
        %v3378 = vadd.f32 0.0, %v3377
        %v3379 = vpop.f32.mrb[0].mxu0
        %3380 = vmatprep.mubr.bf16.mxu0 0
        %3381 = vmatmul.mubr.bf16.gmra.mrb[0].mxu0 %v3320
        %v3382 = vpop.f32.mrb[0].mxu0
        %v3383 = vadd.f32 0.0, %v3382
        %v3384 = vpop.f32.mrb[0].mxu0
        %v3385 = vpop.f32.mrb[0].mxu0
        %v3386 = vadd.f32 0.0, %v3385
        %v3387 = vpop.f32.mrb[0].mxu0
        %3388 = vmatprep.mubr.bf16.mxu0 0
        %3389 = vmatmul.mubr.bf16.gmra.mrb[0].mxu0 %v3323
        %v3390 = vpop.f32.mrb[0].mxu0
        %v3391 = vadd.f32 0.0, %v3390
        %v3392 = vpop.f32.mrb[0].mxu0
        %v3393 = vpop.f32.mrb[0].mxu0
        %v3394 = vadd.f32 0.0, %v3393
        %v3395 = vpop.f32.mrb[0].mxu0
        %3396 = vmatprep.mubr.bf16.mxu0 0
        %3397 = vmatmul.mubr.bf16.gmra.mrb[0].mxu0 %v3326
        %v3398 = vpop.f32.mrb[0].mxu0
        %v3399 = vadd.f32 0.0, %v3398
        %v3400 = vpop.f32.mrb[0].mxu0
        %v3401 = vpop.f32.mrb[0].mxu0
        %v3402 = vadd.f32 0.0, %v3401
        %v3403 = vpop.f32.mrb[0].mxu0
        %3404 = vmatprep.mubr.bf16.mxu0 0
        %3405 = vmatmul.mubr.bf16.gmra.mrb[0].mxu0 %v3329
        %v3406 = vpop.f32.mrb[0].mxu0
        %v3407 = vadd.f32 0.0, %v3406
        %v3408 = vpop.f32.mrb[0].mxu0
        %v3409 = vpop.f32.mrb[0].mxu0
        %v3410 = vadd.f32 0.0, %v3409
        %v3411 = vpop.f32.mrb[0].mxu0
        %3412 = vmatprep.mubr.bf16.mxu0 0
        %3413 = vmatmul.mubr.bf16.gmra.mrb[0].mxu0 %v3332
        %v3414 = vpop.f32.mrb[0].mxu0
        %v3415 = vadd.f32 0.0, %v3414
        %v3416 = vpop.f32.mrb[0].mxu0
        %v3417 = vpop.f32.mrb[0].mxu0
        %v3418 = vadd.f32 0.0, %v3417
        %v3419 = vpop.f32.mrb[0].mxu0
        %3420 = vmatprep.mubr.bf16.mxu0 0
        %3421 = vmatmul.mubr.bf16.gmra.mrb[0].mxu0 %v3335
        %v3422 = vpop.f32.mrb[0].mxu0
        %v3423 = vadd.f32 0.0, %v3422
        %v3424 = vpop.f32.mrb[0].mxu0
        %v3425 = vpop.f32.mrb[0].mxu0
        %v3426 = vadd.f32 0.0, %v3425
        %v3427 = vpop.f32.mrb[0].mxu0
        %3428 = vmatprep.mubr.bf16.mxu0 0
        %3429 = vmatmul.mubr.bf16.gmra.mrb[0].mxu0 %v3338
        %v3430 = vpop.f32.mrb[0].mxu0
        %v3431 = vadd.f32 0.0, %v3430
        %v3432 = vpop.f32.mrb[0].mxu0
        %v3433 = vpop.f32.mrb[0].mxu0
        %v3434 = vadd.f32 0.0, %v3433
        %v3435 = vpop.f32.mrb[0].mxu0
        %3436 = vdwg.mxu0
        %v3437 = vadd.f32 %v3275, %v3375
        %v3438 = vadd.f32 %v3276, %v3378
        %v3439 = vadd.f32 %v3277, %v3383
        %v3440 = vadd.f32 %v3278, %v3386
        %v3441 = vadd.f32 %v3279, %v3391
        %v3442 = vadd.f32 %v3280, %v3394
        %v3443 = vadd.f32 %v3281, %v3399
        %v3444 = vadd.f32 %v3282, %v3402
        %v3445 = vadd.f32 %v3283, %v3407
        %v3446 = vadd.f32 %v3284, %v3410
        %v3447 = vadd.f32 %v3285, %v3415
        %v3448 = vadd.f32 %v3286, %v3418
        %v3449 = vadd.f32 %v3287, %v3423
        %v3450 = vadd.f32 %v3288, %v3426
        %v3451 = vadd.f32 %v3289, %v3431
        %v3452 = vadd.f32 %v3290, %v3434
        %3453 = vst [vmem:[#allocation3] sm:$0xff] %v3437
        %3454 = vst [vmem:[#allocation3 + $0x8] sm:$0xff] %v3438
        %3455 = vst [vmem:[#allocation3 + $0x10] sm:$0xff] %v3439
        %3456 = vst [vmem:[#allocation3 + $0x18] sm:$0xff] %v3440
        %3457 = vst [vmem:[#allocation3 + $0x20] sm:$0xff] %v3441
        %3458 = vst [vmem:[#allocation3 + $0x28] sm:$0xff] %v3442
        %3459 = vst [vmem:[#allocation3 + $0x30] sm:$0xff] %v3443
        %3460 = vst [vmem:[#allocation3 + $0x38] sm:$0xff] %v3444
        %3461 = vst [vmem:[#allocation3 + $0x40] sm:$0xff] %v3445
        %3462 = vst [vmem:[#allocation3 + $0x48] sm:$0xff] %v3446
        %3463 = vst [vmem:[#allocation3 + $0x50] sm:$0xff] %v3447
        %3464 = vst [vmem:[#allocation3 + $0x58] sm:$0xff] %v3448
        %3465 = vst [vmem:[#allocation3 + $0x60] sm:$0xff] %v3449
        %3466 = vst [vmem:[#allocation3 + $0x68] sm:$0xff] %v3450
        %3467 = vst [vmem:[#allocation3 + $0x70] sm:$0xff] %v3451
        %3468 = vst [vmem:[#allocation3 + $0x78] sm:$0xff] %v3452
        %v3469 = vld [vmem:[%s1271] sm:$0xff]
        %v3470 = vld [vmem:[%s1271 + $0x8] sm:$0xff]
        %v3471 = vld [vmem:[%s1271 + $0x10] sm:$0xff]
        %v3472 = vld [vmem:[%s1271 + $0x18] sm:$0xff]
        %v3473 = vld [vmem:[%s1271 + $0x20] sm:$0xff]
        %v3474 = vld [vmem:[%s1271 + $0x28] sm:$0xff]
        %v3475 = vld [vmem:[%s1271 + $0x30] sm:$0xff]
        %v3476 = vld [vmem:[%s1271 + $0x38] sm:$0xff]
        %v3477 = vld [vmem:[%s1387] sm:$0xff]
        %v3478 = vld [vmem:[%s1387 + $0x8] sm:$0xff]
        %v3479 = vld [vmem:[%s1387 + $0x10] sm:$0xff]
        %v3480 = vld [vmem:[%s1387 + $0x18] sm:$0xff]
        %v3481 = vld [vmem:[%s1387 + $0x20] sm:$0xff]
        %v3482 = vld [vmem:[%s1387 + $0x28] sm:$0xff]
        %v3483 = vld [vmem:[%s1387 + $0x30] sm:$0xff]
        %v3484 = vld [vmem:[%s1387 + $0x38] sm:$0xff]
        %v3485 = vld [vmem:[%s1503] sm:$0xff]
        %v3486 = vld [vmem:[%s1503 + $0x8] sm:$0xff]
        %v3487 = vld [vmem:[%s1503 + $0x10] sm:$0xff]
        %v3488 = vld [vmem:[%s1503 + $0x18] sm:$0xff]
        %v3489 = vld [vmem:[%s1503 + $0x20] sm:$0xff]
        %v3490 = vld [vmem:[%s1503 + $0x28] sm:$0xff]
        %v3491 = vld [vmem:[%s1503 + $0x30] sm:$0xff]
        %v3492 = vld [vmem:[%s1503 + $0x38] sm:$0xff]
        %v3494 = vsel %vm1164, %v3469, 0
        %v3497 = vsel %vm1164, %v3470, 0
        %v3500 = vsel %vm1164, %v3471, 0
        %v3503 = vsel %vm1164, %v3472, 0
        %v3506 = vsel %vm1164, %v3473, 0
        %v3509 = vsel %vm1164, %v3474, 0
        %v3512 = vsel %vm1164, %v3475, 0
        %v3515 = vsel %vm1164, %v3476, 0
        %v3518 = vsel %vm1164, %v3477, 0
        %v3521 = vsel %vm1164, %v3478, 0
        %v3524 = vsel %vm1164, %v3479, 0
        %v3527 = vsel %vm1164, %v3480, 0
        %v3530 = vsel %vm1164, %v3481, 0
        %v3533 = vsel %vm1164, %v3482, 0
        %v3536 = vsel %vm1164, %v3483, 0
        %v3539 = vsel %vm1164, %v3484, 0
        %3541 = vmatprep.subr.bf16.mxu0 0
        %3542 = vmatpush1.bf16.xpose.msra.mxu0 %v3518
        %3543 = vmatprep.subr.bf16.mxu0 0
        %3544 = vmatpush1.bf16.xpose.msra.mxu0 %v3521
        %3545 = vmatprep.subr.bf16.mxu0 0
        %3546 = vmatpush1.bf16.xpose.msra.mxu0 %v3524
        %3547 = vmatprep.subr.bf16.mxu0 0
        %3548 = vmatpush1.bf16.xpose.msra.mxu0 %v3527
        %3549 = vmatprep.subr.bf16.mxu0 0
        %3550 = vmatpush1.bf16.xpose.msra.mxu0 %v3530
        %3551 = vmatprep.subr.bf16.mxu0 0
        %3552 = vmatpush1.bf16.xpose.msra.mxu0 %v3533
        %3553 = vmatprep.subr.bf16.mxu0 0
        %3554 = vmatpush1.bf16.xpose.msra.mxu0 %v3536
        %3555 = vmatprep.subr.bf16.mxu0 0
        %3556 = vmatpush1.bf16.xpose.msra.mxu0 %v3539
        %3557 = vmatprep.subr.bf16.mxu0 0
        %3558 = vmatpush1.bf16.xpose.msra.mxu0 0
        %3559 = vmatprep.subr.bf16.mxu0 0
        %3560 = vmatpush1.bf16.xpose.msra.mxu0 0
        %3561 = vmatprep.subr.bf16.mxu0 0
        %3562 = vmatpush1.bf16.xpose.msra.mxu0 0
        %3563 = vmatprep.subr.bf16.mxu0 0
        %3564 = vmatpush1.bf16.xpose.msra.mxu0 0
        %3565 = vmatprep.subr.bf16.mxu0 0
        %3566 = vmatpush1.bf16.xpose.msra.mxu0 0
        %3567 = vmatprep.subr.bf16.mxu0 0
        %3568 = vmatpush1.bf16.xpose.msra.mxu0 0
        %3569 = vmatprep.subr.bf16.mxu0 0
        %3570 = vmatpush1.bf16.xpose.msra.mxu0 0
        %3571 = vmatprep.subr.bf16.mxu0 0
        %3572 = vmatpush1.bf16.xpose.msra.mxu0 0
        %3573 = vmatprep.mubr.bf16.mxu0 0
        %3574 = vmatmul.mubr.bf16.gmra.mrb[0].mxu0 %v3494
        %v3575 = vpop.f32.mrb[0].mxu0
        %v3576 = vadd.f32 0.0, %v3575
        %v3577 = vpop.f32.mrb[0].mxu0
        %v3578 = vpop.f32.mrb[0].mxu0
        %v3579 = vadd.f32 0.0, %v3578
        %v3580 = vpop.f32.mrb[0].mxu0
        %3581 = vmatprep.mubr.bf16.mxu0 0
        %3582 = vmatmul.mubr.bf16.gmra.mrb[0].mxu0 %v3497
        %v3583 = vpop.f32.mrb[0].mxu0
        %v3584 = vadd.f32 0.0, %v3583
        %v3585 = vpop.f32.mrb[0].mxu0
        %v3586 = vpop.f32.mrb[0].mxu0
        %v3587 = vadd.f32 0.0, %v3586
        %v3588 = vpop.f32.mrb[0].mxu0
        %3589 = vmatprep.mubr.bf16.mxu0 0
        %3590 = vmatmul.mubr.bf16.gmra.mrb[0].mxu0 %v3500
        %v3591 = vpop.f32.mrb[0].mxu0
        %v3592 = vadd.f32 0.0, %v3591
        %v3593 = vpop.f32.mrb[0].mxu0
        %v3594 = vpop.f32.mrb[0].mxu0
        %v3595 = vadd.f32 0.0, %v3594
        %v3596 = vpop.f32.mrb[0].mxu0
        %3597 = vmatprep.mubr.bf16.mxu0 0
        %3598 = vmatmul.mubr.bf16.gmra.mrb[0].mxu0 %v3503
        %v3599 = vpop.f32.mrb[0].mxu0
        %v3600 = vadd.f32 0.0, %v3599
        %v3601 = vpop.f32.mrb[0].mxu0
        %v3602 = vpop.f32.mrb[0].mxu0
        %v3603 = vadd.f32 0.0, %v3602
        %v3604 = vpop.f32.mrb[0].mxu0
        %3605 = vmatprep.mubr.bf16.mxu0 0
        %3606 = vmatmul.mubr.bf16.gmra.mrb[0].mxu0 %v3506
        %v3607 = vpop.f32.mrb[0].mxu0
        %v3608 = vadd.f32 0.0, %v3607
        %v3609 = vpop.f32.mrb[0].mxu0
        %v3610 = vpop.f32.mrb[0].mxu0
        %v3611 = vadd.f32 0.0, %v3610
        %v3612 = vpop.f32.mrb[0].mxu0
        %3613 = vmatprep.mubr.bf16.mxu0 0
        %3614 = vmatmul.mubr.bf16.gmra.mrb[0].mxu0 %v3509
        %v3615 = vpop.f32.mrb[0].mxu0
        %v3616 = vadd.f32 0.0, %v3615
        %v3617 = vpop.f32.mrb[0].mxu0
        %v3618 = vpop.f32.mrb[0].mxu0
        %v3619 = vadd.f32 0.0, %v3618
        %v3620 = vpop.f32.mrb[0].mxu0
        %3621 = vmatprep.mubr.bf16.mxu0 0
        %3622 = vmatmul.mubr.bf16.gmra.mrb[0].mxu0 %v3512
        %v3623 = vpop.f32.mrb[0].mxu0
        %v3624 = vadd.f32 0.0, %v3623
        %v3625 = vpop.f32.mrb[0].mxu0
        %v3626 = vpop.f32.mrb[0].mxu0
        %v3627 = vadd.f32 0.0, %v3626
        %v3628 = vpop.f32.mrb[0].mxu0
        %3629 = vmatprep.mubr.bf16.mxu0 0
        %3630 = vmatmul.mubr.bf16.gmra.mrb[0].mxu0 %v3515
        %v3631 = vpop.f32.mrb[0].mxu0
        %v3632 = vadd.f32 0.0, %v3631
        %v3633 = vpop.f32.mrb[0].mxu0
        %v3634 = vpop.f32.mrb[0].mxu0
        %v3635 = vadd.f32 0.0, %v3634
        %v3636 = vpop.f32.mrb[0].mxu0
        %3637 = vdwg.mxu0
        %v3638 = vsel %vm1570, %v3576, -1e+30
        %v3639 = vsel %vm1571, %v3579, -1e+30
        %v3640 = vsel %vm1572, %v3584, -1e+30
        %v3641 = vsel %vm1573, %v3587, -1e+30
        %v3642 = vsel %vm1574, %v3592, -1e+30
        %v3643 = vsel %vm1575, %v3595, -1e+30
        %v3644 = vsel %vm1576, %v3600, -1e+30
        %v3645 = vsel %vm1577, %v3603, -1e+30
        %v3646 = vsel %vm1578, %v3608, -1e+30
        %v3647 = vsel %vm1579, %v3611, -1e+30
        %v3648 = vsel %vm1580, %v3616, -1e+30
        %v3649 = vsel %vm1581, %v3619, -1e+30
        %v3650 = vsel %vm1582, %v3624, -1e+30
        %v3651 = vsel %vm1583, %v3627, -1e+30
        %v3652 = vsel %vm1584, %v3632, -1e+30
        %v3653 = vsel %vm1585, %v3635, -1e+30
        %3654 = vmax.xlane.f32.xlu0 %v3638
        %v3655 = vpop.xlane.xlu0 %3654
        %3656 = vmax.xlane.f32.xlu0 %v3639
        %v3657 = vpop.xlane.xlu0 %3656
        %3658 = vmax.xlane.f32.xlu0 %v3640
        %v3659 = vpop.xlane.xlu0 %3658
        %3660 = vmax.xlane.f32.xlu0 %v3641
        %v3661 = vpop.xlane.xlu0 %3660
        %3662 = vmax.xlane.f32.xlu0 %v3642
        %v3663 = vpop.xlane.xlu0 %3662
        %3664 = vmax.xlane.f32.xlu0 %v3643
        %v3665 = vpop.xlane.xlu0 %3664
        %3666 = vmax.xlane.f32.xlu0 %v3644
        %v3667 = vpop.xlane.xlu0 %3666
        %3668 = vmax.xlane.f32.xlu0 %v3645
        %v3669 = vpop.xlane.xlu0 %3668
        %3670 = vmax.xlane.f32.xlu0 %v3646
        %v3671 = vpop.xlane.xlu0 %3670
        %3672 = vmax.xlane.f32.xlu0 %v3647
        %v3673 = vpop.xlane.xlu0 %3672
        %3674 = vmax.xlane.f32.xlu0 %v3648
        %v3675 = vpop.xlane.xlu0 %3674
        %3676 = vmax.xlane.f32.xlu0 %v3649
        %v3677 = vpop.xlane.xlu0 %3676
        %3678 = vmax.xlane.f32.xlu0 %v3650
        %v3679 = vpop.xlane.xlu0 %3678
        %3680 = vmax.xlane.f32.xlu0 %v3651
        %v3681 = vpop.xlane.xlu0 %3680
        %3682 = vmax.xlane.f32.xlu0 %v3652
        %v3683 = vpop.xlane.xlu0 %3682
        %3684 = vmax.xlane.f32.xlu0 %v3653
        %v3685 = vpop.xlane.xlu0 %3684
        %v3686 = vsub.f32 %v3638, %v3655
        %v3687 = vsub.f32 %v3639, %v3657
        %v3688 = vsub.f32 %v3640, %v3659
        %v3689 = vsub.f32 %v3641, %v3661
        %v3690 = vsub.f32 %v3642, %v3663
        %v3691 = vsub.f32 %v3643, %v3665
        %v3692 = vsub.f32 %v3644, %v3667
        %v3693 = vsub.f32 %v3645, %v3669
        %v3694 = vsub.f32 %v3646, %v3671
        %v3695 = vsub.f32 %v3647, %v3673
        %v3696 = vsub.f32 %v3648, %v3675
        %v3697 = vsub.f32 %v3649, %v3677
        %v3698 = vsub.f32 %v3650, %v3679
        %v3699 = vsub.f32 %v3651, %v3681
        %v3700 = vsub.f32 %v3652, %v3683
        %v3701 = vsub.f32 %v3653, %v3685
        %v3702 = vmul.f32 %v3686, 1.442695
        %v3703 = vpow.pop %v3702
        %v3704 = vmul.f32 %v3687, 1.442695
        %v3705 = vpow.pop %v3704
        %v3706 = vmul.f32 %v3688, 1.442695
        %v3707 = vpow.pop %v3706
        %v3708 = vmul.f32 %v3689, 1.442695
        %v3709 = vpow.pop %v3708
        %v3710 = vmul.f32 %v3690, 1.442695
        %v3711 = vpow.pop %v3710
        %v3712 = vmul.f32 %v3691, 1.442695
        %v3713 = vpow.pop %v3712
        %v3714 = vmul.f32 %v3692, 1.442695
        %v3715 = vpow.pop %v3714
        %v3716 = vmul.f32 %v3693, 1.442695
        %v3717 = vpow.pop %v3716
        %v3718 = vmul.f32 %v3694, 1.442695
        %v3719 = vpow.pop %v3718
        %v3720 = vmul.f32 %v3695, 1.442695
        %v3721 = vpow.pop %v3720
        %v3722 = vmul.f32 %v3696, 1.442695
        %v3723 = vpow.pop %v3722
        %v3724 = vmul.f32 %v3697, 1.442695
        %v3725 = vpow.pop %v3724
        %v3726 = vmul.f32 %v3698, 1.442695
        %v3727 = vpow.pop %v3726
        %v3728 = vmul.f32 %v3699, 1.442695
        %v3729 = vpow.pop %v3728
        %v3730 = vmul.f32 %v3700, 1.442695
        %v3731 = vpow.pop %v3730
        %v3732 = vmul.f32 %v3701, 1.442695
        %v3733 = vpow.pop %v3732
        %3734 = vadd.xlane.f32.xlu0 %v3703
        %v3735 = vpop.xlane.xlu0 %3734
        %3736 = vadd.xlane.f32.xlu0 %v3705
        %v3737 = vpop.xlane.xlu0 %3736
        %3738 = vadd.xlane.f32.xlu0 %v3707
        %v3739 = vpop.xlane.xlu0 %3738
        %3740 = vadd.xlane.f32.xlu0 %v3709
        %v3741 = vpop.xlane.xlu0 %3740
        %3742 = vadd.xlane.f32.xlu0 %v3711
        %v3743 = vpop.xlane.xlu0 %3742
        %3744 = vadd.xlane.f32.xlu0 %v3713
        %v3745 = vpop.xlane.xlu0 %3744
        %3746 = vadd.xlane.f32.xlu0 %v3715
        %v3747 = vpop.xlane.xlu0 %3746
        %3748 = vadd.xlane.f32.xlu0 %v3717
        %v3749 = vpop.xlane.xlu0 %3748
        %3750 = vadd.xlane.f32.xlu0 %v3719
        %v3751 = vpop.xlane.xlu0 %3750
        %3752 = vadd.xlane.f32.xlu0 %v3721
        %v3753 = vpop.xlane.xlu0 %3752
        %3754 = vadd.xlane.f32.xlu0 %v3723
        %v3755 = vpop.xlane.xlu0 %3754
        %3756 = vadd.xlane.f32.xlu0 %v3725
        %v3757 = vpop.xlane.xlu0 %3756
        %3758 = vadd.xlane.f32.xlu0 %v3727
        %v3759 = vpop.xlane.xlu0 %3758
        %3760 = vadd.xlane.f32.xlu0 %v3729
        %v3761 = vpop.xlane.xlu0 %3760
        %3762 = vadd.xlane.f32.xlu0 %v3731
        %v3763 = vpop.xlane.xlu0 %3762
        %3764 = vadd.xlane.f32.xlu0 %v3733
        %v3765 = vpop.xlane.xlu0 %3764
        %v3766 = vpack.c.bf16 %v3705, %v3703
        %v3767 = vpack.c.bf16 %v3709, %v3707
        %v3768 = vpack.c.bf16 %v3713, %v3711
        %v3769 = vpack.c.bf16 %v3717, %v3715
        %v3770 = vpack.c.bf16 %v3721, %v3719
        %v3771 = vpack.c.bf16 %v3725, %v3723
        %v3772 = vpack.c.bf16 %v3729, %v3727
        %v3773 = vpack.c.bf16 %v3733, %v3731
        %3774 = vmatprep.subr.bf16.mxu0 0
        %3775 = vmatpush1.bf16.msra.mxu0 %v3485
        %3776 = vmatprep.subr.bf16.mxu0 0
        %3777 = vmatpush1.bf16.msra.mxu0 %v3486
        %3778 = vmatprep.subr.bf16.mxu0 0
        %3779 = vmatpush1.bf16.msra.mxu0 %v3487
        %3780 = vmatprep.subr.bf16.mxu0 0
        %3781 = vmatpush1.bf16.msra.mxu0 %v3488
        %3782 = vmatprep.subr.bf16.mxu0 0
        %3783 = vmatpush1.bf16.msra.mxu0 %v3489
        %3784 = vmatprep.subr.bf16.mxu0 0
        %3785 = vmatpush1.bf16.msra.mxu0 %v3490
        %3786 = vmatprep.subr.bf16.mxu0 0
        %3787 = vmatpush1.bf16.msra.mxu0 %v3491
        %3788 = vmatprep.subr.bf16.mxu0 0
        %3789 = vmatpush1.bf16.msra.mxu0 %v3492
        %3790 = vmatprep.subr.bf16.mxu0 0
        %3791 = vmatpush1.bf16.msra.mxu0 0
        %3792 = vmatprep.subr.bf16.mxu0 0
        %3793 = vmatpush1.bf16.msra.mxu0 0
        %3794 = vmatprep.subr.bf16.mxu0 0
        %3795 = vmatpush1.bf16.msra.mxu0 0
        %3796 = vmatprep.subr.bf16.mxu0 0
        %3797 = vmatpush1.bf16.msra.mxu0 0
        %3798 = vmatprep.subr.bf16.mxu0 0
        %3799 = vmatpush1.bf16.msra.mxu0 0
        %3800 = vmatprep.subr.bf16.mxu0 0
        %3801 = vmatpush1.bf16.msra.mxu0 0
        %3802 = vmatprep.subr.bf16.mxu0 0
        %3803 = vmatpush1.bf16.msra.mxu0 0
        %3804 = vmatprep.subr.bf16.mxu0 0
        %3805 = vmatpush1.bf16.msra.mxu0 0
        %3806 = vmatprep.mubr.bf16.mxu0 0
        %3807 = vmatmul.mubr.bf16.gmra.mrb[0].mxu0 %v3766
        %v3808 = vpop.f32.mrb[0].mxu0
        %v3809 = vadd.f32 0.0, %v3808
        %v3810 = vpop.f32.mrb[0].mxu0
        %v3811 = vpop.f32.mrb[0].mxu0
        %v3812 = vadd.f32 0.0, %v3811
        %v3813 = vpop.f32.mrb[0].mxu0
        %3814 = vmatprep.mubr.bf16.mxu0 0
        %3815 = vmatmul.mubr.bf16.gmra.mrb[0].mxu0 %v3767
        %v3816 = vpop.f32.mrb[0].mxu0
        %v3817 = vadd.f32 0.0, %v3816
        %v3818 = vpop.f32.mrb[0].mxu0
        %v3819 = vpop.f32.mrb[0].mxu0
        %v3820 = vadd.f32 0.0, %v3819
        %v3821 = vpop.f32.mrb[0].mxu0
        %3822 = vmatprep.mubr.bf16.mxu0 0
        %3823 = vmatmul.mubr.bf16.gmra.mrb[0].mxu0 %v3768
        %v3824 = vpop.f32.mrb[0].mxu0
        %v3825 = vadd.f32 0.0, %v3824
        %v3826 = vpop.f32.mrb[0].mxu0
        %v3827 = vpop.f32.mrb[0].mxu0
        %v3828 = vadd.f32 0.0, %v3827
        %v3829 = vpop.f32.mrb[0].mxu0
        %3830 = vmatprep.mubr.bf16.mxu0 0
        %3831 = vmatmul.mubr.bf16.gmra.mrb[0].mxu0 %v3769
        %v3832 = vpop.f32.mrb[0].mxu0
        %v3833 = vadd.f32 0.0, %v3832
        %v3834 = vpop.f32.mrb[0].mxu0
        %v3835 = vpop.f32.mrb[0].mxu0
        %v3836 = vadd.f32 0.0, %v3835
        %v3837 = vpop.f32.mrb[0].mxu0
        %3838 = vmatprep.mubr.bf16.mxu0 0
        %3839 = vmatmul.mubr.bf16.gmra.mrb[0].mxu0 %v3770
        %v3840 = vpop.f32.mrb[0].mxu0
        %v3841 = vadd.f32 0.0, %v3840
        %v3842 = vpop.f32.mrb[0].mxu0
        %v3843 = vpop.f32.mrb[0].mxu0
        %v3844 = vadd.f32 0.0, %v3843
        %v3845 = vpop.f32.mrb[0].mxu0
        %3846 = vmatprep.mubr.bf16.mxu0 0
        %3847 = vmatmul.mubr.bf16.gmra.mrb[0].mxu0 %v3771
        %v3848 = vpop.f32.mrb[0].mxu0
        %v3849 = vadd.f32 0.0, %v3848
        %v3850 = vpop.f32.mrb[0].mxu0
        %v3851 = vpop.f32.mrb[0].mxu0
        %v3852 = vadd.f32 0.0, %v3851
        %v3853 = vpop.f32.mrb[0].mxu0
        %3854 = vmatprep.mubr.bf16.mxu0 0
        %3855 = vmatmul.mubr.bf16.gmra.mrb[0].mxu0 %v3772
        %v3856 = vpop.f32.mrb[0].mxu0
        %v3857 = vadd.f32 0.0, %v3856
        %v3858 = vpop.f32.mrb[0].mxu0
        %v3859 = vpop.f32.mrb[0].mxu0
        %v3860 = vadd.f32 0.0, %v3859
        %v3861 = vpop.f32.mrb[0].mxu0
        %3862 = vmatprep.mubr.bf16.mxu0 0
        %3863 = vmatmul.mubr.bf16.gmra.mrb[0].mxu0 %v3773
        %v3864 = vpop.f32.mrb[0].mxu0
        %v3865 = vadd.f32 0.0, %v3864
        %v3866 = vpop.f32.mrb[0].mxu0
        %v3867 = vpop.f32.mrb[0].mxu0
        %v3868 = vadd.f32 0.0, %v3867
        %v3869 = vpop.f32.mrb[0].mxu0
        %3870 = vdwg.mxu0
        %v3871 = vrcp.pop %v3735
        %v3872 = vrcp.pop %v3737
        %v3873 = vrcp.pop %v3739
        %v3874 = vrcp.pop %v3741
        %v3875 = vrcp.pop %v3743
        %v3876 = vrcp.pop %v3745
        %v3877 = vrcp.pop %v3747
        %v3878 = vrcp.pop %v3749
        %v3879 = vrcp.pop %v3751
        %v3880 = vrcp.pop %v3753
        %v3881 = vrcp.pop %v3755
        %v3882 = vrcp.pop %v3757
        %v3883 = vrcp.pop %v3759
        %v3884 = vrcp.pop %v3761
        %v3885 = vrcp.pop %v3763
        %v3886 = vrcp.pop %v3765
        %v3887 = vmul.f32 %v3809, %v3871
        %v3888 = vmul.f32 %v3812, %v3872
        %v3889 = vmul.f32 %v3817, %v3873
        %v3890 = vmul.f32 %v3820, %v3874
        %v3891 = vmul.f32 %v3825, %v3875
        %v3892 = vmul.f32 %v3828, %v3876
        %v3893 = vmul.f32 %v3833, %v3877
        %v3894 = vmul.f32 %v3836, %v3878
        %v3895 = vmul.f32 %v3841, %v3879
        %v3896 = vmul.f32 %v3844, %v3880
        %v3897 = vmul.f32 %v3849, %v3881
        %v3898 = vmul.f32 %v3852, %v3882
        %v3899 = vmul.f32 %v3857, %v3883
        %v3900 = vmul.f32 %v3860, %v3884
        %v3901 = vmul.f32 %v3865, %v3885
        %v3902 = vmul.f32 %v3868, %v3886
        %v3903 = vld [vmem:[#allocation3] sm:$0xff]
        %v3904 = vld [vmem:[#allocation3 + $0x8] sm:$0xff]
        %v3905 = vld [vmem:[#allocation3 + $0x10] sm:$0xff]
        %v3906 = vld [vmem:[#allocation3 + $0x18] sm:$0xff]
        %v3907 = vld [vmem:[#allocation3 + $0x20] sm:$0xff]
        %v3908 = vld [vmem:[#allocation3 + $0x28] sm:$0xff]
        %v3909 = vld [vmem:[#allocation3 + $0x30] sm:$0xff]
        %v3910 = vld [vmem:[#allocation3 + $0x38] sm:$0xff]
        %v3911 = vld [vmem:[#allocation3 + $0x40] sm:$0xff]
        %v3912 = vld [vmem:[#allocation3 + $0x48] sm:$0xff]
        %v3913 = vld [vmem:[#allocation3 + $0x50] sm:$0xff]
        %v3914 = vld [vmem:[#allocation3 + $0x58] sm:$0xff]
        %v3915 = vld [vmem:[#allocation3 + $0x60] sm:$0xff]
        %v3916 = vld [vmem:[#allocation3 + $0x68] sm:$0xff]
        %v3917 = vld [vmem:[#allocation3 + $0x70] sm:$0xff]
        %v3918 = vld [vmem:[#allocation3 + $0x78] sm:$0xff]
        %v3919 = vpack.c.bf16 %v3888, %v3887
        %v3920 = vpack.c.bf16 %v3890, %v3889
        %v3921 = vpack.c.bf16 %v3892, %v3891
        %v3922 = vpack.c.bf16 %v3894, %v3893
        %v3923 = vpack.c.bf16 %v3896, %v3895
        %v3924 = vpack.c.bf16 %v3898, %v3897
        %v3925 = vpack.c.bf16 %v3900, %v3899
        %v3926 = vpack.c.bf16 %v3902, %v3901
        %s3927 = scalar_lea.vmem [#allocation9], 48
        %v3928 = vld [vmem:[%s3927] sm:$0xf]
        %v3929 = vld [vmem:[%s3927 + $0x4] sm:$0xf]
        %v3930 = vld [vmem:[%s3927 + $0x8] sm:$0xf]
        %v3931 = vld [vmem:[%s3927 + $0xc] sm:$0xf]
        %v3936 = vunpack.c.l.b16 %v3928
        %v3937 = vunpack.c.l.b16 %v3929
        %v3938 = vunpack.c.l.b16 %v3930
        %v3939 = vunpack.c.l.b16 %v3931
        %v3940 = vpack.c.b16 %v3937, %v3936
        %v3941 = vpack.c.b16 %v3939, %v3938
        %v3945 = vsel %vm1164, %v3919, 0
        %v3948 = vsel %vm1164, %v3920, 0
        %v3951 = vsel %vm1164, %v3921, 0
        %v3954 = vsel %vm1164, %v3922, 0
        %v3957 = vsel %vm1164, %v3923, 0
        %v3960 = vsel %vm1164, %v3924, 0
        %v3963 = vsel %vm1164, %v3925, 0
        %v3966 = vsel %vm1164, %v3926, 0
        %3968 = vmatprep.subr.bf16.mxu0 0
        %3969 = vmatpush1.bf16.msra.mxu0 %v3940
        %3970 = vmatprep.subr.bf16.mxu0 0
        %3971 = vmatpush1.bf16.msra.mxu0 %v3941
        %3972 = vmatprep.subr.bf16.mxu0 0
        %3973 = vmatpush1.bf16.msra.mxu0 0
        %3974 = vmatprep.subr.bf16.mxu0 0
        %3975 = vmatpush1.bf16.msra.mxu0 0
        %3976 = vmatprep.subr.bf16.mxu0 0
        %3977 = vmatpush1.bf16.msra.mxu0 0
        %3978 = vmatprep.subr.bf16.mxu0 0
        %3979 = vmatpush1.bf16.msra.mxu0 0
        %3980 = vmatprep.subr.bf16.mxu0 0
        %3981 = vmatpush1.bf16.msra.mxu0 0
        %3982 = vmatprep.subr.bf16.mxu0 0
        %3983 = vmatpush1.bf16.msra.mxu0 0
        %3984 = vmatprep.subr.bf16.mxu0 0
        %3985 = vmatpush1.bf16.msra.mxu0 0
        %3986 = vmatprep.subr.bf16.mxu0 0
        %3987 = vmatpush1.bf16.msra.mxu0 0
        %3988 = vmatprep.subr.bf16.mxu0 0
        %3989 = vmatpush1.bf16.msra.mxu0 0
        %3990 = vmatprep.subr.bf16.mxu0 0
        %3991 = vmatpush1.bf16.msra.mxu0 0
        %3992 = vmatprep.subr.bf16.mxu0 0
        %3993 = vmatpush1.bf16.msra.mxu0 0
        %3994 = vmatprep.subr.bf16.mxu0 0
        %3995 = vmatpush1.bf16.msra.mxu0 0
        %3996 = vmatprep.subr.bf16.mxu0 0
        %3997 = vmatpush1.bf16.msra.mxu0 0
        %3998 = vmatprep.subr.bf16.mxu0 0
        %3999 = vmatpush1.bf16.msra.mxu0 0
        %4000 = vmatprep.mubr.bf16.mxu0 0
        %4001 = vmatmul.mubr.bf16.gmra.mrb[0].mxu0 %v3945
        %v4002 = vpop.f32.mrb[0].mxu0
        %v4003 = vadd.f32 0.0, %v4002
        %v4004 = vpop.f32.mrb[0].mxu0
        %v4005 = vpop.f32.mrb[0].mxu0
        %v4006 = vadd.f32 0.0, %v4005
        %v4007 = vpop.f32.mrb[0].mxu0
        %4008 = vmatprep.mubr.bf16.mxu0 0
        %4009 = vmatmul.mubr.bf16.gmra.mrb[0].mxu0 %v3948
        %v4010 = vpop.f32.mrb[0].mxu0
        %v4011 = vadd.f32 0.0, %v4010
        %v4012 = vpop.f32.mrb[0].mxu0
        %v4013 = vpop.f32.mrb[0].mxu0
        %v4014 = vadd.f32 0.0, %v4013
        %v4015 = vpop.f32.mrb[0].mxu0
        %4016 = vmatprep.mubr.bf16.mxu0 0
        %4017 = vmatmul.mubr.bf16.gmra.mrb[0].mxu0 %v3951
        %v4018 = vpop.f32.mrb[0].mxu0
        %v4019 = vadd.f32 0.0, %v4018
        %v4020 = vpop.f32.mrb[0].mxu0
        %v4021 = vpop.f32.mrb[0].mxu0
        %v4022 = vadd.f32 0.0, %v4021
        %v4023 = vpop.f32.mrb[0].mxu0
        %4024 = vmatprep.mubr.bf16.mxu0 0
        %4025 = vmatmul.mubr.bf16.gmra.mrb[0].mxu0 %v3954
        %v4026 = vpop.f32.mrb[0].mxu0
        %v4027 = vadd.f32 0.0, %v4026
        %v4028 = vpop.f32.mrb[0].mxu0
        %v4029 = vpop.f32.mrb[0].mxu0
        %v4030 = vadd.f32 0.0, %v4029
        %v4031 = vpop.f32.mrb[0].mxu0
        %4032 = vmatprep.mubr.bf16.mxu0 0
        %4033 = vmatmul.mubr.bf16.gmra.mrb[0].mxu0 %v3957
        %v4034 = vpop.f32.mrb[0].mxu0
        %v4035 = vadd.f32 0.0, %v4034
        %v4036 = vpop.f32.mrb[0].mxu0
        %v4037 = vpop.f32.mrb[0].mxu0
        %v4038 = vadd.f32 0.0, %v4037
        %v4039 = vpop.f32.mrb[0].mxu0
        %4040 = vmatprep.mubr.bf16.mxu0 0
        %4041 = vmatmul.mubr.bf16.gmra.mrb[0].mxu0 %v3960
        %v4042 = vpop.f32.mrb[0].mxu0
        %v4043 = vadd.f32 0.0, %v4042
        %v4044 = vpop.f32.mrb[0].mxu0
        %v4045 = vpop.f32.mrb[0].mxu0
        %v4046 = vadd.f32 0.0, %v4045
        %v4047 = vpop.f32.mrb[0].mxu0
        %4048 = vmatprep.mubr.bf16.mxu0 0
        %4049 = vmatmul.mubr.bf16.gmra.mrb[0].mxu0 %v3963
        %v4050 = vpop.f32.mrb[0].mxu0
        %v4051 = vadd.f32 0.0, %v4050
        %v4052 = vpop.f32.mrb[0].mxu0
        %v4053 = vpop.f32.mrb[0].mxu0
        %v4054 = vadd.f32 0.0, %v4053
        %v4055 = vpop.f32.mrb[0].mxu0
        %4056 = vmatprep.mubr.bf16.mxu0 0
        %4057 = vmatmul.mubr.bf16.gmra.mrb[0].mxu0 %v3966
        %v4058 = vpop.f32.mrb[0].mxu0
        %v4059 = vadd.f32 0.0, %v4058
        %v4060 = vpop.f32.mrb[0].mxu0
        %v4061 = vpop.f32.mrb[0].mxu0
        %v4062 = vadd.f32 0.0, %v4061
        %v4063 = vpop.f32.mrb[0].mxu0
        %4064 = vdwg.mxu0
        %v4065 = vadd.f32 %v3903, %v4003
        %v4066 = vadd.f32 %v3904, %v4006
        %v4067 = vadd.f32 %v3905, %v4011
        %v4068 = vadd.f32 %v3906, %v4014
        %v4069 = vadd.f32 %v3907, %v4019
        %v4070 = vadd.f32 %v3908, %v4022
        %v4071 = vadd.f32 %v3909, %v4027
        %v4072 = vadd.f32 %v3910, %v4030
        %v4073 = vadd.f32 %v3911, %v4035
        %v4074 = vadd.f32 %v3912, %v4038
        %v4075 = vadd.f32 %v3913, %v4043
        %v4076 = vadd.f32 %v3914, %v4046
        %v4077 = vadd.f32 %v3915, %v4051
        %v4078 = vadd.f32 %v3916, %v4054
        %v4079 = vadd.f32 %v3917, %v4059
        %v4080 = vadd.f32 %v3918, %v4062
        %4081 = vst [vmem:[#allocation3] sm:$0xff] %v4065
        %4082 = vst [vmem:[#allocation3 + $0x8] sm:$0xff] %v4066
        %4083 = vst [vmem:[#allocation3 + $0x10] sm:$0xff] %v4067
        %4084 = vst [vmem:[#allocation3 + $0x18] sm:$0xff] %v4068
        %4085 = vst [vmem:[#allocation3 + $0x20] sm:$0xff] %v4069
        %4086 = vst [vmem:[#allocation3 + $0x28] sm:$0xff] %v4070
        %4087 = vst [vmem:[#allocation3 + $0x30] sm:$0xff] %v4071
        %4088 = vst [vmem:[#allocation3 + $0x38] sm:$0xff] %v4072
        %4089 = vst [vmem:[#allocation3 + $0x40] sm:$0xff] %v4073
        %4090 = vst [vmem:[#allocation3 + $0x48] sm:$0xff] %v4074
        %4091 = vst [vmem:[#allocation3 + $0x50] sm:$0xff] %v4075
        %4092 = vst [vmem:[#allocation3 + $0x58] sm:$0xff] %v4076
        %4093 = vst [vmem:[#allocation3 + $0x60] sm:$0xff] %v4077
        %4094 = vst [vmem:[#allocation3 + $0x68] sm:$0xff] %v4078
        %4095 = vst [vmem:[#allocation3 + $0x70] sm:$0xff] %v4079
        %4096 = vst [vmem:[#allocation3 + $0x78] sm:$0xff] %v4080
        %v4097 = vld [vmem:[#allocation3] sm:$0xff]
        %v4098 = vld [vmem:[#allocation3 + $0x8] sm:$0xff]
        %v4099 = vld [vmem:[#allocation3 + $0x10] sm:$0xff]
        %v4100 = vld [vmem:[#allocation3 + $0x18] sm:$0xff]
        %v4101 = vld [vmem:[#allocation3 + $0x20] sm:$0xff]
        %v4102 = vld [vmem:[#allocation3 + $0x28] sm:$0xff]
        %v4103 = vld [vmem:[#allocation3 + $0x30] sm:$0xff]
        %v4104 = vld [vmem:[#allocation3 + $0x38] sm:$0xff]
        %v4105 = vld [vmem:[#allocation3 + $0x40] sm:$0xff]
        %v4106 = vld [vmem:[#allocation3 + $0x48] sm:$0xff]
        %v4107 = vld [vmem:[#allocation3 + $0x50] sm:$0xff]
        %v4108 = vld [vmem:[#allocation3 + $0x58] sm:$0xff]
        %v4109 = vld [vmem:[#allocation3 + $0x60] sm:$0xff]
        %v4110 = vld [vmem:[#allocation3 + $0x68] sm:$0xff]
        %v4111 = vld [vmem:[#allocation3 + $0x70] sm:$0xff]
        %v4112 = vld [vmem:[#allocation3 + $0x78] sm:$0xff]
        %v4113 = vld [vmem:[%s6] sm:$0x1]
        %v4114 = vld [vmem:[%s7] sm:$0x1]
        %4115 = vadd.xlane.f32.xlu0 %v4097
        %v4116 = vpop.xlane.xlu0 %4115
        %4117 = vadd.xlane.f32.xlu0 %v4098
        %v4118 = vpop.xlane.xlu0 %4117
        %4119 = vadd.xlane.f32.xlu0 %v4099
        %v4120 = vpop.xlane.xlu0 %4119
        %4121 = vadd.xlane.f32.xlu0 %v4100
        %v4122 = vpop.xlane.xlu0 %4121
        %4123 = vadd.xlane.f32.xlu0 %v4101
        %v4124 = vpop.xlane.xlu0 %4123
        %4125 = vadd.xlane.f32.xlu0 %v4102
        %v4126 = vpop.xlane.xlu0 %4125
        %4127 = vadd.xlane.f32.xlu0 %v4103
        %v4128 = vpop.xlane.xlu0 %4127
        %4129 = vadd.xlane.f32.xlu0 %v4104
        %v4130 = vpop.xlane.xlu0 %4129
        %4131 = vadd.xlane.f32.xlu0 %v4105
        %v4132 = vpop.xlane.xlu0 %4131
        %4133 = vadd.xlane.f32.xlu0 %v4106
        %v4134 = vpop.xlane.xlu0 %4133
        %4135 = vadd.xlane.f32.xlu0 %v4107
        %v4136 = vpop.xlane.xlu0 %4135
        %4137 = vadd.xlane.f32.xlu0 %v4108
        %v4138 = vpop.xlane.xlu0 %4137
        %4139 = vadd.xlane.f32.xlu0 %v4109
        %v4140 = vpop.xlane.xlu0 %4139
        %4141 = vadd.xlane.f32.xlu0 %v4110
        %v4142 = vpop.xlane.xlu0 %4141
        %4143 = vadd.xlane.f32.xlu0 %v4111
        %v4144 = vpop.xlane.xlu0 %4143
        %4145 = vadd.xlane.f32.xlu0 %v4112
        %v4146 = vpop.xlane.xlu0 %4145
        %v4147 = vmul.f32 %v4116, %v541
        %v4148 = vmul.f32 %v4118, %v541
        %v4149 = vmul.f32 %v4120, %v541
        %v4150 = vmul.f32 %v4122, %v541
        %v4151 = vmul.f32 %v4124, %v541
        %v4152 = vmul.f32 %v4126, %v541
        %v4153 = vmul.f32 %v4128, %v541
        %v4154 = vmul.f32 %v4130, %v541
        %v4155 = vmul.f32 %v4132, %v541
        %v4156 = vmul.f32 %v4134, %v541
        %v4157 = vmul.f32 %v4136, %v541
        %v4158 = vmul.f32 %v4138, %v541
        %v4159 = vmul.f32 %v4140, %v541
        %v4160 = vmul.f32 %v4142, %v541
        %v4161 = vmul.f32 %v4144, %v541
        %v4162 = vmul.f32 %v4146, %v541
        %v4163 = vmul.f32 %v4097, %v4097
        %v4164 = vmul.f32 %v4098, %v4098
        %v4165 = vmul.f32 %v4099, %v4099
        %v4166 = vmul.f32 %v4100, %v4100
        %v4167 = vmul.f32 %v4101, %v4101
        %v4168 = vmul.f32 %v4102, %v4102
        %v4169 = vmul.f32 %v4103, %v4103
        %v4170 = vmul.f32 %v4104, %v4104
        %v4171 = vmul.f32 %v4105, %v4105
        %v4172 = vmul.f32 %v4106, %v4106
        %v4173 = vmul.f32 %v4107, %v4107
        %v4174 = vmul.f32 %v4108, %v4108
        %v4175 = vmul.f32 %v4109, %v4109
        %v4176 = vmul.f32 %v4110, %v4110
        %v4177 = vmul.f32 %v4111, %v4111
        %v4178 = vmul.f32 %v4112, %v4112
        %4179 = vadd.xlane.f32.xlu0 %v4163
        %v4180 = vpop.xlane.xlu0 %4179
        %4181 = vadd.xlane.f32.xlu0 %v4164
        %v4182 = vpop.xlane.xlu0 %4181
        %4183 = vadd.xlane.f32.xlu0 %v4165
        %v4184 = vpop.xlane.xlu0 %4183
        %4185 = vadd.xlane.f32.xlu0 %v4166
        %v4186 = vpop.xlane.xlu0 %4185
        %4187 = vadd.xlane.f32.xlu0 %v4167
        %v4188 = vpop.xlane.xlu0 %4187
        %4189 = vadd.xlane.f32.xlu0 %v4168
        %v4190 = vpop.xlane.xlu0 %4189
        %4191 = vadd.xlane.f32.xlu0 %v4169
        %v4192 = vpop.xlane.xlu0 %4191
        %4193 = vadd.xlane.f32.xlu0 %v4170
        %v4194 = vpop.xlane.xlu0 %4193
        %4195 = vadd.xlane.f32.xlu0 %v4171
        %v4196 = vpop.xlane.xlu0 %4195
        %4197 = vadd.xlane.f32.xlu0 %v4172
        %v4198 = vpop.xlane.xlu0 %4197
        %4199 = vadd.xlane.f32.xlu0 %v4173
        %v4200 = vpop.xlane.xlu0 %4199
        %4201 = vadd.xlane.f32.xlu0 %v4174
        %v4202 = vpop.xlane.xlu0 %4201
        %4203 = vadd.xlane.f32.xlu0 %v4175
        %v4204 = vpop.xlane.xlu0 %4203
        %4205 = vadd.xlane.f32.xlu0 %v4176
        %v4206 = vpop.xlane.xlu0 %4205
        %4207 = vadd.xlane.f32.xlu0 %v4177
        %v4208 = vpop.xlane.xlu0 %4207
        %4209 = vadd.xlane.f32.xlu0 %v4178
        %v4210 = vpop.xlane.xlu0 %4209
        %v4211 = vmul.f32 %v4180, %v541
        %v4212 = vmul.f32 %v4182, %v541
        %v4213 = vmul.f32 %v4184, %v541
        %v4214 = vmul.f32 %v4186, %v541
        %v4215 = vmul.f32 %v4188, %v541
        %v4216 = vmul.f32 %v4190, %v541
        %v4217 = vmul.f32 %v4192, %v541
        %v4218 = vmul.f32 %v4194, %v541
        %v4219 = vmul.f32 %v4196, %v541
        %v4220 = vmul.f32 %v4198, %v541
        %v4221 = vmul.f32 %v4200, %v541
        %v4222 = vmul.f32 %v4202, %v541
        %v4223 = vmul.f32 %v4204, %v541
        %v4224 = vmul.f32 %v4206, %v541
        %v4225 = vmul.f32 %v4208, %v541
        %v4226 = vmul.f32 %v4210, %v541
        %v4227 = vmul.f32 %v4147, %v4147
        %v4228 = vmul.f32 %v4148, %v4148
        %v4229 = vmul.f32 %v4149, %v4149
        %v4230 = vmul.f32 %v4150, %v4150
        %v4231 = vmul.f32 %v4151, %v4151
        %v4232 = vmul.f32 %v4152, %v4152
        %v4233 = vmul.f32 %v4153, %v4153
        %v4234 = vmul.f32 %v4154, %v4154
        %v4235 = vmul.f32 %v4155, %v4155
        %v4236 = vmul.f32 %v4156, %v4156
        %v4237 = vmul.f32 %v4157, %v4157
        %v4238 = vmul.f32 %v4158, %v4158
        %v4239 = vmul.f32 %v4159, %v4159
        %v4240 = vmul.f32 %v4160, %v4160
        %v4241 = vmul.f32 %v4161, %v4161
        %v4242 = vmul.f32 %v4162, %v4162
        %v4243 = vsub.f32 %v4211, %v4227
        %v4244 = vsub.f32 %v4212, %v4228
        %v4245 = vsub.f32 %v4213, %v4229
        %v4246 = vsub.f32 %v4214, %v4230
        %v4247 = vsub.f32 %v4215, %v4231
        %v4248 = vsub.f32 %v4216, %v4232
        %v4249 = vsub.f32 %v4217, %v4233
        %v4250 = vsub.f32 %v4218, %v4234
        %v4251 = vsub.f32 %v4219, %v4235
        %v4252 = vsub.f32 %v4220, %v4236
        %v4253 = vsub.f32 %v4221, %v4237
        %v4254 = vsub.f32 %v4222, %v4238
        %v4255 = vsub.f32 %v4223, %v4239
        %v4256 = vsub.f32 %v4224, %v4240
        %v4257 = vsub.f32 %v4225, %v4241
        %v4258 = vsub.f32 %v4226, %v4242
        %v4259 = vsub.f32 %v4097, %v4147
        %v4260 = vsub.f32 %v4098, %v4148
        %v4261 = vsub.f32 %v4099, %v4149
        %v4262 = vsub.f32 %v4100, %v4150
        %v4263 = vsub.f32 %v4101, %v4151
        %v4264 = vsub.f32 %v4102, %v4152
        %v4265 = vsub.f32 %v4103, %v4153
        %v4266 = vsub.f32 %v4104, %v4154
        %v4267 = vsub.f32 %v4105, %v4155
        %v4268 = vsub.f32 %v4106, %v4156
        %v4269 = vsub.f32 %v4107, %v4157
        %v4270 = vsub.f32 %v4108, %v4158
        %v4271 = vsub.f32 %v4109, %v4159
        %v4272 = vsub.f32 %v4110, %v4160
        %v4273 = vsub.f32 %v4111, %v4161
        %v4274 = vsub.f32 %v4112, %v4162
        %v4275 = vadd.f32 %v4243, 1e-05
        %v4276 = vadd.f32 %v4244, 1e-05
        %v4277 = vadd.f32 %v4245, 1e-05
        %v4278 = vadd.f32 %v4246, 1e-05
        %v4279 = vadd.f32 %v4247, 1e-05
        %v4280 = vadd.f32 %v4248, 1e-05
        %v4281 = vadd.f32 %v4249, 1e-05
        %v4282 = vadd.f32 %v4250, 1e-05
        %v4283 = vadd.f32 %v4251, 1e-05
        %v4284 = vadd.f32 %v4252, 1e-05
        %v4285 = vadd.f32 %v4253, 1e-05
        %v4286 = vadd.f32 %v4254, 1e-05
        %v4287 = vadd.f32 %v4255, 1e-05
        %v4288 = vadd.f32 %v4256, 1e-05
        %v4289 = vadd.f32 %v4257, 1e-05
        %v4290 = vadd.f32 %v4258, 1e-05
        %v4291 = vrsqrt.pop %v4275
        %v4292 = vrsqrt.pop %v4276
        %v4293 = vrsqrt.pop %v4277
        %v4294 = vrsqrt.pop %v4278
        %v4295 = vrsqrt.pop %v4279
        %v4296 = vrsqrt.pop %v4280
        %v4297 = vrsqrt.pop %v4281
        %v4298 = vrsqrt.pop %v4282
        %v4299 = vrsqrt.pop %v4283
        %v4300 = vrsqrt.pop %v4284
        %v4301 = vrsqrt.pop %v4285
        %v4302 = vrsqrt.pop %v4286
        %v4303 = vrsqrt.pop %v4287
        %v4304 = vrsqrt.pop %v4288
        %v4305 = vrsqrt.pop %v4289
        %v4306 = vrsqrt.pop %v4290
        %v4307 = vmul.f32 %v4259, %v4291
        %v4308 = vmul.f32 %v4260, %v4292
        %v4309 = vmul.f32 %v4261, %v4293
        %v4310 = vmul.f32 %v4262, %v4294
        %v4311 = vmul.f32 %v4263, %v4295
        %v4312 = vmul.f32 %v4264, %v4296
        %v4313 = vmul.f32 %v4265, %v4297
        %v4314 = vmul.f32 %v4266, %v4298
        %v4315 = vmul.f32 %v4267, %v4299
        %v4316 = vmul.f32 %v4268, %v4300
        %v4317 = vmul.f32 %v4269, %v4301
        %v4318 = vmul.f32 %v4270, %v4302
        %v4319 = vmul.f32 %v4271, %v4303
        %v4320 = vmul.f32 %v4272, %v4304
        %v4321 = vmul.f32 %v4273, %v4305
        %v4322 = vmul.f32 %v4274, %v4306
        %v4324 = vlaneseq
        %v4325 = vshrl.u32 %v4324, 7
        %v4326 = vsub.s32 0, %v4325
        %v4327 = vrot.slane %v4113, %v4326
        %v4329 = vmul.f32 %v4307, %v4327
        %v4330 = vmul.f32 %v4308, %v4327
        %v4331 = vmul.f32 %v4309, %v4327
        %v4332 = vmul.f32 %v4310, %v4327
        %v4333 = vmul.f32 %v4311, %v4327
        %v4334 = vmul.f32 %v4312, %v4327
        %v4335 = vmul.f32 %v4313, %v4327
        %v4336 = vmul.f32 %v4314, %v4327
        %v4337 = vmul.f32 %v4315, %v4327
        %v4338 = vmul.f32 %v4316, %v4327
        %v4339 = vmul.f32 %v4317, %v4327
        %v4340 = vmul.f32 %v4318, %v4327
        %v4341 = vmul.f32 %v4319, %v4327
        %v4342 = vmul.f32 %v4320, %v4327
        %v4343 = vmul.f32 %v4321, %v4327
        %v4344 = vmul.f32 %v4322, %v4327
        %v4346 = vlaneseq
        %v4347 = vshrl.u32 %v4346, 7
        %v4348 = vsub.s32 0, %v4347
        %v4349 = vrot.slane %v4114, %v4348
        %v4351 = vadd.f32 %v4329, %v4349
        %v4352 = vadd.f32 %v4330, %v4349
        %v4353 = vadd.f32 %v4331, %v4349
        %v4354 = vadd.f32 %v4332, %v4349
        %v4355 = vadd.f32 %v4333, %v4349
        %v4356 = vadd.f32 %v4334, %v4349
        %v4357 = vadd.f32 %v4335, %v4349
        %v4358 = vadd.f32 %v4336, %v4349
        %v4359 = vadd.f32 %v4337, %v4349
        %v4360 = vadd.f32 %v4338, %v4349
        %v4361 = vadd.f32 %v4339, %v4349
        %v4362 = vadd.f32 %v4340, %v4349
        %v4363 = vadd.f32 %v4341, %v4349
        %v4364 = vadd.f32 %v4342, %v4349
        %v4365 = vadd.f32 %v4343, %v4349
        %v4366 = vadd.f32 %v4344, %v4349
        %v4367 = vpack.c.bf16 %v4352, %v4351
        %v4368 = vpack.c.bf16 %v4354, %v4353
        %v4369 = vpack.c.bf16 %v4356, %v4355
        %v4370 = vpack.c.bf16 %v4358, %v4357
        %v4371 = vpack.c.bf16 %v4360, %v4359
        %v4372 = vpack.c.bf16 %v4362, %v4361
        %v4373 = vpack.c.bf16 %v4364, %v4363
        %v4374 = vpack.c.bf16 %v4366, %v4365
        %v4375 = vld [vmem:[#allocation10] sm:$0xff]
        %v4376 = vld [vmem:[#allocation10 + $0x8] sm:$0xff]
        %v4377 = vld [vmem:[#allocation10 + $0x10] sm:$0xff]
        %v4378 = vld [vmem:[#allocation10 + $0x18] sm:$0xff]
        %v4379 = vld [vmem:[#allocation10 + $0x20] sm:$0xff]
        %v4380 = vld [vmem:[#allocation10 + $0x28] sm:$0xff]
        %v4381 = vld [vmem:[#allocation10 + $0x30] sm:$0xff]
        %v4382 = vld [vmem:[#allocation10 + $0x38] sm:$0xff]
        %v4383 = vld [vmem:[#allocation10 + $0x40] sm:$0xff]
        %v4384 = vld [vmem:[#allocation10 + $0x48] sm:$0xff]
        %v4385 = vld [vmem:[#allocation10 + $0x50] sm:$0xff]
        %v4386 = vld [vmem:[#allocation10 + $0x58] sm:$0xff]
        %v4387 = vld [vmem:[#allocation10 + $0x60] sm:$0xff]
        %v4388 = vld [vmem:[#allocation10 + $0x68] sm:$0xff]
        %v4389 = vld [vmem:[#allocation10 + $0x70] sm:$0xff]
        %v4390 = vld [vmem:[#allocation10 + $0x78] sm:$0xff]
        %v4391 = vld [vmem:[#allocation10 + $0x80] sm:$0xff]
        %v4392 = vld [vmem:[#allocation10 + $0x88] sm:$0xff]
        %v4393 = vld [vmem:[#allocation10 + $0x90] sm:$0xff]
        %v4394 = vld [vmem:[#allocation10 + $0x98] sm:$0xff]
        %v4395 = vld [vmem:[#allocation10 + $0xa0] sm:$0xff]
        %v4396 = vld [vmem:[#allocation10 + $0xa8] sm:$0xff]
        %v4397 = vld [vmem:[#allocation10 + $0xb0] sm:$0xff]
        %v4398 = vld [vmem:[#allocation10 + $0xb8] sm:$0xff]
        %v4399 = vld [vmem:[#allocation10 + $0xc0] sm:$0xff]
        %v4400 = vld [vmem:[#allocation10 + $0xc8] sm:$0xff]
        %v4401 = vld [vmem:[#allocation10 + $0xd0] sm:$0xff]
        %v4402 = vld [vmem:[#allocation10 + $0xd8] sm:$0xff]
        %v4403 = vld [vmem:[#allocation10 + $0xe0] sm:$0xff]
        %v4404 = vld [vmem:[#allocation10 + $0xe8] sm:$0xff]
        %v4405 = vld [vmem:[#allocation10 + $0xf0] sm:$0xff]
        %v4406 = vld [vmem:[#allocation10 + $0xf8] sm:$0xff]
        %v4407 = vld [vmem:[%s9] sm:$0xf]
        %v4409 = vlaneseq
        %v4410 = vshrl.u32 %v4409, 7
        %v4411 = vsub.s32 0, %v4410
        %v4412 = vrot.slane %v4407, %v4411
        %v4413 = vlaneseq
        %v4414 = vshrl.u32 %v4413, 7
        %v4415 = vsub.s32 1, %v4414
        %v4416 = vrot.slane %v4407, %v4415
        %v4417 = vlaneseq
        %v4418 = vshrl.u32 %v4417, 7
        %v4419 = vsub.s32 2, %v4418
        %v4420 = vrot.slane %v4407, %v4419
        %v4421 = vlaneseq
        %v4422 = vshrl.u32 %v4421, 7
        %v4423 = vsub.s32 3, %v4422
        %v4424 = vrot.slane %v4407, %v4423
        %v4461 = vunpack.c.l.b16 %v4375
        %v4462 = vunpack.c.h.b16 %v4375
        %v4463 = vunpack.c.l.b16 %v4376
        %v4464 = vunpack.c.h.b16 %v4376
        %v4465 = vunpack.c.l.b16 %v4377
        %v4466 = vunpack.c.h.b16 %v4377
        %v4467 = vunpack.c.l.b16 %v4378
        %v4468 = vunpack.c.h.b16 %v4378
        %v4469 = vunpack.c.l.b16 %v4379
        %v4470 = vunpack.c.h.b16 %v4379
        %v4471 = vunpack.c.l.b16 %v4380
        %v4472 = vunpack.c.h.b16 %v4380
        %v4473 = vunpack.c.l.b16 %v4381
        %v4474 = vunpack.c.h.b16 %v4381
        %v4475 = vunpack.c.l.b16 %v4382
        %v4476 = vunpack.c.h.b16 %v4382
        %v4477 = vunpack.c.l.b16 %v4383
        %v4478 = vunpack.c.h.b16 %v4383
        %v4479 = vunpack.c.l.b16 %v4384
        %v4480 = vunpack.c.h.b16 %v4384
        %v4481 = vunpack.c.l.b16 %v4385
        %v4482 = vunpack.c.h.b16 %v4385
        %v4483 = vunpack.c.l.b16 %v4386
        %v4484 = vunpack.c.h.b16 %v4386
        %v4485 = vunpack.c.l.b16 %v4387
        %v4486 = vunpack.c.h.b16 %v4387
        %v4487 = vunpack.c.l.b16 %v4388
        %v4488 = vunpack.c.h.b16 %v4388
        %v4489 = vunpack.c.l.b16 %v4389
        %v4490 = vunpack.c.h.b16 %v4389
        %v4491 = vunpack.c.l.b16 %v4390
        %v4492 = vunpack.c.h.b16 %v4390
        %v4493 = vunpack.c.l.b16 %v4391
        %v4494 = vunpack.c.h.b16 %v4391
        %v4495 = vunpack.c.l.b16 %v4392
        %v4496 = vunpack.c.h.b16 %v4392
        %v4497 = vunpack.c.l.b16 %v4393
        %v4498 = vunpack.c.h.b16 %v4393
        %v4499 = vunpack.c.l.b16 %v4394
        %v4500 = vunpack.c.h.b16 %v4394
        %v4501 = vunpack.c.l.b16 %v4395
        %v4502 = vunpack.c.h.b16 %v4395
        %v4503 = vunpack.c.l.b16 %v4396
        %v4504 = vunpack.c.h.b16 %v4396
        %v4505 = vunpack.c.l.b16 %v4397
        %v4506 = vunpack.c.h.b16 %v4397
        %v4507 = vunpack.c.l.b16 %v4398
        %v4508 = vunpack.c.h.b16 %v4398
        %v4509 = vunpack.c.l.b16 %v4399
        %v4510 = vunpack.c.h.b16 %v4399
        %v4511 = vunpack.c.l.b16 %v4400
        %v4512 = vunpack.c.h.b16 %v4400
        %v4513 = vunpack.c.l.b16 %v4401
        %v4514 = vunpack.c.h.b16 %v4401
        %v4515 = vunpack.c.l.b16 %v4402
        %v4516 = vunpack.c.h.b16 %v4402
        %v4517 = vunpack.c.l.b16 %v4403
        %v4518 = vunpack.c.h.b16 %v4403
        %v4519 = vunpack.c.l.b16 %v4404
        %v4520 = vunpack.c.h.b16 %v4404
        %v4521 = vunpack.c.l.b16 %v4405
        %v4522 = vunpack.c.h.b16 %v4405
        %v4523 = vunpack.c.l.b16 %v4406
        %v4524 = vunpack.c.h.b16 %v4406
        %v4525 = vpack.c.b16 %v4465, %v4461
        %v4526 = vpack.c.b16 %v4466, %v4462
        %v4527 = vpack.c.b16 %v4467, %v4463
        %v4528 = vpack.c.b16 %v4468, %v4464
        %v4529 = vpack.c.b16 %v4473, %v4469
        %v4530 = vpack.c.b16 %v4474, %v4470
        %v4531 = vpack.c.b16 %v4475, %v4471
        %v4532 = vpack.c.b16 %v4476, %v4472
        %v4533 = vpack.c.b16 %v4481, %v4477
        %v4534 = vpack.c.b16 %v4482, %v4478
        %v4535 = vpack.c.b16 %v4483, %v4479
        %v4536 = vpack.c.b16 %v4484, %v4480
        %v4537 = vpack.c.b16 %v4489, %v4485
        %v4538 = vpack.c.b16 %v4490, %v4486
        %v4539 = vpack.c.b16 %v4491, %v4487
        %v4540 = vpack.c.b16 %v4492, %v4488
        %v4541 = vpack.c.b16 %v4497, %v4493
        %v4542 = vpack.c.b16 %v4498, %v4494
        %v4543 = vpack.c.b16 %v4499, %v4495
        %v4544 = vpack.c.b16 %v4500, %v4496
        %v4545 = vpack.c.b16 %v4505, %v4501
        %v4546 = vpack.c.b16 %v4506, %v4502
        %v4547 = vpack.c.b16 %v4507, %v4503
        %v4548 = vpack.c.b16 %v4508, %v4504
        %v4549 = vpack.c.b16 %v4513, %v4509
        %v4550 = vpack.c.b16 %v4514, %v4510
        %v4551 = vpack.c.b16 %v4515, %v4511
        %v4552 = vpack.c.b16 %v4516, %v4512
        %v4553 = vpack.c.b16 %v4521, %v4517
        %v4554 = vpack.c.b16 %v4522, %v4518
        %v4555 = vpack.c.b16 %v4523, %v4519
        %v4556 = vpack.c.b16 %v4524, %v4520
        %4589 = vmatprep.subr.bf16.mxu0 %v4526
        %4590 = vmatpush1.bf16.msra.mxu0 %v4525
        %4591 = vmatprep.subr.bf16.mxu0 %v4530
        %4592 = vmatpush1.bf16.msra.mxu0 %v4529
        %4593 = vmatprep.subr.bf16.mxu0 %v4534
        %4594 = vmatpush1.bf16.msra.mxu0 %v4533
        %4595 = vmatprep.subr.bf16.mxu0 %v4538
        %4596 = vmatpush1.bf16.msra.mxu0 %v4537
        %4597 = vmatprep.subr.bf16.mxu0 %v4542
        %4598 = vmatpush1.bf16.msra.mxu0 %v4541
        %4599 = vmatprep.subr.bf16.mxu0 %v4546
        %4600 = vmatpush1.bf16.msra.mxu0 %v4545
        %4601 = vmatprep.subr.bf16.mxu0 %v4550
        %4602 = vmatpush1.bf16.msra.mxu0 %v4549
        %4603 = vmatprep.subr.bf16.mxu0 %v4554
        %4604 = vmatpush1.bf16.msra.mxu0 %v4553
        %4605 = vmatprep.subr.bf16.mxu0 0
        %4606 = vmatpush1.bf16.msra.mxu0 0
        %4607 = vmatprep.subr.bf16.mxu0 0
        %4608 = vmatpush1.bf16.msra.mxu0 0
        %4609 = vmatprep.subr.bf16.mxu0 0
        %4610 = vmatpush1.bf16.msra.mxu0 0
        %4611 = vmatprep.subr.bf16.mxu0 0
        %4612 = vmatpush1.bf16.msra.mxu0 0
        %4613 = vmatprep.subr.bf16.mxu0 0
        %4614 = vmatpush1.bf16.msra.mxu0 0
        %4615 = vmatprep.subr.bf16.mxu0 0
        %4616 = vmatpush1.bf16.msra.mxu0 0
        %4617 = vmatprep.subr.bf16.mxu0 0
        %4618 = vmatpush1.bf16.msra.mxu0 0
        %4619 = vmatprep.subr.bf16.mxu0 0
        %4620 = vmatpush1.bf16.msra.mxu0 0
        %4621 = vmatprep.mubr.bf16.mxu0 0
        %4622 = vmatmul.mubr.bf16.gmra.mrb[0].mxu0 %v4367
        %v4623 = vpop.f32.mrb[0].mxu0
        %v4624 = vadd.f32 %v4412, %v4623
        %v4625 = vpop.f32.mrb[0].mxu0
        %v4626 = vadd.f32 %v4416, %v4625
        %v4627 = vpop.f32.mrb[0].mxu0
        %v4628 = vadd.f32 %v4412, %v4627
        %v4629 = vpop.f32.mrb[0].mxu0
        %v4630 = vadd.f32 %v4416, %v4629
        %4631 = vmatprep.mubr.bf16.mxu0 0
        %4632 = vmatmul.mubr.bf16.gmra.mrb[0].mxu0 %v4368
        %v4633 = vpop.f32.mrb[0].mxu0
        %v4634 = vadd.f32 %v4412, %v4633
        %v4635 = vpop.f32.mrb[0].mxu0
        %v4636 = vadd.f32 %v4416, %v4635
        %v4637 = vpop.f32.mrb[0].mxu0
        %v4638 = vadd.f32 %v4412, %v4637
        %v4639 = vpop.f32.mrb[0].mxu0
        %v4640 = vadd.f32 %v4416, %v4639
        %4641 = vmatprep.mubr.bf16.mxu0 0
        %4642 = vmatmul.mubr.bf16.gmra.mrb[0].mxu0 %v4369
        %v4643 = vpop.f32.mrb[0].mxu0
        %v4644 = vadd.f32 %v4412, %v4643
        %v4645 = vpop.f32.mrb[0].mxu0
        %v4646 = vadd.f32 %v4416, %v4645
        %v4647 = vpop.f32.mrb[0].mxu0
        %v4648 = vadd.f32 %v4412, %v4647
        %v4649 = vpop.f32.mrb[0].mxu0
        %v4650 = vadd.f32 %v4416, %v4649
        %4651 = vmatprep.mubr.bf16.mxu0 0
        %4652 = vmatmul.mubr.bf16.gmra.mrb[0].mxu0 %v4370
        %v4653 = vpop.f32.mrb[0].mxu0
        %v4654 = vadd.f32 %v4412, %v4653
        %v4655 = vpop.f32.mrb[0].mxu0
        %v4656 = vadd.f32 %v4416, %v4655
        %v4657 = vpop.f32.mrb[0].mxu0
        %v4658 = vadd.f32 %v4412, %v4657
        %v4659 = vpop.f32.mrb[0].mxu0
        %v4660 = vadd.f32 %v4416, %v4659
        %4661 = vmatprep.mubr.bf16.mxu0 0
        %4662 = vmatmul.mubr.bf16.gmra.mrb[0].mxu0 %v4371
        %v4663 = vpop.f32.mrb[0].mxu0
        %v4664 = vadd.f32 %v4412, %v4663
        %v4665 = vpop.f32.mrb[0].mxu0
        %v4666 = vadd.f32 %v4416, %v4665
        %v4667 = vpop.f32.mrb[0].mxu0
        %v4668 = vadd.f32 %v4412, %v4667
        %v4669 = vpop.f32.mrb[0].mxu0
        %v4670 = vadd.f32 %v4416, %v4669
        %4671 = vmatprep.mubr.bf16.mxu0 0
        %4672 = vmatmul.mubr.bf16.gmra.mrb[0].mxu0 %v4372
        %v4673 = vpop.f32.mrb[0].mxu0
        %v4674 = vadd.f32 %v4412, %v4673
        %v4675 = vpop.f32.mrb[0].mxu0
        %v4676 = vadd.f32 %v4416, %v4675
        %v4677 = vpop.f32.mrb[0].mxu0
        %v4678 = vadd.f32 %v4412, %v4677
        %v4679 = vpop.f32.mrb[0].mxu0
        %v4680 = vadd.f32 %v4416, %v4679
        %4681 = vmatprep.mubr.bf16.mxu0 0
        %4682 = vmatmul.mubr.bf16.gmra.mrb[0].mxu0 %v4373
        %v4683 = vpop.f32.mrb[0].mxu0
        %v4684 = vadd.f32 %v4412, %v4683
        %v4685 = vpop.f32.mrb[0].mxu0
        %v4686 = vadd.f32 %v4416, %v4685
        %v4687 = vpop.f32.mrb[0].mxu0
        %v4688 = vadd.f32 %v4412, %v4687
        %v4689 = vpop.f32.mrb[0].mxu0
        %v4690 = vadd.f32 %v4416, %v4689
        %4691 = vmatprep.mubr.bf16.mxu0 0
        %4692 = vmatmul.mubr.bf16.gmra.mrb[0].mxu0 %v4374
        %v4693 = vpop.f32.mrb[0].mxu0
        %v4694 = vadd.f32 %v4412, %v4693
        %v4695 = vpop.f32.mrb[0].mxu0
        %v4696 = vadd.f32 %v4416, %v4695
        %v4697 = vpop.f32.mrb[0].mxu0
        %v4698 = vadd.f32 %v4412, %v4697
        %v4699 = vpop.f32.mrb[0].mxu0
        %v4700 = vadd.f32 %v4416, %v4699
        %4701 = vdwg.mxu0
        %4702 = vmatprep.subr.bf16.mxu0 %v4528
        %4703 = vmatpush1.bf16.msra.mxu0 %v4527
        %4704 = vmatprep.subr.bf16.mxu0 %v4532
        %4705 = vmatpush1.bf16.msra.mxu0 %v4531
        %4706 = vmatprep.subr.bf16.mxu0 %v4536
        %4707 = vmatpush1.bf16.msra.mxu0 %v4535
        %4708 = vmatprep.subr.bf16.mxu0 %v4540
        %4709 = vmatpush1.bf16.msra.mxu0 %v4539
        %4710 = vmatprep.subr.bf16.mxu0 %v4544
        %4711 = vmatpush1.bf16.msra.mxu0 %v4543
        %4712 = vmatprep.subr.bf16.mxu0 %v4548
        %4713 = vmatpush1.bf16.msra.mxu0 %v4547
        %4714 = vmatprep.subr.bf16.mxu0 %v4552
        %4715 = vmatpush1.bf16.msra.mxu0 %v4551
        %4716 = vmatprep.subr.bf16.mxu0 %v4556
        %4717 = vmatpush1.bf16.msra.mxu0 %v4555
        %4718 = vmatprep.subr.bf16.mxu0 0
        %4719 = vmatpush1.bf16.msra.mxu0 0
        %4720 = vmatprep.subr.bf16.mxu0 0
        %4721 = vmatpush1.bf16.msra.mxu0 0
        %4722 = vmatprep.subr.bf16.mxu0 0
        %4723 = vmatpush1.bf16.msra.mxu0 0
        %4724 = vmatprep.subr.bf16.mxu0 0
        %4725 = vmatpush1.bf16.msra.mxu0 0
        %4726 = vmatprep.subr.bf16.mxu0 0
        %4727 = vmatpush1.bf16.msra.mxu0 0
        %4728 = vmatprep.subr.bf16.mxu0 0
        %4729 = vmatpush1.bf16.msra.mxu0 0
        %4730 = vmatprep.subr.bf16.mxu0 0
        %4731 = vmatpush1.bf16.msra.mxu0 0
        %4732 = vmatprep.subr.bf16.mxu0 0
        %4733 = vmatpush1.bf16.msra.mxu0 0
        %4734 = vmatprep.mubr.bf16.mxu0 0
        %4735 = vmatmul.mubr.bf16.gmra.mrb[0].mxu0 %v4367
        %v4736 = vpop.f32.mrb[0].mxu0
        %v4737 = vadd.f32 %v4420, %v4736
        %v4738 = vpop.f32.mrb[0].mxu0
        %v4739 = vadd.f32 %v4424, %v4738
        %v4740 = vpop.f32.mrb[0].mxu0
        %v4741 = vadd.f32 %v4420, %v4740
        %v4742 = vpop.f32.mrb[0].mxu0
        %v4743 = vadd.f32 %v4424, %v4742
        %4744 = vmatprep.mubr.bf16.mxu0 0
        %4745 = vmatmul.mubr.bf16.gmra.mrb[0].mxu0 %v4368
        %v4746 = vpop.f32.mrb[0].mxu0
        %v4747 = vadd.f32 %v4420, %v4746
        %v4748 = vpop.f32.mrb[0].mxu0
        %v4749 = vadd.f32 %v4424, %v4748
        %v4750 = vpop.f32.mrb[0].mxu0
        %v4751 = vadd.f32 %v4420, %v4750
        %v4752 = vpop.f32.mrb[0].mxu0
        %v4753 = vadd.f32 %v4424, %v4752
        %4754 = vmatprep.mubr.bf16.mxu0 0
        %4755 = vmatmul.mubr.bf16.gmra.mrb[0].mxu0 %v4369
        %v4756 = vpop.f32.mrb[0].mxu0
        %v4757 = vadd.f32 %v4420, %v4756
        %v4758 = vpop.f32.mrb[0].mxu0
        %v4759 = vadd.f32 %v4424, %v4758
        %v4760 = vpop.f32.mrb[0].mxu0
        %v4761 = vadd.f32 %v4420, %v4760
        %v4762 = vpop.f32.mrb[0].mxu0
        %v4763 = vadd.f32 %v4424, %v4762
        %4764 = vmatprep.mubr.bf16.mxu0 0
        %4765 = vmatmul.mubr.bf16.gmra.mrb[0].mxu0 %v4370
        %v4766 = vpop.f32.mrb[0].mxu0
        %v4767 = vadd.f32 %v4420, %v4766
        %v4768 = vpop.f32.mrb[0].mxu0
        %v4769 = vadd.f32 %v4424, %v4768
        %v4770 = vpop.f32.mrb[0].mxu0
        %v4771 = vadd.f32 %v4420, %v4770
        %v4772 = vpop.f32.mrb[0].mxu0
        %v4773 = vadd.f32 %v4424, %v4772
        %4774 = vmatprep.mubr.bf16.mxu0 0
        %4775 = vmatmul.mubr.bf16.gmra.mrb[0].mxu0 %v4371
        %v4776 = vpop.f32.mrb[0].mxu0
        %v4777 = vadd.f32 %v4420, %v4776
        %v4778 = vpop.f32.mrb[0].mxu0
        %v4779 = vadd.f32 %v4424, %v4778
        %v4780 = vpop.f32.mrb[0].mxu0
        %v4781 = vadd.f32 %v4420, %v4780
        %v4782 = vpop.f32.mrb[0].mxu0
        %v4783 = vadd.f32 %v4424, %v4782
        %4784 = vmatprep.mubr.bf16.mxu0 0
        %4785 = vmatmul.mubr.bf16.gmra.mrb[0].mxu0 %v4372
        %v4786 = vpop.f32.mrb[0].mxu0
        %v4787 = vadd.f32 %v4420, %v4786
        %v4788 = vpop.f32.mrb[0].mxu0
        %v4789 = vadd.f32 %v4424, %v4788
        %v4790 = vpop.f32.mrb[0].mxu0
        %v4791 = vadd.f32 %v4420, %v4790
        %v4792 = vpop.f32.mrb[0].mxu0
        %v4793 = vadd.f32 %v4424, %v4792
        %4794 = vmatprep.mubr.bf16.mxu0 0
        %4795 = vmatmul.mubr.bf16.gmra.mrb[0].mxu0 %v4373
        %v4796 = vpop.f32.mrb[0].mxu0
        %v4797 = vadd.f32 %v4420, %v4796
        %v4798 = vpop.f32.mrb[0].mxu0
        %v4799 = vadd.f32 %v4424, %v4798
        %v4800 = vpop.f32.mrb[0].mxu0
        %v4801 = vadd.f32 %v4420, %v4800
        %v4802 = vpop.f32.mrb[0].mxu0
        %v4803 = vadd.f32 %v4424, %v4802
        %4804 = vmatprep.mubr.bf16.mxu0 0
        %4805 = vmatmul.mubr.bf16.gmra.mrb[0].mxu0 %v4374
        %v4806 = vpop.f32.mrb[0].mxu0
        %v4807 = vadd.f32 %v4420, %v4806
        %v4808 = vpop.f32.mrb[0].mxu0
        %v4809 = vadd.f32 %v4424, %v4808
        %v4810 = vpop.f32.mrb[0].mxu0
        %v4811 = vadd.f32 %v4420, %v4810
        %v4812 = vpop.f32.mrb[0].mxu0
        %v4813 = vadd.f32 %v4424, %v4812
        %4814 = vdwg.mxu0
        %v4815 = vmax.f32 %v4624, 0.0
        %v4816 = vmax.f32 %v4626, 0.0
        %v4817 = vmax.f32 %v4737, 0.0
        %v4818 = vmax.f32 %v4739, 0.0
        %v4819 = vmax.f32 %v4628, 0.0
        %v4820 = vmax.f32 %v4630, 0.0
        %v4821 = vmax.f32 %v4741, 0.0
        %v4822 = vmax.f32 %v4743, 0.0
        %v4823 = vmax.f32 %v4634, 0.0
        %v4824 = vmax.f32 %v4636, 0.0
        %v4825 = vmax.f32 %v4747, 0.0
        %v4826 = vmax.f32 %v4749, 0.0
        %v4827 = vmax.f32 %v4638, 0.0
        %v4828 = vmax.f32 %v4640, 0.0
        %v4829 = vmax.f32 %v4751, 0.0
        %v4830 = vmax.f32 %v4753, 0.0
        %v4831 = vmax.f32 %v4644, 0.0
        %v4832 = vmax.f32 %v4646, 0.0
        %v4833 = vmax.f32 %v4757, 0.0
        %v4834 = vmax.f32 %v4759, 0.0
        %v4835 = vmax.f32 %v4648, 0.0
        %v4836 = vmax.f32 %v4650, 0.0
        %v4837 = vmax.f32 %v4761, 0.0
        %v4838 = vmax.f32 %v4763, 0.0
        %v4839 = vmax.f32 %v4654, 0.0
        %v4840 = vmax.f32 %v4656, 0.0
        %v4841 = vmax.f32 %v4767, 0.0
        %v4842 = vmax.f32 %v4769, 0.0
        %v4843 = vmax.f32 %v4658, 0.0
        %v4844 = vmax.f32 %v4660, 0.0
        %v4845 = vmax.f32 %v4771, 0.0
        %v4846 = vmax.f32 %v4773, 0.0
        %v4847 = vmax.f32 %v4664, 0.0
        %v4848 = vmax.f32 %v4666, 0.0
        %v4849 = vmax.f32 %v4777, 0.0
        %v4850 = vmax.f32 %v4779, 0.0
        %v4851 = vmax.f32 %v4668, 0.0
        %v4852 = vmax.f32 %v4670, 0.0
        %v4853 = vmax.f32 %v4781, 0.0
        %v4854 = vmax.f32 %v4783, 0.0
        %v4855 = vmax.f32 %v4674, 0.0
        %v4856 = vmax.f32 %v4676, 0.0
        %v4857 = vmax.f32 %v4787, 0.0
        %v4858 = vmax.f32 %v4789, 0.0
        %v4859 = vmax.f32 %v4678, 0.0
        %v4860 = vmax.f32 %v4680, 0.0
        %v4861 = vmax.f32 %v4791, 0.0
        %v4862 = vmax.f32 %v4793, 0.0
        %v4863 = vmax.f32 %v4684, 0.0
        %v4864 = vmax.f32 %v4686, 0.0
        %v4865 = vmax.f32 %v4797, 0.0
        %v4866 = vmax.f32 %v4799, 0.0
        %v4867 = vmax.f32 %v4688, 0.0
        %v4868 = vmax.f32 %v4690, 0.0
        %v4869 = vmax.f32 %v4801, 0.0
        %v4870 = vmax.f32 %v4803, 0.0
        %v4871 = vmax.f32 %v4694, 0.0
        %v4872 = vmax.f32 %v4696, 0.0
        %v4873 = vmax.f32 %v4807, 0.0
        %v4874 = vmax.f32 %v4809, 0.0
        %v4875 = vmax.f32 %v4698, 0.0
        %v4876 = vmax.f32 %v4700, 0.0
        %v4877 = vmax.f32 %v4811, 0.0
        %v4878 = vmax.f32 %v4813, 0.0
        %v4879 = vpack.c.bf16 %v4819, %v4815
        %v4880 = vpack.c.bf16 %v4820, %v4816
        %v4881 = vpack.c.bf16 %v4821, %v4817
        %v4882 = vpack.c.bf16 %v4822, %v4818
        %v4883 = vpack.c.bf16 %v4827, %v4823
        %v4884 = vpack.c.bf16 %v4828, %v4824
        %v4885 = vpack.c.bf16 %v4829, %v4825
        %v4886 = vpack.c.bf16 %v4830, %v4826
        %v4887 = vpack.c.bf16 %v4835, %v4831
        %v4888 = vpack.c.bf16 %v4836, %v4832
        %v4889 = vpack.c.bf16 %v4837, %v4833
        %v4890 = vpack.c.bf16 %v4838, %v4834
        %v4891 = vpack.c.bf16 %v4843, %v4839
        %v4892 = vpack.c.bf16 %v4844, %v4840
        %v4893 = vpack.c.bf16 %v4845, %v4841
        %v4894 = vpack.c.bf16 %v4846, %v4842
        %v4895 = vpack.c.bf16 %v4851, %v4847
        %v4896 = vpack.c.bf16 %v4852, %v4848
        %v4897 = vpack.c.bf16 %v4853, %v4849
        %v4898 = vpack.c.bf16 %v4854, %v4850
        %v4899 = vpack.c.bf16 %v4859, %v4855
        %v4900 = vpack.c.bf16 %v4860, %v4856
        %v4901 = vpack.c.bf16 %v4861, %v4857
        %v4902 = vpack.c.bf16 %v4862, %v4858
        %v4903 = vpack.c.bf16 %v4867, %v4863
        %v4904 = vpack.c.bf16 %v4868, %v4864
        %v4905 = vpack.c.bf16 %v4869, %v4865
        %v4906 = vpack.c.bf16 %v4870, %v4866
        %v4907 = vpack.c.bf16 %v4875, %v4871
        %v4908 = vpack.c.bf16 %v4876, %v4872
        %v4909 = vpack.c.bf16 %v4877, %v4873
        %v4910 = vpack.c.bf16 %v4878, %v4874
        %v4911 = vld [vmem:[#allocation12] sm:$0xf]
        %v4912 = vld [vmem:[#allocation12 + $0x4] sm:$0xf]
        %v4913 = vld [vmem:[#allocation12 + $0x8] sm:$0xf]
        %v4914 = vld [vmem:[#allocation12 + $0xc] sm:$0xf]
        %v4915 = vld [vmem:[#allocation12 + $0x10] sm:$0xf]
        %v4916 = vld [vmem:[#allocation12 + $0x14] sm:$0xf]
        %v4917 = vld [vmem:[#allocation12 + $0x18] sm:$0xf]
        %v4918 = vld [vmem:[#allocation12 + $0x1c] sm:$0xf]
        %v4919 = vld [vmem:[#allocation12 + $0x20] sm:$0xf]
        %v4920 = vld [vmem:[#allocation12 + $0x24] sm:$0xf]
        %v4921 = vld [vmem:[#allocation12 + $0x28] sm:$0xf]
        %v4922 = vld [vmem:[#allocation12 + $0x2c] sm:$0xf]
        %v4923 = vld [vmem:[#allocation12 + $0x30] sm:$0xf]
        %v4924 = vld [vmem:[#allocation12 + $0x34] sm:$0xf]
        %v4925 = vld [vmem:[#allocation12 + $0x38] sm:$0xf]
        %v4926 = vld [vmem:[#allocation12 + $0x3c] sm:$0xf]
        %v4927 = vld [vmem:[#allocation12 + $0x40] sm:$0xf]
        %v4928 = vld [vmem:[#allocation12 + $0x44] sm:$0xf]
        %v4929 = vld [vmem:[#allocation12 + $0x48] sm:$0xf]
        %v4930 = vld [vmem:[#allocation12 + $0x4c] sm:$0xf]
        %v4931 = vld [vmem:[#allocation12 + $0x50] sm:$0xf]
        %v4932 = vld [vmem:[#allocation12 + $0x54] sm:$0xf]
        %v4933 = vld [vmem:[#allocation12 + $0x58] sm:$0xf]
        %v4934 = vld [vmem:[#allocation12 + $0x5c] sm:$0xf]
        %v4935 = vld [vmem:[#allocation12 + $0x60] sm:$0xf]
        %v4936 = vld [vmem:[#allocation12 + $0x64] sm:$0xf]
        %v4937 = vld [vmem:[#allocation12 + $0x68] sm:$0xf]
        %v4938 = vld [vmem:[#allocation12 + $0x6c] sm:$0xf]
        %v4939 = vld [vmem:[#allocation12 + $0x70] sm:$0xf]
        %v4940 = vld [vmem:[#allocation12 + $0x74] sm:$0xf]
        %v4941 = vld [vmem:[#allocation12 + $0x78] sm:$0xf]
        %v4942 = vld [vmem:[#allocation12 + $0x7c] sm:$0xf]
        %v4943 = vld [vmem:[#allocation12 + $0x80] sm:$0xf]
        %v4944 = vld [vmem:[#allocation12 + $0x84] sm:$0xf]
        %v4945 = vld [vmem:[#allocation12 + $0x88] sm:$0xf]
        %v4946 = vld [vmem:[#allocation12 + $0x8c] sm:$0xf]
        %v4947 = vld [vmem:[#allocation12 + $0x90] sm:$0xf]
        %v4948 = vld [vmem:[#allocation12 + $0x94] sm:$0xf]
        %v4949 = vld [vmem:[#allocation12 + $0x98] sm:$0xf]
        %v4950 = vld [vmem:[#allocation12 + $0x9c] sm:$0xf]
        %v4951 = vld [vmem:[#allocation12 + $0xa0] sm:$0xf]
        %v4952 = vld [vmem:[#allocation12 + $0xa4] sm:$0xf]
        %v4953 = vld [vmem:[#allocation12 + $0xa8] sm:$0xf]
        %v4954 = vld [vmem:[#allocation12 + $0xac] sm:$0xf]
        %v4955 = vld [vmem:[#allocation12 + $0xb0] sm:$0xf]
        %v4956 = vld [vmem:[#allocation12 + $0xb4] sm:$0xf]
        %v4957 = vld [vmem:[#allocation12 + $0xb8] sm:$0xf]
        %v4958 = vld [vmem:[#allocation12 + $0xbc] sm:$0xf]
        %v4959 = vld [vmem:[#allocation12 + $0xc0] sm:$0xf]
        %v4960 = vld [vmem:[#allocation12 + $0xc4] sm:$0xf]
        %v4961 = vld [vmem:[#allocation12 + $0xc8] sm:$0xf]
        %v4962 = vld [vmem:[#allocation12 + $0xcc] sm:$0xf]
        %v4963 = vld [vmem:[#allocation12 + $0xd0] sm:$0xf]
        %v4964 = vld [vmem:[#allocation12 + $0xd4] sm:$0xf]
        %v4965 = vld [vmem:[#allocation12 + $0xd8] sm:$0xf]
        %v4966 = vld [vmem:[#allocation12 + $0xdc] sm:$0xf]
        %v4967 = vld [vmem:[#allocation12 + $0xe0] sm:$0xf]
        %v4968 = vld [vmem:[#allocation12 + $0xe4] sm:$0xf]
        %v4969 = vld [vmem:[#allocation12 + $0xe8] sm:$0xf]
        %v4970 = vld [vmem:[#allocation12 + $0xec] sm:$0xf]
        %v4971 = vld [vmem:[#allocation12 + $0xf0] sm:$0xf]
        %v4972 = vld [vmem:[#allocation12 + $0xf4] sm:$0xf]
        %v4973 = vld [vmem:[#allocation12 + $0xf8] sm:$0xf]
        %v4974 = vld [vmem:[#allocation12 + $0xfc] sm:$0xf]
        %v4975 = vld [vmem:[%s11] sm:$0x1]
        %v4977 = vlaneseq
        %v4978 = vshrl.u32 %v4977, 7
        %v4979 = vsub.s32 0, %v4978
        %v4980 = vrot.slane %v4975, %v4979
        %v5046 = vunpack.c.l.b16 %v4911
        %v5047 = vunpack.c.l.b16 %v4912
        %v5048 = vunpack.c.l.b16 %v4913
        %v5049 = vunpack.c.l.b16 %v4914
        %v5050 = vunpack.c.l.b16 %v4915
        %v5051 = vunpack.c.l.b16 %v4916
        %v5052 = vunpack.c.l.b16 %v4917
        %v5053 = vunpack.c.l.b16 %v4918
        %v5054 = vunpack.c.l.b16 %v4919
        %v5055 = vunpack.c.l.b16 %v4920
        %v5056 = vunpack.c.l.b16 %v4921
        %v5057 = vunpack.c.l.b16 %v4922
        %v5058 = vunpack.c.l.b16 %v4923
        %v5059 = vunpack.c.l.b16 %v4924
        %v5060 = vunpack.c.l.b16 %v4925
        %v5061 = vunpack.c.l.b16 %v4926
        %v5062 = vunpack.c.l.b16 %v4927
        %v5063 = vunpack.c.l.b16 %v4928
        %v5064 = vunpack.c.l.b16 %v4929
        %v5065 = vunpack.c.l.b16 %v4930
        %v5066 = vunpack.c.l.b16 %v4931
        %v5067 = vunpack.c.l.b16 %v4932
        %v5068 = vunpack.c.l.b16 %v4933
        %v5069 = vunpack.c.l.b16 %v4934
        %v5070 = vunpack.c.l.b16 %v4935
        %v5071 = vunpack.c.l.b16 %v4936
        %v5072 = vunpack.c.l.b16 %v4937
        %v5073 = vunpack.c.l.b16 %v4938
        %v5074 = vunpack.c.l.b16 %v4939
        %v5075 = vunpack.c.l.b16 %v4940
        %v5076 = vunpack.c.l.b16 %v4941
        %v5077 = vunpack.c.l.b16 %v4942
        %v5078 = vunpack.c.l.b16 %v4943
        %v5079 = vunpack.c.l.b16 %v4944
        %v5080 = vunpack.c.l.b16 %v4945
        %v5081 = vunpack.c.l.b16 %v4946
        %v5082 = vunpack.c.l.b16 %v4947
        %v5083 = vunpack.c.l.b16 %v4948
        %v5084 = vunpack.c.l.b16 %v4949
        %v5085 = vunpack.c.l.b16 %v4950
        %v5086 = vunpack.c.l.b16 %v4951
        %v5087 = vunpack.c.l.b16 %v4952
        %v5088 = vunpack.c.l.b16 %v4953
        %v5089 = vunpack.c.l.b16 %v4954
        %v5090 = vunpack.c.l.b16 %v4955
        %v5091 = vunpack.c.l.b16 %v4956
        %v5092 = vunpack.c.l.b16 %v4957
        %v5093 = vunpack.c.l.b16 %v4958
        %v5094 = vunpack.c.l.b16 %v4959
        %v5095 = vunpack.c.l.b16 %v4960
        %v5096 = vunpack.c.l.b16 %v4961
        %v5097 = vunpack.c.l.b16 %v4962
        %v5098 = vunpack.c.l.b16 %v4963
        %v5099 = vunpack.c.l.b16 %v4964
        %v5100 = vunpack.c.l.b16 %v4965
        %v5101 = vunpack.c.l.b16 %v4966
        %v5102 = vunpack.c.l.b16 %v4967
        %v5103 = vunpack.c.l.b16 %v4968
        %v5104 = vunpack.c.l.b16 %v4969
        %v5105 = vunpack.c.l.b16 %v4970
        %v5106 = vunpack.c.l.b16 %v4971
        %v5107 = vunpack.c.l.b16 %v4972
        %v5108 = vunpack.c.l.b16 %v4973
        %v5109 = vunpack.c.l.b16 %v4974
        %v5110 = vpack.c.b16 %v5047, %v5046
        %v5111 = vpack.c.b16 %v5049, %v5048
        %v5112 = vpack.c.b16 %v5051, %v5050
        %v5113 = vpack.c.b16 %v5053, %v5052
        %v5114 = vpack.c.b16 %v5055, %v5054
        %v5115 = vpack.c.b16 %v5057, %v5056
        %v5116 = vpack.c.b16 %v5059, %v5058
        %v5117 = vpack.c.b16 %v5061, %v5060
        %v5118 = vpack.c.b16 %v5063, %v5062
        %v5119 = vpack.c.b16 %v5065, %v5064
        %v5120 = vpack.c.b16 %v5067, %v5066
        %v5121 = vpack.c.b16 %v5069, %v5068
        %v5122 = vpack.c.b16 %v5071, %v5070
        %v5123 = vpack.c.b16 %v5073, %v5072
        %v5124 = vpack.c.b16 %v5075, %v5074
        %v5125 = vpack.c.b16 %v5077, %v5076
        %v5126 = vpack.c.b16 %v5079, %v5078
        %v5127 = vpack.c.b16 %v5081, %v5080
        %v5128 = vpack.c.b16 %v5083, %v5082
        %v5129 = vpack.c.b16 %v5085, %v5084
        %v5130 = vpack.c.b16 %v5087, %v5086
        %v5131 = vpack.c.b16 %v5089, %v5088
        %v5132 = vpack.c.b16 %v5091, %v5090
        %v5133 = vpack.c.b16 %v5093, %v5092
        %v5134 = vpack.c.b16 %v5095, %v5094
        %v5135 = vpack.c.b16 %v5097, %v5096
        %v5136 = vpack.c.b16 %v5099, %v5098
        %v5137 = vpack.c.b16 %v5101, %v5100
        %v5138 = vpack.c.b16 %v5103, %v5102
        %v5139 = vpack.c.b16 %v5105, %v5104
        %v5140 = vpack.c.b16 %v5107, %v5106
        %v5141 = vpack.c.b16 %v5109, %v5108
        %5174 = vmatprep.subr.bf16.mxu0 0
        %5175 = vmatpush1.bf16.msra.mxu0 %v5110
        %5176 = vmatprep.subr.bf16.mxu0 0
        %5177 = vmatpush1.bf16.msra.mxu0 %v5111
        %5178 = vmatprep.subr.bf16.mxu0 0
        %5179 = vmatpush1.bf16.msra.mxu0 %v5112
        %5180 = vmatprep.subr.bf16.mxu0 0
        %5181 = vmatpush1.bf16.msra.mxu0 %v5113
        %5182 = vmatprep.subr.bf16.mxu0 0
        %5183 = vmatpush1.bf16.msra.mxu0 %v5114
        %5184 = vmatprep.subr.bf16.mxu0 0
        %5185 = vmatpush1.bf16.msra.mxu0 %v5115
        %5186 = vmatprep.subr.bf16.mxu0 0
        %5187 = vmatpush1.bf16.msra.mxu0 %v5116
        %5188 = vmatprep.subr.bf16.mxu0 0
        %5189 = vmatpush1.bf16.msra.mxu0 %v5117
        %5190 = vmatprep.subr.bf16.mxu0 0
        %5191 = vmatpush1.bf16.msra.mxu0 %v5118
        %5192 = vmatprep.subr.bf16.mxu0 0
        %5193 = vmatpush1.bf16.msra.mxu0 %v5119
        %5194 = vmatprep.subr.bf16.mxu0 0
        %5195 = vmatpush1.bf16.msra.mxu0 %v5120
        %5196 = vmatprep.subr.bf16.mxu0 0
        %5197 = vmatpush1.bf16.msra.mxu0 %v5121
        %5198 = vmatprep.subr.bf16.mxu0 0
        %5199 = vmatpush1.bf16.msra.mxu0 %v5122
        %5200 = vmatprep.subr.bf16.mxu0 0
        %5201 = vmatpush1.bf16.msra.mxu0 %v5123
        %5202 = vmatprep.subr.bf16.mxu0 0
        %5203 = vmatpush1.bf16.msra.mxu0 %v5124
        %5204 = vmatprep.subr.bf16.mxu0 0
        %5205 = vmatpush1.bf16.msra.mxu0 %v5125
        %5206 = vmatprep.mubr.bf16.mxu0 %v4880
        %5207 = vmatmul.mubr.bf16.gmra.mrb[0].mxu0 %v4879
        %v5208 = vpop.f32.mrb[0].mxu0
        %v5209 = vadd.f32 %v4980, %v5208
        %v5210 = vpop.f32.mrb[0].mxu0
        %v5211 = vpop.f32.mrb[0].mxu0
        %v5212 = vadd.f32 %v4980, %v5211
        %v5213 = vpop.f32.mrb[0].mxu0
        %5214 = vmatprep.mubr.bf16.mxu0 %v4884
        %5215 = vmatmul.mubr.bf16.gmra.mrb[0].mxu0 %v4883
        %v5216 = vpop.f32.mrb[0].mxu0
        %v5217 = vadd.f32 %v4980, %v5216
        %v5218 = vpop.f32.mrb[0].mxu0
        %v5219 = vpop.f32.mrb[0].mxu0
        %v5220 = vadd.f32 %v4980, %v5219
        %v5221 = vpop.f32.mrb[0].mxu0
        %5222 = vmatprep.mubr.bf16.mxu0 %v4888
        %5223 = vmatmul.mubr.bf16.gmra.mrb[0].mxu0 %v4887
        %v5224 = vpop.f32.mrb[0].mxu0
        %v5225 = vadd.f32 %v4980, %v5224
        %v5226 = vpop.f32.mrb[0].mxu0
        %v5227 = vpop.f32.mrb[0].mxu0
        %v5228 = vadd.f32 %v4980, %v5227
        %v5229 = vpop.f32.mrb[0].mxu0
        %5230 = vmatprep.mubr.bf16.mxu0 %v4892
        %5231 = vmatmul.mubr.bf16.gmra.mrb[0].mxu0 %v4891
        %v5232 = vpop.f32.mrb[0].mxu0
        %v5233 = vadd.f32 %v4980, %v5232
        %v5234 = vpop.f32.mrb[0].mxu0
        %v5235 = vpop.f32.mrb[0].mxu0
        %v5236 = vadd.f32 %v4980, %v5235
        %v5237 = vpop.f32.mrb[0].mxu0
        %5238 = vmatprep.mubr.bf16.mxu0 %v4896
        %5239 = vmatmul.mubr.bf16.gmra.mrb[0].mxu0 %v4895
        %v5240 = vpop.f32.mrb[0].mxu0
        %v5241 = vadd.f32 %v4980, %v5240
        %v5242 = vpop.f32.mrb[0].mxu0
        %v5243 = vpop.f32.mrb[0].mxu0
        %v5244 = vadd.f32 %v4980, %v5243
        %v5245 = vpop.f32.mrb[0].mxu0
        %5246 = vmatprep.mubr.bf16.mxu0 %v4900
        %5247 = vmatmul.mubr.bf16.gmra.mrb[0].mxu0 %v4899
        %v5248 = vpop.f32.mrb[0].mxu0
        %v5249 = vadd.f32 %v4980, %v5248
        %v5250 = vpop.f32.mrb[0].mxu0
        %v5251 = vpop.f32.mrb[0].mxu0
        %v5252 = vadd.f32 %v4980, %v5251
        %v5253 = vpop.f32.mrb[0].mxu0
        %5254 = vmatprep.mubr.bf16.mxu0 %v4904
        %5255 = vmatmul.mubr.bf16.gmra.mrb[0].mxu0 %v4903
        %v5256 = vpop.f32.mrb[0].mxu0
        %v5257 = vadd.f32 %v4980, %v5256
        %v5258 = vpop.f32.mrb[0].mxu0
        %v5259 = vpop.f32.mrb[0].mxu0
        %v5260 = vadd.f32 %v4980, %v5259
        %v5261 = vpop.f32.mrb[0].mxu0
        %5262 = vmatprep.mubr.bf16.mxu0 %v4908
        %5263 = vmatmul.mubr.bf16.gmra.mrb[0].mxu0 %v4907
        %v5264 = vpop.f32.mrb[0].mxu0
        %v5265 = vadd.f32 %v4980, %v5264
        %v5266 = vpop.f32.mrb[0].mxu0
        %v5267 = vpop.f32.mrb[0].mxu0
        %v5268 = vadd.f32 %v4980, %v5267
        %v5269 = vpop.f32.mrb[0].mxu0
        %5270 = vdwg.mxu0
        %5271 = vmatprep.subr.bf16.mxu0 0
        %5272 = vmatpush1.bf16.msra.mxu0 %v5126
        %5273 = vmatprep.subr.bf16.mxu0 0
        %5274 = vmatpush1.bf16.msra.mxu0 %v5127
        %5275 = vmatprep.subr.bf16.mxu0 0
        %5276 = vmatpush1.bf16.msra.mxu0 %v5128
        %5277 = vmatprep.subr.bf16.mxu0 0
        %5278 = vmatpush1.bf16.msra.mxu0 %v5129
        %5279 = vmatprep.subr.bf16.mxu0 0
        %5280 = vmatpush1.bf16.msra.mxu0 %v5130
        %5281 = vmatprep.subr.bf16.mxu0 0
        %5282 = vmatpush1.bf16.msra.mxu0 %v5131
        %5283 = vmatprep.subr.bf16.mxu0 0
        %5284 = vmatpush1.bf16.msra.mxu0 %v5132
        %5285 = vmatprep.subr.bf16.mxu0 0
        %5286 = vmatpush1.bf16.msra.mxu0 %v5133
        %5287 = vmatprep.subr.bf16.mxu0 0
        %5288 = vmatpush1.bf16.msra.mxu0 %v5134
        %5289 = vmatprep.subr.bf16.mxu0 0
        %5290 = vmatpush1.bf16.msra.mxu0 %v5135
        %5291 = vmatprep.subr.bf16.mxu0 0
        %5292 = vmatpush1.bf16.msra.mxu0 %v5136
        %5293 = vmatprep.subr.bf16.mxu0 0
        %5294 = vmatpush1.bf16.msra.mxu0 %v5137
        %5295 = vmatprep.subr.bf16.mxu0 0
        %5296 = vmatpush1.bf16.msra.mxu0 %v5138
        %5297 = vmatprep.subr.bf16.mxu0 0
        %5298 = vmatpush1.bf16.msra.mxu0 %v5139
        %5299 = vmatprep.subr.bf16.mxu0 0
        %5300 = vmatpush1.bf16.msra.mxu0 %v5140
        %5301 = vmatprep.subr.bf16.mxu0 0
        %5302 = vmatpush1.bf16.msra.mxu0 %v5141
        %5303 = vmatprep.mubr.bf16.mxu0 %v4882
        %5304 = vmatmul.mubr.bf16.gmra.mrb[0].mxu0 %v4881
        %v5305 = vpop.f32.mrb[0].mxu0
        %v5306 = vadd.f32 %v5209, %v5305
        %v5307 = vpop.f32.mrb[0].mxu0
        %v5308 = vpop.f32.mrb[0].mxu0
        %v5309 = vadd.f32 %v5212, %v5308
        %v5310 = vpop.f32.mrb[0].mxu0
        %5311 = vmatprep.mubr.bf16.mxu0 %v4886
        %5312 = vmatmul.mubr.bf16.gmra.mrb[0].mxu0 %v4885
        %v5313 = vpop.f32.mrb[0].mxu0
        %v5314 = vadd.f32 %v5217, %v5313
        %v5315 = vpop.f32.mrb[0].mxu0
        %v5316 = vpop.f32.mrb[0].mxu0
        %v5317 = vadd.f32 %v5220, %v5316
        %v5318 = vpop.f32.mrb[0].mxu0
        %5319 = vmatprep.mubr.bf16.mxu0 %v4890
        %5320 = vmatmul.mubr.bf16.gmra.mrb[0].mxu0 %v4889
        %v5321 = vpop.f32.mrb[0].mxu0
        %v5322 = vadd.f32 %v5225, %v5321
        %v5323 = vpop.f32.mrb[0].mxu0
        %v5324 = vpop.f32.mrb[0].mxu0
        %v5325 = vadd.f32 %v5228, %v5324
        %v5326 = vpop.f32.mrb[0].mxu0
        %5327 = vmatprep.mubr.bf16.mxu0 %v4894
        %5328 = vmatmul.mubr.bf16.gmra.mrb[0].mxu0 %v4893
        %v5329 = vpop.f32.mrb[0].mxu0
        %v5330 = vadd.f32 %v5233, %v5329
        %v5331 = vpop.f32.mrb[0].mxu0
        %v5332 = vpop.f32.mrb[0].mxu0
        %v5333 = vadd.f32 %v5236, %v5332
        %v5334 = vpop.f32.mrb[0].mxu0
        %5335 = vmatprep.mubr.bf16.mxu0 %v4898
        %5336 = vmatmul.mubr.bf16.gmra.mrb[0].mxu0 %v4897
        %v5337 = vpop.f32.mrb[0].mxu0
        %v5338 = vadd.f32 %v5241, %v5337
        %v5339 = vpop.f32.mrb[0].mxu0
        %v5340 = vpop.f32.mrb[0].mxu0
        %v5341 = vadd.f32 %v5244, %v5340
        %v5342 = vpop.f32.mrb[0].mxu0
        %5343 = vmatprep.mubr.bf16.mxu0 %v4902
        %5344 = vmatmul.mubr.bf16.gmra.mrb[0].mxu0 %v4901
        %v5345 = vpop.f32.mrb[0].mxu0
        %v5346 = vadd.f32 %v5249, %v5345
        %v5347 = vpop.f32.mrb[0].mxu0
        %v5348 = vpop.f32.mrb[0].mxu0
        %v5349 = vadd.f32 %v5252, %v5348
        %v5350 = vpop.f32.mrb[0].mxu0
        %5351 = vmatprep.mubr.bf16.mxu0 %v4906
        %5352 = vmatmul.mubr.bf16.gmra.mrb[0].mxu0 %v4905
        %v5353 = vpop.f32.mrb[0].mxu0
        %v5354 = vadd.f32 %v5257, %v5353
        %v5355 = vpop.f32.mrb[0].mxu0
        %v5356 = vpop.f32.mrb[0].mxu0
        %v5357 = vadd.f32 %v5260, %v5356
        %v5358 = vpop.f32.mrb[0].mxu0
        %5359 = vmatprep.mubr.bf16.mxu0 %v4910
        %5360 = vmatmul.mubr.bf16.gmra.mrb[0].mxu0 %v4909
        %v5361 = vpop.f32.mrb[0].mxu0
        %v5362 = vadd.f32 %v5265, %v5361
        %v5363 = vpop.f32.mrb[0].mxu0
        %v5364 = vpop.f32.mrb[0].mxu0
        %v5365 = vadd.f32 %v5268, %v5364
        %v5366 = vpop.f32.mrb[0].mxu0
        %5367 = vdwg.mxu0
        %v5368 = vadd.f32 %v4097, %v5306
        %v5369 = vadd.f32 %v4098, %v5309
        %v5370 = vadd.f32 %v4099, %v5314
        %v5371 = vadd.f32 %v4100, %v5317
        %v5372 = vadd.f32 %v4101, %v5322
        %v5373 = vadd.f32 %v4102, %v5325
        %v5374 = vadd.f32 %v4103, %v5330
        %v5375 = vadd.f32 %v4104, %v5333
        %v5376 = vadd.f32 %v4105, %v5338
        %v5377 = vadd.f32 %v4106, %v5341
        %v5378 = vadd.f32 %v4107, %v5346
        %v5379 = vadd.f32 %v4108, %v5349
        %v5380 = vadd.f32 %v4109, %v5354
        %v5381 = vadd.f32 %v4110, %v5357
        %v5382 = vadd.f32 %v4111, %v5362
        %v5383 = vadd.f32 %v4112, %v5365
        %5384 = vst [vmem:[%s489] sm:$0xff] %v5368
        %5385 = vst [vmem:[%s489 + $0x8] sm:$0xff] %v5369
        %5386 = vst [vmem:[%s489 + $0x10] sm:$0xff] %v5370
        %5387 = vst [vmem:[%s489 + $0x18] sm:$0xff] %v5371
        %5388 = vst [vmem:[%s489 + $0x20] sm:$0xff] %v5372
        %5389 = vst [vmem:[%s489 + $0x28] sm:$0xff] %v5373
        %5390 = vst [vmem:[%s489 + $0x30] sm:$0xff] %v5374
        %5391 = vst [vmem:[%s489 + $0x38] sm:$0xff] %v5375
        %5392 = vst [vmem:[%s489 + $0x40] sm:$0xff] %v5376
        %5393 = vst [vmem:[%s489 + $0x48] sm:$0xff] %v5377
        %5394 = vst [vmem:[%s489 + $0x50] sm:$0xff] %v5378
        %5395 = vst [vmem:[%s489 + $0x58] sm:$0xff] %v5379
        %5396 = vst [vmem:[%s489 + $0x60] sm:$0xff] %v5380
        %5397 = vst [vmem:[%s489 + $0x68] sm:$0xff] %v5381
        %5398 = vst [vmem:[%s489 + $0x70] sm:$0xff] %v5382
        %5399 = vst [vmem:[%s489 + $0x78] sm:$0xff] %v5383
        %s5400 = sand.u32 %s296, 1
        %s5401 = scalar_lea.sflag [#allocation6], %s5400
        %s5402 = sand.u32 %s296, 1
        %s5403 = smul.addr %s5402, 128
        %s5404 = scalar_lea.vmem [#allocation13], %s5403
        // Predicated region
        $region89: #{tpu_custom_call.1} parent=67 // pred_check
          %p5405 = pneg %p306
        $region90: #{tpu_custom_call.1} parent=67 // pred_check_branch
          %5407 = sbr.rel (%p5405) target = $region92
        $region91: #{tpu_custom_call.1} parent=67 // pred_region
          %s5409 = ssub.s32 2048, 2048
          %5410 = vsyncadd %s5401, %s5409
          %s5411 = smul.addr %s31, 16
          %s5412 = smul.addr %s5411, 128
          %s5413 = scalar_lea.hbm %s12, %s5412
          %s5414 = sshll.u32 %s5404, 4
          %s5415 = int_to_ptr.vmem [resolvable:$true] %s5414
          %5420 = dma.vmem_to_hbm [thread:$0]  %s5415, 2048, %s5413, %s5401, 128, 128, 8
        $region92: #{tpu_custom_call.1} parent=67 // pred_fallthru
          _
      $region68: #{tpu_custom_call.1} parent=5 // pred_fallthru
        _
      %p5421 = scmp.le.s32.totalorder 2, %s26
      // Predicated region
      $region93: #{tpu_custom_call.1} parent=5 // pred_check
        %p5422 = pneg %p5421
      $region94: #{tpu_custom_call.1} parent=5 // pred_check_branch
        %5424 = sbr.rel (%p5422) target = $region96
      $region95: #{tpu_custom_call.1} parent=5 // pred_region
        %s5425 = ssub.s32 %s26, 2
        // Predicated region
        $region97: #{tpu_custom_call.1} parent=95 // pred_check
          %p5426 = pneg %p312
        $region98: #{tpu_custom_call.1} parent=95 // pred_check_branch
          %5428 = sbr.rel (%p5426) target = $region100
        $region99: #{tpu_custom_call.1} parent=95 // pred_region
          %s5429 = sand.u32 %s297, 1
          %s5430 = scalar_lea.sflag [#allocation6], %s5429
          %s5431 = sand.u32 %s297, 1
          %s5432 = smul.addr %s5431, 128
          %s5433 = scalar_lea.vmem [#allocation13], %s5432
          %5434 = dma.done %s5430, 2048
        $region100: #{tpu_custom_call.1} parent=95 // pred_fallthru
          _
      $region96: #{tpu_custom_call.1} parent=5 // pred_fallthru
        _
    $region6: #{tpu_custom_call.1} parent=1 // loop_footer
      %s30 = sadd.s32 1, %s26
    $region7: #{tpu_custom_call.1} parent=1 // loop_footer_branch
      %25 = sbr.rel target = $region3
    $region8: #{tpu_custom_call.1} parent=1 // loop_exit
      _
    %5435 = vsyncpa [#allocation5], 1
    %s5436 = scalar_lea.sflag [#allocation5], 1
    %5437 = vsyncpa %s5436, 1
    %5438 = vsyncpa [#allocation8], 1
    %5439 = vsyncpa [#allocation11], 1
    %5440 = vsyncpa [#allocation6], 1
    %s5441 = scalar_lea.sflag [#allocation6], 1
    %5442 = vsyncpa %s5441, 1

</llo_original>
